<compile_context>
chip_gen: v7x
topology: tpu7x:2x2x1
jax: 0.10.0
libtpu: 0.0.40
codegen_flags: <defaults>
</compile_context>

<pallas_src>
import math
from typing import NamedTuple

import numpy as np
import jax
import jax.numpy as jnp
from jax import lax
from jax.experimental import pallas as pl
from jax.experimental.pallas import tpu as pltpu

# ----------------------------- configuration -------------------------------
IMG = 16          # img_size
PATCH = 4         # patch_size
STRIDE = 4        # stride_size (== patch -> non-overlapping)
IN_CH = 3         # in_chans
EMBED = 32        # embed_dim
DEPTH = 2         # depth
HEADS = 4         # num_heads
MLP_RATIO = 4.0
B = 2             # batch

NUM_X = (IMG - PATCH) // STRIDE + 1
NUM_Y = (IMG - PATCH) // STRIDE + 1
NUM_PATCHES = NUM_X * NUM_Y            # 16
SEQ = NUM_PATCHES + 1                  # +1 cls token = 17
SEQP = 24                              # SEQ padded to a sublane multiple
ROWS = B * SEQP                        # 48 token rows inside the kernel
HEAD_DIM = EMBED // HEADS              # 8
SCALE = HEAD_DIM ** -0.5               # qk_scale default
MLP_HID = int(EMBED * MLP_RATIO)       # 128
PATCH_DIM = IN_CH * PATCH * PATCH      # 48
LN_EPS = 1e-5                          # torch nn.LayerNorm default
NEG_INF = -1e30

# ------------------- static host-side constants (numpy) --------------------
# Scatter matrix: places patch-token row (b, i) into padded row b*SEQP + 1 + i.
_SCATTER_NP = np.zeros((ROWS, B * NUM_PATCHES), np.float32)
for _b in range(B):
    for _i in range(NUM_PATCHES):
        _SCATTER_NP[_b * SEQP + 1 + _i, _b * NUM_PATCHES + _i] = 1.0

# Additive attention mask: keep same-batch, non-padded keys; else -1e30.
_r = np.arange(ROWS)
_same_batch = (_r[:, None] // SEQP) == (_r[None, :] // SEQP)
_key_valid = (_r[None, :] % SEQP) < SEQ
_MASK_NP = np.where(_same_batch & _key_valid, 0.0, NEG_INF).astype(np.float32)


# ------------------------------ kernel helpers ------------------------------
def _layernorm(x, w, b):
    mu = jnp.mean(x, axis=-1, keepdims=True)
    var = jnp.mean((x - mu) ** 2, axis=-1, keepdims=True)
    return (x - mu) * lax.rsqrt(var + LN_EPS) * w + b


def _gelu_exact(x):
    # torch nn.GELU default = exact erf formulation
    return 0.5 * x * (1.0 + lax.erf(x * (1.0 / math.sqrt(2.0))))


# ------------------------------ fused kernel --------------------------------
def _make_fused_kernel(n_blocks):
    def kernel(patches_ref, convw_ref, base_ref, scat_ref, mask_ref,
               ln1w_ref, ln1b_ref, wqkv_ref, pw_ref, pb_ref,
               ln2w_ref, ln2b_ref, f1w_ref, f1b_ref, f2w_ref, f2b_ref,
               xout_ref, pattn_ref):
        # ---- patch embedding + cls token + positional embedding ----
        pe = jnp.dot(patches_ref[...], convw_ref[...],
                     preferred_element_type=jnp.float32)            # [B*NP, E]
        # base carries (cls + pos0) rows, (pos + conv_bias) rows and zero pad;
        # the 0/1 scatter matmul places patch embeddings into the padded rows
        # without any sublane shuffles.
        x = base_ref[...] + jnp.dot(scat_ref[...], pe,
                                    preferred_element_type=jnp.float32)  # [R, E]
        mask = mask_ref[...]                                         # [R, R]

        for d in range(n_blocks):
            # ---------------- norm1 + multi-head attention ----------------
            xn = _layernorm(x, ln1w_ref[d], ln1b_ref[d])
            # One fused QKV matmul per block; the attention scale is already
            # folded into the Q weight columns on the host.
            qkv = jnp.dot(xn, wqkv_ref[d],
                          preferred_element_type=jnp.float32)        # [R, 3E]
            q = qkv[:, 0 * EMBED:1 * EMBED]
            k = qkv[:, 1 * EMBED:2 * EMBED]
            v = qkv[:, 2 * EMBED:3 * EMBED]

            heads_out = []
            for h in range(HEADS):
                hs = slice(h * HEAD_DIM, (h + 1) * HEAD_DIM)
                qh, kh, vh = q[:, hs], k[:, hs], v[:, hs]            # [R, Dh]
                # q @ k.T without an explicit transpose (contract last dims).
                logits = lax.dot_general(
                    qh, kh, dimension_numbers=(((1,), (1,)), ((), ())),
                    preferred_element_type=jnp.float32)              # [R, R]
                if d == n_blocks - 1:
                    # pre-softmax cls-row logits (== attn[:, :, 0, :]) written
                    # as whole rows; host slices the patch columns 1:17.
                    for b in range(B):
                        row = b * HEADS + h
                        pattn_ref[row:row + 1, :] = \
                            logits[b * SEQP:b * SEQP + 1, :]
                lm = logits + mask   # block-diag batch + padded-key mask
                m = jnp.max(lm, axis=-1, keepdims=True)
                e = jnp.exp(lm - m)
                probs = e / jnp.sum(e, axis=-1, keepdims=True)
                heads_out.append(jnp.dot(probs, vh,
                                         preferred_element_type=jnp.float32))
            # concat heads -> single fused output projection
            attn_cat = jnp.concatenate(heads_out, axis=-1)           # [R, E]
            x = x + jnp.dot(attn_cat, pw_ref[d],
                            preferred_element_type=jnp.float32) + pb_ref[d]

            # -------------------------- norm2 + MLP -------------------------
            xn2 = _layernorm(x, ln2w_ref[d], ln2b_ref[d])
            h1 = jnp.dot(xn2, f1w_ref[d],
                         preferred_element_type=jnp.float32) + f1b_ref[d]
            h1 = _gelu_exact(h1)
            h2 = jnp.dot(h1, f2w_ref[d],
                         preferred_element_type=jnp.float32) + f2b_ref[d]
            x = x + h2

        xout_ref[...] = x

    return kernel


# ----------------------- one-time parameter preparation ---------------------
class PreppedParams(NamedTuple):
    convw: jax.Array
    base: jax.Array
    scat: jax.Array
    mask: jax.Array
    ln1w: jax.Array
    ln1b: jax.Array
    wqkv: jax.Array
    pw: jax.Array
    pb: jax.Array
    ln2w: jax.Array
    ln2b: jax.Array
    f1w: jax.Array
    f1b: jax.Array
    f2w: jax.Array
    f2b: jax.Array


def prepare_params(params, final_depth=11):
    """Hoisted, one-time weight preparation (called once, result cached by the
    caller).  Nothing here runs in the per-forward path."""
    n_blocks = max(1, min(final_depth, DEPTH))   # blocks[:final_depth]

    convw = jnp.asarray(params["conv_w"]).reshape(EMBED, PATCH_DIM).T
    convw = convw.astype(jnp.float32)

    cls = jnp.asarray(params["cls_token"]).reshape(1, EMBED)
    pos = jnp.asarray(params["pos_embed"]).reshape(SEQ, EMBED)
    base_rows = jnp.concatenate(
        [cls + pos[0:1],                                   # cls row (+ pos0)
         pos[1:] + jnp.asarray(params["conv_b"])[None, :], # patch rows
         jnp.zeros((SEQP - SEQ, EMBED), jnp.float32)],     # padding rows
        axis=0)
    base = jnp.tile(base_rows, (B, 1))                      # [B*SEQP, EMBED]

    blocks = params["blocks"][:n_blocks]

    def stack(name):
        return jnp.stack([jnp.asarray(blk[name]) for blk in blocks], axis=0)

    qkv = stack("qkv_w").astype(jnp.float32)                # (D, E, 3E)
    # Fold the attention scale into the Q columns (pattn semantics unchanged).
    wqkv = jnp.concatenate(
        [qkv[:, :, 0 * EMBED:1 * EMBED] * SCALE,
         qkv[:, :, 1 * EMBED:2 * EMBED],
         qkv[:, :, 2 * EMBED:3 * EMBED]], axis=-1)          # (D, E, 3E)

    pw = stack("proj_w").astype(jnp.float32)                # (D, E, E)
    f1w = stack("fc1_w").astype(jnp.float32)                # (D, E, HID)
    f2w = stack("fc2_w").astype(jnp.float32)                # (D, HID, E)

    def vec(name, dim):
        return stack(name).reshape(n_blocks, 1, dim).astype(jnp.float32)

    prepped = PreppedParams(
        convw=convw, base=base,
        scat=jnp.asarray(_SCATTER_NP), mask=jnp.asarray(_MASK_NP),
        ln1w=vec("ln1_w", EMBED), ln1b=vec("ln1_b", EMBED),
        wqkv=wqkv, pw=pw, pb=vec("proj_b", EMBED),
        ln2w=vec("ln2_w", EMBED), ln2b=vec("ln2_b", EMBED),
        f1w=f1w, f1b=vec("fc1_b", MLP_HID),
        f2w=f2w, f2b=vec("fc2_b", EMBED))
    # Materialize now so nothing is recomputed per forward call.
    return jax.tree_util.tree_map(jax.block_until_ready, prepped)


def _cost_estimate(n_blocks, kernel_inputs):
    per_block = (2 * ROWS * EMBED * 3 * EMBED                 # fused QKV
                 + 2 * (2 * HEADS * ROWS * ROWS * HEAD_DIM)   # logits + AV
                 + 2 * ROWS * EMBED * EMBED                   # proj
                 + 2 * (2 * ROWS * EMBED * MLP_HID))          # MLP
    flops = (2 * B * NUM_PATCHES * PATCH_DIM * EMBED          # patch embed
             + 2 * ROWS * B * NUM_PATCHES * EMBED             # scatter matmul
             + n_blocks * per_block)
    transcendentals = n_blocks * (HEADS * ROWS * ROWS         # softmax exp
                                  + ROWS * MLP_HID            # gelu erf
                                  + 4 * ROWS)                 # LN rsqrt
    bytes_accessed = (sum(int(np.prod(a.shape)) * a.dtype.itemsize
                          for a in kernel_inputs)
                      + (ROWS * EMBED + B * HEADS * ROWS) * 4)
    return pl.CostEstimate(flops=int(flops),
                           transcendentals=int(transcendentals),
                           bytes_accessed=int(bytes_accessed))


# ------------------------------ jitted forward ------------------------------
@jax.jit
def transreid_forward(x_nchw, prepped: PreppedParams):
    """Replicates TransReID.forward(x) with cam_label=None, view_label=None,
    mid_feature=0, occ_fix=False, occ_aware=False.
    Returns (x, occ_pred=None, attn) just like the PyTorch module."""
    n_blocks = prepped.wqkv.shape[0]

    # -- patch extraction (stride == patch): one reshape/transpose, matching
    #    torch Conv2d weight flatten order (C, kh, kw) --
    patches = x_nchw.reshape(B, IN_CH, NUM_Y, PATCH, NUM_X, PATCH)
    patches = patches.transpose(0, 2, 4, 1, 3, 5).reshape(B * NUM_PATCHES,
                                                          PATCH_DIM)
    patches = patches.astype(jnp.float32)

    kernel_inputs = (patches, prepped.convw, prepped.base, prepped.scat,
                     prepped.mask, prepped.ln1w, prepped.ln1b, prepped.wqkv,
                     prepped.pw, prepped.pb, prepped.ln2w, prepped.ln2b,
                     prepped.f1w, prepped.f1b, prepped.f2w, prepped.f2b)

    vmem_spec = pl.BlockSpec(memory_space=pltpu.MemorySpace.VMEM)

    x_pad, pattn = pl.pallas_call(
        _make_fused_kernel(n_blocks),
        out_shape=(
            jax.ShapeDtypeStruct((ROWS, EMBED), jnp.float32),
            jax.ShapeDtypeStruct((B * HEADS, ROWS), jnp.float32),
        ),
        in_specs=[vmem_spec] * len(kernel_inputs),
        out_specs=(vmem_spec, vmem_spec),
        cost_estimate=_cost_estimate(n_blocks, kernel_inputs),
    )(*kernel_inputs)

    x = x_pad.reshape(B, SEQP, EMBED)[:, :SEQ]        # drop the padding rows
    # pattn rows are ordered (batch, head); slice each batch's patch-key
    # columns 1..16 on the host (free under jit).
    slab = pattn.reshape(B, HEADS, ROWS)
    attn = jnp.stack(
        [slab[b, :, b * SEQP + 1: b * SEQP + 1 + NUM_PATCHES]
         for b in range(B)], axis=0)                   # [B, HEADS, NUM_PATCHES]
    occ_pred = None
    return x, occ_pred, attn


# --------------------------- synthetic parameters ---------------------------
def init_params(key):
    ks = jax.random.split(key, 4 + DEPTH)
    n = PATCH * PATCH * EMBED

    def tn(k, shape):
        # trunc_normal_(std=0.02) approximated by a clipped normal (synthetic init)
        return jnp.clip(jax.random.normal(k, shape, jnp.float32) * 0.02,
                        -0.04, 0.04)

    p = {
        "conv_w": jax.random.normal(ks[0], (EMBED, IN_CH, PATCH, PATCH),
                                    jnp.float32) * math.sqrt(2.0 / n),
        "conv_b": jax.random.normal(ks[1], (EMBED,), jnp.float32) * 0.01,
        "cls_token": tn(ks[2], (1, 1, EMBED)),
        "pos_embed": tn(ks[3], (1, SEQ, EMBED)),
    }

    blocks = []
    for i in range(DEPTH):
        bk = jax.random.split(ks[4 + i], 4)
        blocks.append({
            "ln1_w": jnp.ones((EMBED,), jnp.float32),
            "ln1_b": jnp.zeros((EMBED,), jnp.float32),
            "qkv_w": tn(bk[0], (EMBED, 3 * EMBED)),      # qkv_bias=False
            "proj_w": tn(bk[1], (EMBED, EMBED)),
            "proj_b": jnp.zeros((EMBED,), jnp.float32),
            "ln2_w": jnp.ones((EMBED,), jnp.float32),
            "ln2_b": jnp.zeros((EMBED,), jnp.float32),
            "fc1_w": tn(bk[2], (EMBED, MLP_HID)),
            "fc1_b": jnp.zeros((MLP_HID,), jnp.float32),
            "fc2_w": tn(bk[3], (MLP_HID, EMBED)),
            "fc2_b": jnp.zeros((EMBED,), jnp.float32),
        })
    p["blocks"] = blocks
    return p


# ----------------------------------- main -----------------------------------
if __name__ == "__main__":
    key = jax.random.PRNGKey(0)
    pkey, xkey = jax.random.split(key)
    params = init_params(pkey)

    # One-time, cached weight preparation (hoisted out of the forward path).
    prepped = prepare_params(params, final_depth=11)

    x = jax.random.normal(xkey, (B, IN_CH, IMG, IMG), jnp.float32)   # NCHW

    out_x, occ_pred, attn = transreid_forward(x, prepped)
    jax.block_until_ready(out_x)
    jax.block_until_ready(attn)

    assert out_x.shape == (B, SEQ, EMBED)
    assert occ_pred is None
    assert attn.shape == (B, HEADS, NUM_PATCHES)
    assert bool(jnp.all(jnp.isfinite(out_x))) and bool(jnp.all(jnp.isfinite(attn)))
    print("KERNEL_OK")
</pallas_src>

<mosaic_0001>
module attributes {stable_mosaic.version = 11 : i64} {
  func.func @kernel(%arg0: memref<32x48xf32, #tpu.memory_space<vmem>>, %arg1: memref<48x32xf32, #tpu.memory_space<vmem>>, %arg2: memref<48x32xf32, #tpu.memory_space<vmem>>, %arg3: memref<48x32xf32, #tpu.memory_space<vmem>>, %arg4: memref<48x48xf32, #tpu.memory_space<vmem>>, %arg5: memref<2x1x32xf32, #tpu.memory_space<vmem>>, %arg6: memref<2x1x32xf32, #tpu.memory_space<vmem>>, %arg7: memref<2x32x96xf32, #tpu.memory_space<vmem>>, %arg8: memref<2x32x32xf32, #tpu.memory_space<vmem>>, %arg9: memref<2x1x32xf32, #tpu.memory_space<vmem>>, %arg10: memref<2x1x32xf32, #tpu.memory_space<vmem>>, %arg11: memref<2x1x32xf32, #tpu.memory_space<vmem>>, %arg12: memref<2x32x128xf32, #tpu.memory_space<vmem>>, %arg13: memref<2x1x128xf32, #tpu.memory_space<vmem>>, %arg14: memref<2x128x32xf32, #tpu.memory_space<vmem>>, %arg15: memref<2x1x32xf32, #tpu.memory_space<vmem>>, %arg16: memref<48x32xf32, #tpu.memory_space<vmem>>, %arg17: memref<8x48xf32, #tpu.memory_space<vmem>>) attributes {dimension_semantics = [], scalar_prefetch = 0 : i64, scratch_operands = 0 : i64, tpu.core_type = #tpu.core_type<tc>} {
    %c0 = arith.constant 0 : index
    %c0_0 = arith.constant 0 : index
    %0 = vector.load %arg0[%c0, %c0_0] : memref<32x48xf32, #tpu.memory_space<vmem>>, vector<32x48xf32>
    %c0_1 = arith.constant 0 : index
    %c0_2 = arith.constant 0 : index
    %1 = vector.load %arg1[%c0_1, %c0_2] : memref<48x32xf32, #tpu.memory_space<vmem>>, vector<48x32xf32>
    %cst = arith.constant dense<0.000000e+00> : vector<32x32xf32>
    %2 = tpu.matmul %0, %1, %cst {dimension_numbers = #tpu.dot_dimension_numbers<[1], [0], [0], [1], [0, 0, 1, 1], [], []>} : vector<32x48xf32>, vector<48x32xf32>, vector<32x32xf32> -> vector<32x32xf32>
    %c0_3 = arith.constant 0 : index
    %c0_4 = arith.constant 0 : index
    %3 = vector.load %arg2[%c0_3, %c0_4] : memref<48x32xf32, #tpu.memory_space<vmem>>, vector<48x32xf32>
    %c0_5 = arith.constant 0 : index
    %c0_6 = arith.constant 0 : index
    %4 = vector.load %arg3[%c0_5, %c0_6] : memref<48x32xf32, #tpu.memory_space<vmem>>, vector<48x32xf32>
    %cst_7 = arith.constant dense<0.000000e+00> : vector<48x32xf32>
    %5 = tpu.matmul %4, %2, %cst_7 {dimension_numbers = #tpu.dot_dimension_numbers<[1], [0], [0], [1], [0, 0, 1, 1], [], []>} : vector<48x32xf32>, vector<32x32xf32>, vector<48x32xf32> -> vector<48x32xf32>
    %6 = arith.addf %3, %5 : vector<48x32xf32>
    %c0_8 = arith.constant 0 : index
    %c0_9 = arith.constant 0 : index
    %7 = vector.load %arg4[%c0_8, %c0_9] : memref<48x48xf32, #tpu.memory_space<vmem>>, vector<48x48xf32>
    %c0_10 = arith.constant 0 : index
    %c0_11 = arith.constant 0 : index
    %c0_12 = arith.constant 0 : index
    %8 = vector.load %arg5[%c0_10, %c0_11, %c0_12] : memref<2x1x32xf32, #tpu.memory_space<vmem>>, vector<1x1x32xf32>
    %9 = vector.shape_cast %8 : vector<1x1x32xf32> to vector<1x32xf32>
    %c0_13 = arith.constant 0 : index
    %c0_14 = arith.constant 0 : index
    %c0_15 = arith.constant 0 : index
    %10 = vector.load %arg6[%c0_13, %c0_14, %c0_15] : memref<2x1x32xf32, #tpu.memory_space<vmem>>, vector<1x1x32xf32>
    %11 = vector.shape_cast %10 : vector<1x1x32xf32> to vector<1x32xf32>
    %cst_16 = arith.constant dense<0.000000e+00> : vector<48xf32>
    %12 = vector.multi_reduction <add>, %6, %cst_16 [1] : vector<48x32xf32> to vector<48xf32>
    %13 = vector.shape_cast %12 : vector<48xf32> to vector<48x1xf32>
    %cst_17 = arith.constant 3.200000e+01 : f32
    %14 = vector.broadcast %cst_17 : f32 to vector<48x1xf32>
    %15 = arith.divf %13, %14 : vector<48x1xf32>
    %16 = vector.broadcast %15 : vector<48x1xf32> to vector<48x32xf32>
    %17 = arith.subf %6, %16 : vector<48x32xf32>
    %18 = arith.mulf %17, %17 : vector<48x32xf32>
    %cst_18 = arith.constant dense<0.000000e+00> : vector<48xf32>
    %19 = vector.multi_reduction <add>, %18, %cst_18 [1] : vector<48x32xf32> to vector<48xf32>
    %20 = vector.shape_cast %19 : vector<48xf32> to vector<48x1xf32>
    %cst_19 = arith.constant 3.200000e+01 : f32
    %21 = vector.broadcast %cst_19 : f32 to vector<48x1xf32>
    %22 = arith.divf %20, %21 : vector<48x1xf32>
    %23 = vector.broadcast %15 : vector<48x1xf32> to vector<48x32xf32>
    %24 = arith.subf %6, %23 : vector<48x32xf32>
    %cst_20 = arith.constant 9.99999974E-6 : f32
    %25 = vector.broadcast %cst_20 : f32 to vector<48x1xf32>
    %26 = arith.addf %22, %25 : vector<48x1xf32>
    %27 = math.rsqrt %26 : vector<48x1xf32>
    %28 = vector.broadcast %27 : vector<48x1xf32> to vector<48x32xf32>
    %29 = arith.mulf %24, %28 : vector<48x32xf32>
    %30 = vector.broadcast %9 : vector<1x32xf32> to vector<48x32xf32>
    %31 = arith.mulf %29, %30 : vector<48x32xf32>
    %32 = vector.broadcast %11 : vector<1x32xf32> to vector<48x32xf32>
    %33 = arith.addf %31, %32 : vector<48x32xf32>
    %c0_21 = arith.constant 0 : index
    %c0_22 = arith.constant 0 : index
    %c0_23 = arith.constant 0 : index
    %34 = vector.load %arg7[%c0_21, %c0_22, %c0_23] : memref<2x32x96xf32, #tpu.memory_space<vmem>>, vector<1x32x96xf32>
    %35 = vector.shape_cast %34 : vector<1x32x96xf32> to vector<32x96xf32>
    %cst_24 = arith.constant dense<0.000000e+00> : vector<48x96xf32>
    %36 = tpu.matmul %33, %35, %cst_24 {dimension_numbers = #tpu.dot_dimension_numbers<[1], [0], [0], [1], [0, 0, 1, 1], [], []>} : vector<48x32xf32>, vector<32x96xf32>, vector<48x96xf32> -> vector<48x96xf32>
    %37 = vector.extract_strided_slice %36 {offsets = [0, 0], sizes = [48, 32], strides = [1, 1]} : vector<48x96xf32> to vector<48x32xf32>
    %38 = vector.extract_strided_slice %36 {offsets = [0, 32], sizes = [48, 32], strides = [1, 1]} : vector<48x96xf32> to vector<48x32xf32>
    %39 = vector.extract_strided_slice %36 {offsets = [0, 64], sizes = [48, 32], strides = [1, 1]} : vector<48x96xf32> to vector<48x32xf32>
    %40 = vector.extract_strided_slice %37 {offsets = [0, 0], sizes = [48, 8], strides = [1, 1]} : vector<48x32xf32> to vector<48x8xf32>
    %41 = vector.extract_strided_slice %38 {offsets = [0, 0], sizes = [48, 8], strides = [1, 1]} : vector<48x32xf32> to vector<48x8xf32>
    %42 = vector.extract_strided_slice %39 {offsets = [0, 0], sizes = [48, 8], strides = [1, 1]} : vector<48x32xf32> to vector<48x8xf32>
    %cst_25 = arith.constant dense<0.000000e+00> : vector<48x48xf32>
    %43 = tpu.matmul %40, %41, %cst_25 {dimension_numbers = #tpu.dot_dimension_numbers<[1], [1], [0], [0], [0, 0, 1, 0], [], []>} : vector<48x8xf32>, vector<48x8xf32>, vector<48x48xf32> -> vector<48x48xf32>
    %44 = arith.addf %43, %7 : vector<48x48xf32>
    %cst_26 = arith.constant dense<0xFF800000> : vector<48xf32>
    %45 = vector.multi_reduction <maximumf>, %44, %cst_26 [1] : vector<48x48xf32> to vector<48xf32>
    %46 = vector.shape_cast %45 : vector<48xf32> to vector<48x1xf32>
    %47 = vector.broadcast %46 : vector<48x1xf32> to vector<48x48xf32>
    %48 = arith.subf %44, %47 : vector<48x48xf32>
    %49 = math.exp %48 : vector<48x48xf32>
    %cst_27 = arith.constant dense<0.000000e+00> : vector<48xf32>
    %50 = vector.multi_reduction <add>, %49, %cst_27 [1] : vector<48x48xf32> to vector<48xf32>
    %51 = vector.shape_cast %50 : vector<48xf32> to vector<48x1xf32>
    %52 = vector.broadcast %51 : vector<48x1xf32> to vector<48x48xf32>
    %53 = arith.divf %49, %52 : vector<48x48xf32>
    %cst_28 = arith.constant dense<0.000000e+00> : vector<48x8xf32>
    %54 = tpu.matmul %53, %42, %cst_28 {dimension_numbers = #tpu.dot_dimension_numbers<[1], [0], [0], [1], [0, 0, 1, 1], [], []>} : vector<48x48xf32>, vector<48x8xf32>, vector<48x8xf32> -> vector<48x8xf32>
    %55 = vector.extract_strided_slice %37 {offsets = [0, 8], sizes = [48, 8], strides = [1, 1]} : vector<48x32xf32> to vector<48x8xf32>
    %56 = vector.extract_strided_slice %38 {offsets = [0, 8], sizes = [48, 8], strides = [1, 1]} : vector<48x32xf32> to vector<48x8xf32>
    %57 = vector.extract_strided_slice %39 {offsets = [0, 8], sizes = [48, 8], strides = [1, 1]} : vector<48x32xf32> to vector<48x8xf32>
    %cst_29 = arith.constant dense<0.000000e+00> : vector<48x48xf32>
    %58 = tpu.matmul %55, %56, %cst_29 {dimension_numbers = #tpu.dot_dimension_numbers<[1], [1], [0], [0], [0, 0, 1, 0], [], []>} : vector<48x8xf32>, vector<48x8xf32>, vector<48x48xf32> -> vector<48x48xf32>
    %59 = arith.addf %58, %7 : vector<48x48xf32>
    %cst_30 = arith.constant dense<0xFF800000> : vector<48xf32>
    %60 = vector.multi_reduction <maximumf>, %59, %cst_30 [1] : vector<48x48xf32> to vector<48xf32>
    %61 = vector.shape_cast %60 : vector<48xf32> to vector<48x1xf32>
    %62 = vector.broadcast %61 : vector<48x1xf32> to vector<48x48xf32>
    %63 = arith.subf %59, %62 : vector<48x48xf32>
    %64 = math.exp %63 : vector<48x48xf32>
    %cst_31 = arith.constant dense<0.000000e+00> : vector<48xf32>
    %65 = vector.multi_reduction <add>, %64, %cst_31 [1] : vector<48x48xf32> to vector<48xf32>
    %66 = vector.shape_cast %65 : vector<48xf32> to vector<48x1xf32>
    %67 = vector.broadcast %66 : vector<48x1xf32> to vector<48x48xf32>
    %68 = arith.divf %64, %67 : vector<48x48xf32>
    %cst_32 = arith.constant dense<0.000000e+00> : vector<48x8xf32>
    %69 = tpu.matmul %68, %57, %cst_32 {dimension_numbers = #tpu.dot_dimension_numbers<[1], [0], [0], [1], [0, 0, 1, 1], [], []>} : vector<48x48xf32>, vector<48x8xf32>, vector<48x8xf32> -> vector<48x8xf32>
    %70 = vector.extract_strided_slice %37 {offsets = [0, 16], sizes = [48, 8], strides = [1, 1]} : vector<48x32xf32> to vector<48x8xf32>
    %71 = vector.extract_strided_slice %38 {offsets = [0, 16], sizes = [48, 8], strides = [1, 1]} : vector<48x32xf32> to vector<48x8xf32>
    %72 = vector.extract_strided_slice %39 {offsets = [0, 16], sizes = [48, 8], strides = [1, 1]} : vector<48x32xf32> to vector<48x8xf32>
    %cst_33 = arith.constant dense<0.000000e+00> : vector<48x48xf32>
    %73 = tpu.matmul %70, %71, %cst_33 {dimension_numbers = #tpu.dot_dimension_numbers<[1], [1], [0], [0], [0, 0, 1, 0], [], []>} : vector<48x8xf32>, vector<48x8xf32>, vector<48x48xf32> -> vector<48x48xf32>
    %74 = arith.addf %73, %7 : vector<48x48xf32>
    %cst_34 = arith.constant dense<0xFF800000> : vector<48xf32>
    %75 = vector.multi_reduction <maximumf>, %74, %cst_34 [1] : vector<48x48xf32> to vector<48xf32>
    %76 = vector.shape_cast %75 : vector<48xf32> to vector<48x1xf32>
    %77 = vector.broadcast %76 : vector<48x1xf32> to vector<48x48xf32>
    %78 = arith.subf %74, %77 : vector<48x48xf32>
    %79 = math.exp %78 : vector<48x48xf32>
    %cst_35 = arith.constant dense<0.000000e+00> : vector<48xf32>
    %80 = vector.multi_reduction <add>, %79, %cst_35 [1] : vector<48x48xf32> to vector<48xf32>
    %81 = vector.shape_cast %80 : vector<48xf32> to vector<48x1xf32>
    %82 = vector.broadcast %81 : vector<48x1xf32> to vector<48x48xf32>
    %83 = arith.divf %79, %82 : vector<48x48xf32>
    %cst_36 = arith.constant dense<0.000000e+00> : vector<48x8xf32>
    %84 = tpu.matmul %83, %72, %cst_36 {dimension_numbers = #tpu.dot_dimension_numbers<[1], [0], [0], [1], [0, 0, 1, 1], [], []>} : vector<48x48xf32>, vector<48x8xf32>, vector<48x8xf32> -> vector<48x8xf32>
    %85 = vector.extract_strided_slice %37 {offsets = [0, 24], sizes = [48, 8], strides = [1, 1]} : vector<48x32xf32> to vector<48x8xf32>
    %86 = vector.extract_strided_slice %38 {offsets = [0, 24], sizes = [48, 8], strides = [1, 1]} : vector<48x32xf32> to vector<48x8xf32>
    %87 = vector.extract_strided_slice %39 {offsets = [0, 24], sizes = [48, 8], strides = [1, 1]} : vector<48x32xf32> to vector<48x8xf32>
    %cst_37 = arith.constant dense<0.000000e+00> : vector<48x48xf32>
    %88 = tpu.matmul %85, %86, %cst_37 {dimension_numbers = #tpu.dot_dimension_numbers<[1], [1], [0], [0], [0, 0, 1, 0], [], []>} : vector<48x8xf32>, vector<48x8xf32>, vector<48x48xf32> -> vector<48x48xf32>
    %89 = arith.addf %88, %7 : vector<48x48xf32>
    %cst_38 = arith.constant dense<0xFF800000> : vector<48xf32>
    %90 = vector.multi_reduction <maximumf>, %89, %cst_38 [1] : vector<48x48xf32> to vector<48xf32>
    %91 = vector.shape_cast %90 : vector<48xf32> to vector<48x1xf32>
    %92 = vector.broadcast %91 : vector<48x1xf32> to vector<48x48xf32>
    %93 = arith.subf %89, %92 : vector<48x48xf32>
    %94 = math.exp %93 : vector<48x48xf32>
    %cst_39 = arith.constant dense<0.000000e+00> : vector<48xf32>
    %95 = vector.multi_reduction <add>, %94, %cst_39 [1] : vector<48x48xf32> to vector<48xf32>
    %96 = vector.shape_cast %95 : vector<48xf32> to vector<48x1xf32>
    %97 = vector.broadcast %96 : vector<48x1xf32> to vector<48x48xf32>
    %98 = arith.divf %94, %97 : vector<48x48xf32>
    %cst_40 = arith.constant dense<0.000000e+00> : vector<48x8xf32>
    %99 = tpu.matmul %98, %87, %cst_40 {dimension_numbers = #tpu.dot_dimension_numbers<[1], [0], [0], [1], [0, 0, 1, 1], [], []>} : vector<48x48xf32>, vector<48x8xf32>, vector<48x8xf32> -> vector<48x8xf32>
    %100 = tpu.concatenate %54, %69, %84, %99 in 1 : vector<48x8xf32>, vector<48x8xf32>, vector<48x8xf32>, vector<48x8xf32> -> vector<48x32xf32>
    %c0_41 = arith.constant 0 : index
    %c0_42 = arith.constant 0 : index
    %c0_43 = arith.constant 0 : index
    %101 = vector.load %arg8[%c0_41, %c0_42, %c0_43] : memref<2x32x32xf32, #tpu.memory_space<vmem>>, vector<1x32x32xf32>
    %102 = vector.shape_cast %101 : vector<1x32x32xf32> to vector<32x32xf32>
    %cst_44 = arith.constant dense<0.000000e+00> : vector<48x32xf32>
    %103 = tpu.matmul %100, %102, %cst_44 {dimension_numbers = #tpu.dot_dimension_numbers<[1], [0], [0], [1], [0, 0, 1, 1], [], []>} : vector<48x32xf32>, vector<32x32xf32>, vector<48x32xf32> -> vector<48x32xf32>
    %104 = arith.addf %6, %103 : vector<48x32xf32>
    %c0_45 = arith.constant 0 : index
    %c0_46 = arith.constant 0 : index
    %c0_47 = arith.constant 0 : index
    %105 = vector.load %arg9[%c0_45, %c0_46, %c0_47] : memref<2x1x32xf32, #tpu.memory_space<vmem>>, vector<1x1x32xf32>
    %106 = vector.shape_cast %105 : vector<1x1x32xf32> to vector<1x32xf32>
    %107 = vector.broadcast %106 : vector<1x32xf32> to vector<48x32xf32>
    %108 = arith.addf %104, %107 : vector<48x32xf32>
    %c0_48 = arith.constant 0 : index
    %c0_49 = arith.constant 0 : index
    %c0_50 = arith.constant 0 : index
    %109 = vector.load %arg10[%c0_48, %c0_49, %c0_50] : memref<2x1x32xf32, #tpu.memory_space<vmem>>, vector<1x1x32xf32>
    %110 = vector.shape_cast %109 : vector<1x1x32xf32> to vector<1x32xf32>
    %c0_51 = arith.constant 0 : index
    %c0_52 = arith.constant 0 : index
    %c0_53 = arith.constant 0 : index
    %111 = vector.load %arg11[%c0_51, %c0_52, %c0_53] : memref<2x1x32xf32, #tpu.memory_space<vmem>>, vector<1x1x32xf32>
    %112 = vector.shape_cast %111 : vector<1x1x32xf32> to vector<1x32xf32>
    %cst_54 = arith.constant dense<0.000000e+00> : vector<48xf32>
    %113 = vector.multi_reduction <add>, %108, %cst_54 [1] : vector<48x32xf32> to vector<48xf32>
    %114 = vector.shape_cast %113 : vector<48xf32> to vector<48x1xf32>
    %cst_55 = arith.constant 3.200000e+01 : f32
    %115 = vector.broadcast %cst_55 : f32 to vector<48x1xf32>
    %116 = arith.divf %114, %115 : vector<48x1xf32>
    %117 = vector.broadcast %116 : vector<48x1xf32> to vector<48x32xf32>
    %118 = arith.subf %108, %117 : vector<48x32xf32>
    %119 = arith.mulf %118, %118 : vector<48x32xf32>
    %cst_56 = arith.constant dense<0.000000e+00> : vector<48xf32>
    %120 = vector.multi_reduction <add>, %119, %cst_56 [1] : vector<48x32xf32> to vector<48xf32>
    %121 = vector.shape_cast %120 : vector<48xf32> to vector<48x1xf32>
    %cst_57 = arith.constant 3.200000e+01 : f32
    %122 = vector.broadcast %cst_57 : f32 to vector<48x1xf32>
    %123 = arith.divf %121, %122 : vector<48x1xf32>
    %124 = vector.broadcast %116 : vector<48x1xf32> to vector<48x32xf32>
    %125 = arith.subf %108, %124 : vector<48x32xf32>
    %cst_58 = arith.constant 9.99999974E-6 : f32
    %126 = vector.broadcast %cst_58 : f32 to vector<48x1xf32>
    %127 = arith.addf %123, %126 : vector<48x1xf32>
    %128 = math.rsqrt %127 : vector<48x1xf32>
    %129 = vector.broadcast %128 : vector<48x1xf32> to vector<48x32xf32>
    %130 = arith.mulf %125, %129 : vector<48x32xf32>
    %131 = vector.broadcast %110 : vector<1x32xf32> to vector<48x32xf32>
    %132 = arith.mulf %130, %131 : vector<48x32xf32>
    %133 = vector.broadcast %112 : vector<1x32xf32> to vector<48x32xf32>
    %134 = arith.addf %132, %133 : vector<48x32xf32>
    %c0_59 = arith.constant 0 : index
    %c0_60 = arith.constant 0 : index
    %c0_61 = arith.constant 0 : index
    %135 = vector.load %arg12[%c0_59, %c0_60, %c0_61] : memref<2x32x128xf32, #tpu.memory_space<vmem>>, vector<1x32x128xf32>
    %136 = vector.shape_cast %135 : vector<1x32x128xf32> to vector<32x128xf32>
    %cst_62 = arith.constant dense<0.000000e+00> : vector<48x128xf32>
    %137 = tpu.matmul %134, %136, %cst_62 {dimension_numbers = #tpu.dot_dimension_numbers<[1], [0], [0], [1], [0, 0, 1, 1], [], []>} : vector<48x32xf32>, vector<32x128xf32>, vector<48x128xf32> -> vector<48x128xf32>
    %c0_63 = arith.constant 0 : index
    %c0_64 = arith.constant 0 : index
    %c0_65 = arith.constant 0 : index
    %138 = vector.load %arg13[%c0_63, %c0_64, %c0_65] : memref<2x1x128xf32, #tpu.memory_space<vmem>>, vector<1x1x128xf32>
    %139 = vector.shape_cast %138 : vector<1x1x128xf32> to vector<1x128xf32>
    %140 = vector.broadcast %139 : vector<1x128xf32> to vector<48x128xf32>
    %141 = arith.addf %137, %140 : vector<48x128xf32>
    %cst_66 = arith.constant 5.000000e-01 : f32
    %142 = vector.broadcast %cst_66 : f32 to vector<48x128xf32>
    %143 = arith.mulf %142, %141 : vector<48x128xf32>
    %cst_67 = arith.constant 0.707106769 : f32
    %144 = vector.broadcast %cst_67 : f32 to vector<48x128xf32>
    %145 = arith.mulf %141, %144 : vector<48x128xf32>
    %146 = math.erf %145 : vector<48x128xf32>
    %cst_68 = arith.constant 1.000000e+00 : f32
    %147 = vector.broadcast %cst_68 : f32 to vector<48x128xf32>
    %148 = arith.addf %147, %146 : vector<48x128xf32>
    %149 = arith.mulf %143, %148 : vector<48x128xf32>
    %c0_69 = arith.constant 0 : index
    %c0_70 = arith.constant 0 : index
    %c0_71 = arith.constant 0 : index
    %150 = vector.load %arg14[%c0_69, %c0_70, %c0_71] : memref<2x128x32xf32, #tpu.memory_space<vmem>>, vector<1x128x32xf32>
    %151 = vector.shape_cast %150 : vector<1x128x32xf32> to vector<128x32xf32>
    %cst_72 = arith.constant dense<0.000000e+00> : vector<48x32xf32>
    %152 = tpu.matmul %149, %151, %cst_72 {dimension_numbers = #tpu.dot_dimension_numbers<[1], [0], [0], [1], [0, 0, 1, 1], [], []>} : vector<48x128xf32>, vector<128x32xf32>, vector<48x32xf32> -> vector<48x32xf32>
    %c0_73 = arith.constant 0 : index
    %c0_74 = arith.constant 0 : index
    %c0_75 = arith.constant 0 : index
    %153 = vector.load %arg15[%c0_73, %c0_74, %c0_75] : memref<2x1x32xf32, #tpu.memory_space<vmem>>, vector<1x1x32xf32>
    %154 = vector.shape_cast %153 : vector<1x1x32xf32> to vector<1x32xf32>
    %155 = vector.broadcast %154 : vector<1x32xf32> to vector<48x32xf32>
    %156 = arith.addf %152, %155 : vector<48x32xf32>
    %157 = arith.addf %108, %156 : vector<48x32xf32>
    %c1 = arith.constant 1 : index
    %c0_76 = arith.constant 0 : index
    %c0_77 = arith.constant 0 : index
    %158 = vector.load %arg5[%c1, %c0_76, %c0_77] : memref<2x1x32xf32, #tpu.memory_space<vmem>>, vector<1x1x32xf32>
    %159 = vector.shape_cast %158 : vector<1x1x32xf32> to vector<1x32xf32>
    %c1_78 = arith.constant 1 : index
    %c0_79 = arith.constant 0 : index
    %c0_80 = arith.constant 0 : index
    %160 = vector.load %arg6[%c1_78, %c0_79, %c0_80] : memref<2x1x32xf32, #tpu.memory_space<vmem>>, vector<1x1x32xf32>
    %161 = vector.shape_cast %160 : vector<1x1x32xf32> to vector<1x32xf32>
    %cst_81 = arith.constant dense<0.000000e+00> : vector<48xf32>
    %162 = vector.multi_reduction <add>, %157, %cst_81 [1] : vector<48x32xf32> to vector<48xf32>
    %163 = vector.shape_cast %162 : vector<48xf32> to vector<48x1xf32>
    %cst_82 = arith.constant 3.200000e+01 : f32
    %164 = vector.broadcast %cst_82 : f32 to vector<48x1xf32>
    %165 = arith.divf %163, %164 : vector<48x1xf32>
    %166 = vector.broadcast %165 : vector<48x1xf32> to vector<48x32xf32>
    %167 = arith.subf %157, %166 : vector<48x32xf32>
    %168 = arith.mulf %167, %167 : vector<48x32xf32>
    %cst_83 = arith.constant dense<0.000000e+00> : vector<48xf32>
    %169 = vector.multi_reduction <add>, %168, %cst_83 [1] : vector<48x32xf32> to vector<48xf32>
    %170 = vector.shape_cast %169 : vector<48xf32> to vector<48x1xf32>
    %cst_84 = arith.constant 3.200000e+01 : f32
    %171 = vector.broadcast %cst_84 : f32 to vector<48x1xf32>
    %172 = arith.divf %170, %171 : vector<48x1xf32>
    %173 = vector.broadcast %165 : vector<48x1xf32> to vector<48x32xf32>
    %174 = arith.subf %157, %173 : vector<48x32xf32>
    %cst_85 = arith.constant 9.99999974E-6 : f32
    %175 = vector.broadcast %cst_85 : f32 to vector<48x1xf32>
    %176 = arith.addf %172, %175 : vector<48x1xf32>
    %177 = math.rsqrt %176 : vector<48x1xf32>
    %178 = vector.broadcast %177 : vector<48x1xf32> to vector<48x32xf32>
    %179 = arith.mulf %174, %178 : vector<48x32xf32>
    %180 = vector.broadcast %159 : vector<1x32xf32> to vector<48x32xf32>
    %181 = arith.mulf %179, %180 : vector<48x32xf32>
    %182 = vector.broadcast %161 : vector<1x32xf32> to vector<48x32xf32>
    %183 = arith.addf %181, %182 : vector<48x32xf32>
    %c1_86 = arith.constant 1 : index
    %c0_87 = arith.constant 0 : index
    %c0_88 = arith.constant 0 : index
    %184 = vector.load %arg7[%c1_86, %c0_87, %c0_88] : memref<2x32x96xf32, #tpu.memory_space<vmem>>, vector<1x32x96xf32>
    %185 = vector.shape_cast %184 : vector<1x32x96xf32> to vector<32x96xf32>
    %cst_89 = arith.constant dense<0.000000e+00> : vector<48x96xf32>
    %186 = tpu.matmul %183, %185, %cst_89 {dimension_numbers = #tpu.dot_dimension_numbers<[1], [0], [0], [1], [0, 0, 1, 1], [], []>} : vector<48x32xf32>, vector<32x96xf32>, vector<48x96xf32> -> vector<48x96xf32>
    %187 = vector.extract_strided_slice %186 {offsets = [0, 0], sizes = [48, 32], strides = [1, 1]} : vector<48x96xf32> to vector<48x32xf32>
    %188 = vector.extract_strided_slice %186 {offsets = [0, 32], sizes = [48, 32], strides = [1, 1]} : vector<48x96xf32> to vector<48x32xf32>
    %189 = vector.extract_strided_slice %186 {offsets = [0, 64], sizes = [48, 32], strides = [1, 1]} : vector<48x96xf32> to vector<48x32xf32>
    %190 = vector.extract_strided_slice %187 {offsets = [0, 0], sizes = [48, 8], strides = [1, 1]} : vector<48x32xf32> to vector<48x8xf32>
    %191 = vector.extract_strided_slice %188 {offsets = [0, 0], sizes = [48, 8], strides = [1, 1]} : vector<48x32xf32> to vector<48x8xf32>
    %192 = vector.extract_strided_slice %189 {offsets = [0, 0], sizes = [48, 8], strides = [1, 1]} : vector<48x32xf32> to vector<48x8xf32>
    %cst_90 = arith.constant dense<0.000000e+00> : vector<48x48xf32>
    %193 = tpu.matmul %190, %191, %cst_90 {dimension_numbers = #tpu.dot_dimension_numbers<[1], [1], [0], [0], [0, 0, 1, 0], [], []>} : vector<48x8xf32>, vector<48x8xf32>, vector<48x48xf32> -> vector<48x48xf32>
    %194 = vector.extract_strided_slice %193 {offsets = [0, 0], sizes = [1, 48], strides = [1, 1]} : vector<48x48xf32> to vector<1x48xf32>
    %c0_91 = arith.constant 0 : index
    %c0_92 = arith.constant 0 : index
    %195 = vector.load %arg17[%c0_91, %c0_92] : memref<8x48xf32, #tpu.memory_space<vmem>>, vector<1x48xf32>
    tpu.vector_store %arg17[%c0_91, %c0_92], %194 {strides = array<i32>} : memref<8x48xf32, #tpu.memory_space<vmem>>, vector<1x48xf32>,
    %196 = vector.extract_strided_slice %193 {offsets = [24, 0], sizes = [1, 48], strides = [1, 1]} : vector<48x48xf32> to vector<1x48xf32>
    %c4 = arith.constant 4 : index
    %c0_93 = arith.constant 0 : index
    %197 = vector.load %arg17[%c4, %c0_93] : memref<8x48xf32, #tpu.memory_space<vmem>>, vector<1x48xf32>
    tpu.vector_store %arg17[%c4, %c0_93], %196 {strides = array<i32>} : memref<8x48xf32, #tpu.memory_space<vmem>>, vector<1x48xf32>,
    %198 = arith.addf %193, %7 : vector<48x48xf32>
    %cst_94 = arith.constant dense<0xFF800000> : vector<48xf32>
    %199 = vector.multi_reduction <maximumf>, %198, %cst_94 [1] : vector<48x48xf32> to vector<48xf32>
    %200 = vector.shape_cast %199 : vector<48xf32> to vector<48x1xf32>
    %201 = vector.broadcast %200 : vector<48x1xf32> to vector<48x48xf32>
    %202 = arith.subf %198, %201 : vector<48x48xf32>
    %203 = math.exp %202 : vector<48x48xf32>
    %cst_95 = arith.constant dense<0.000000e+00> : vector<48xf32>
    %204 = vector.multi_reduction <add>, %203, %cst_95 [1] : vector<48x48xf32> to vector<48xf32>
    %205 = vector.shape_cast %204 : vector<48xf32> to vector<48x1xf32>
    %206 = vector.broadcast %205 : vector<48x1xf32> to vector<48x48xf32>
    %207 = arith.divf %203, %206 : vector<48x48xf32>
    %cst_96 = arith.constant dense<0.000000e+00> : vector<48x8xf32>
    %208 = tpu.matmul %207, %192, %cst_96 {dimension_numbers = #tpu.dot_dimension_numbers<[1], [0], [0], [1], [0, 0, 1, 1], [], []>} : vector<48x48xf32>, vector<48x8xf32>, vector<48x8xf32> -> vector<48x8xf32>
    %209 = vector.extract_strided_slice %187 {offsets = [0, 8], sizes = [48, 8], strides = [1, 1]} : vector<48x32xf32> to vector<48x8xf32>
    %210 = vector.extract_strided_slice %188 {offsets = [0, 8], sizes = [48, 8], strides = [1, 1]} : vector<48x32xf32> to vector<48x8xf32>
    %211 = vector.extract_strided_slice %189 {offsets = [0, 8], sizes = [48, 8], strides = [1, 1]} : vector<48x32xf32> to vector<48x8xf32>
    %cst_97 = arith.constant dense<0.000000e+00> : vector<48x48xf32>
    %212 = tpu.matmul %209, %210, %cst_97 {dimension_numbers = #tpu.dot_dimension_numbers<[1], [1], [0], [0], [0, 0, 1, 0], [], []>} : vector<48x8xf32>, vector<48x8xf32>, vector<48x48xf32> -> vector<48x48xf32>
    %213 = vector.extract_strided_slice %212 {offsets = [0, 0], sizes = [1, 48], strides = [1, 1]} : vector<48x48xf32> to vector<1x48xf32>
    %c1_98 = arith.constant 1 : index
    %c0_99 = arith.constant 0 : index
    %214 = vector.load %arg17[%c1_98, %c0_99] : memref<8x48xf32, #tpu.memory_space<vmem>>, vector<1x48xf32>
    tpu.vector_store %arg17[%c1_98, %c0_99], %213 {strides = array<i32>} : memref<8x48xf32, #tpu.memory_space<vmem>>, vector<1x48xf32>,
    %215 = vector.extract_strided_slice %212 {offsets = [24, 0], sizes = [1, 48], strides = [1, 1]} : vector<48x48xf32> to vector<1x48xf32>
    %c5 = arith.constant 5 : index
    %c0_100 = arith.constant 0 : index
    %216 = vector.load %arg17[%c5, %c0_100] : memref<8x48xf32, #tpu.memory_space<vmem>>, vector<1x48xf32>
    tpu.vector_store %arg17[%c5, %c0_100], %215 {strides = array<i32>} : memref<8x48xf32, #tpu.memory_space<vmem>>, vector<1x48xf32>,
    %217 = arith.addf %212, %7 : vector<48x48xf32>
    %cst_101 = arith.constant dense<0xFF800000> : vector<48xf32>
    %218 = vector.multi_reduction <maximumf>, %217, %cst_101 [1] : vector<48x48xf32> to vector<48xf32>
    %219 = vector.shape_cast %218 : vector<48xf32> to vector<48x1xf32>
    %220 = vector.broadcast %219 : vector<48x1xf32> to vector<48x48xf32>
    %221 = arith.subf %217, %220 : vector<48x48xf32>
    %222 = math.exp %221 : vector<48x48xf32>
    %cst_102 = arith.constant dense<0.000000e+00> : vector<48xf32>
    %223 = vector.multi_reduction <add>, %222, %cst_102 [1] : vector<48x48xf32> to vector<48xf32>
    %224 = vector.shape_cast %223 : vector<48xf32> to vector<48x1xf32>
    %225 = vector.broadcast %224 : vector<48x1xf32> to vector<48x48xf32>
    %226 = arith.divf %222, %225 : vector<48x48xf32>
    %cst_103 = arith.constant dense<0.000000e+00> : vector<48x8xf32>
    %227 = tpu.matmul %226, %211, %cst_103 {dimension_numbers = #tpu.dot_dimension_numbers<[1], [0], [0], [1], [0, 0, 1, 1], [], []>} : vector<48x48xf32>, vector<48x8xf32>, vector<48x8xf32> -> vector<48x8xf32>
    %228 = vector.extract_strided_slice %187 {offsets = [0, 16], sizes = [48, 8], strides = [1, 1]} : vector<48x32xf32> to vector<48x8xf32>
    %229 = vector.extract_strided_slice %188 {offsets = [0, 16], sizes = [48, 8], strides = [1, 1]} : vector<48x32xf32> to vector<48x8xf32>
    %230 = vector.extract_strided_slice %189 {offsets = [0, 16], sizes = [48, 8], strides = [1, 1]} : vector<48x32xf32> to vector<48x8xf32>
    %cst_104 = arith.constant dense<0.000000e+00> : vector<48x48xf32>
    %231 = tpu.matmul %228, %229, %cst_104 {dimension_numbers = #tpu.dot_dimension_numbers<[1], [1], [0], [0], [0, 0, 1, 0], [], []>} : vector<48x8xf32>, vector<48x8xf32>, vector<48x48xf32> -> vector<48x48xf32>
    %232 = vector.extract_strided_slice %231 {offsets = [0, 0], sizes = [1, 48], strides = [1, 1]} : vector<48x48xf32> to vector<1x48xf32>
    %c2 = arith.constant 2 : index
    %c0_105 = arith.constant 0 : index
    %233 = vector.load %arg17[%c2, %c0_105] : memref<8x48xf32, #tpu.memory_space<vmem>>, vector<1x48xf32>
    tpu.vector_store %arg17[%c2, %c0_105], %232 {strides = array<i32>} : memref<8x48xf32, #tpu.memory_space<vmem>>, vector<1x48xf32>,
    %234 = vector.extract_strided_slice %231 {offsets = [24, 0], sizes = [1, 48], strides = [1, 1]} : vector<48x48xf32> to vector<1x48xf32>
    %c6 = arith.constant 6 : index
    %c0_106 = arith.constant 0 : index
    %235 = vector.load %arg17[%c6, %c0_106] : memref<8x48xf32, #tpu.memory_space<vmem>>, vector<1x48xf32>
    tpu.vector_store %arg17[%c6, %c0_106], %234 {strides = array<i32>} : memref<8x48xf32, #tpu.memory_space<vmem>>, vector<1x48xf32>,
    %236 = arith.addf %231, %7 : vector<48x48xf32>
    %cst_107 = arith.constant dense<0xFF800000> : vector<48xf32>
    %237 = vector.multi_reduction <maximumf>, %236, %cst_107 [1] : vector<48x48xf32> to vector<48xf32>
    %238 = vector.shape_cast %237 : vector<48xf32> to vector<48x1xf32>
    %239 = vector.broadcast %238 : vector<48x1xf32> to vector<48x48xf32>
    %240 = arith.subf %236, %239 : vector<48x48xf32>
    %241 = math.exp %240 : vector<48x48xf32>
    %cst_108 = arith.constant dense<0.000000e+00> : vector<48xf32>
    %242 = vector.multi_reduction <add>, %241, %cst_108 [1] : vector<48x48xf32> to vector<48xf32>
    %243 = vector.shape_cast %242 : vector<48xf32> to vector<48x1xf32>
    %244 = vector.broadcast %243 : vector<48x1xf32> to vector<48x48xf32>
    %245 = arith.divf %241, %244 : vector<48x48xf32>
    %cst_109 = arith.constant dense<0.000000e+00> : vector<48x8xf32>
    %246 = tpu.matmul %245, %230, %cst_109 {dimension_numbers = #tpu.dot_dimension_numbers<[1], [0], [0], [1], [0, 0, 1, 1], [], []>} : vector<48x48xf32>, vector<48x8xf32>, vector<48x8xf32> -> vector<48x8xf32>
    %247 = vector.extract_strided_slice %187 {offsets = [0, 24], sizes = [48, 8], strides = [1, 1]} : vector<48x32xf32> to vector<48x8xf32>
    %248 = vector.extract_strided_slice %188 {offsets = [0, 24], sizes = [48, 8], strides = [1, 1]} : vector<48x32xf32> to vector<48x8xf32>
    %249 = vector.extract_strided_slice %189 {offsets = [0, 24], sizes = [48, 8], strides = [1, 1]} : vector<48x32xf32> to vector<48x8xf32>
    %cst_110 = arith.constant dense<0.000000e+00> : vector<48x48xf32>
    %250 = tpu.matmul %247, %248, %cst_110 {dimension_numbers = #tpu.dot_dimension_numbers<[1], [1], [0], [0], [0, 0, 1, 0], [], []>} : vector<48x8xf32>, vector<48x8xf32>, vector<48x48xf32> -> vector<48x48xf32>
    %251 = vector.extract_strided_slice %250 {offsets = [0, 0], sizes = [1, 48], strides = [1, 1]} : vector<48x48xf32> to vector<1x48xf32>
    %c3 = arith.constant 3 : index
    %c0_111 = arith.constant 0 : index
    %252 = vector.load %arg17[%c3, %c0_111] : memref<8x48xf32, #tpu.memory_space<vmem>>, vector<1x48xf32>
    tpu.vector_store %arg17[%c3, %c0_111], %251 {strides = array<i32>} : memref<8x48xf32, #tpu.memory_space<vmem>>, vector<1x48xf32>,
    %253 = vector.extract_strided_slice %250 {offsets = [24, 0], sizes = [1, 48], strides = [1, 1]} : vector<48x48xf32> to vector<1x48xf32>
    %c7 = arith.constant 7 : index
    %c0_112 = arith.constant 0 : index
    %254 = vector.load %arg17[%c7, %c0_112] : memref<8x48xf32, #tpu.memory_space<vmem>>, vector<1x48xf32>
    tpu.vector_store %arg17[%c7, %c0_112], %253 {strides = array<i32>} : memref<8x48xf32, #tpu.memory_space<vmem>>, vector<1x48xf32>,
    %255 = arith.addf %250, %7 : vector<48x48xf32>
    %cst_113 = arith.constant dense<0xFF800000> : vector<48xf32>
    %256 = vector.multi_reduction <maximumf>, %255, %cst_113 [1] : vector<48x48xf32> to vector<48xf32>
    %257 = vector.shape_cast %256 : vector<48xf32> to vector<48x1xf32>
    %258 = vector.broadcast %257 : vector<48x1xf32> to vector<48x48xf32>
    %259 = arith.subf %255, %258 : vector<48x48xf32>
    %260 = math.exp %259 : vector<48x48xf32>
    %cst_114 = arith.constant dense<0.000000e+00> : vector<48xf32>
    %261 = vector.multi_reduction <add>, %260, %cst_114 [1] : vector<48x48xf32> to vector<48xf32>
    %262 = vector.shape_cast %261 : vector<48xf32> to vector<48x1xf32>
    %263 = vector.broadcast %262 : vector<48x1xf32> to vector<48x48xf32>
    %264 = arith.divf %260, %263 : vector<48x48xf32>
    %cst_115 = arith.constant dense<0.000000e+00> : vector<48x8xf32>
    %265 = tpu.matmul %264, %249, %cst_115 {dimension_numbers = #tpu.dot_dimension_numbers<[1], [0], [0], [1], [0, 0, 1, 1], [], []>} : vector<48x48xf32>, vector<48x8xf32>, vector<48x8xf32> -> vector<48x8xf32>
    %266 = tpu.concatenate %208, %227, %246, %265 in 1 : vector<48x8xf32>, vector<48x8xf32>, vector<48x8xf32>, vector<48x8xf32> -> vector<48x32xf32>
    %c1_116 = arith.constant 1 : index
    %c0_117 = arith.constant 0 : index
    %c0_118 = arith.constant 0 : index
    %267 = vector.load %arg8[%c1_116, %c0_117, %c0_118] : memref<2x32x32xf32, #tpu.memory_space<vmem>>, vector<1x32x32xf32>
    %268 = vector.shape_cast %267 : vector<1x32x32xf32> to vector<32x32xf32>
    %cst_119 = arith.constant dense<0.000000e+00> : vector<48x32xf32>
    %269 = tpu.matmul %266, %268, %cst_119 {dimension_numbers = #tpu.dot_dimension_numbers<[1], [0], [0], [1], [0, 0, 1, 1], [], []>} : vector<48x32xf32>, vector<32x32xf32>, vector<48x32xf32> -> vector<48x32xf32>
    %270 = arith.addf %157, %269 : vector<48x32xf32>
    %c1_120 = arith.constant 1 : index
    %c0_121 = arith.constant 0 : index
    %c0_122 = arith.constant 0 : index
    %271 = vector.load %arg9[%c1_120, %c0_121, %c0_122] : memref<2x1x32xf32, #tpu.memory_space<vmem>>, vector<1x1x32xf32>
    %272 = vector.shape_cast %271 : vector<1x1x32xf32> to vector<1x32xf32>
    %273 = vector.broadcast %272 : vector<1x32xf32> to vector<48x32xf32>
    %274 = arith.addf %270, %273 : vector<48x32xf32>
    %c1_123 = arith.constant 1 : index
    %c0_124 = arith.constant 0 : index
    %c0_125 = arith.constant 0 : index
    %275 = vector.load %arg10[%c1_123, %c0_124, %c0_125] : memref<2x1x32xf32, #tpu.memory_space<vmem>>, vector<1x1x32xf32>
    %276 = vector.shape_cast %275 : vector<1x1x32xf32> to vector<1x32xf32>
    %c1_126 = arith.constant 1 : index
    %c0_127 = arith.constant 0 : index
    %c0_128 = arith.constant 0 : index
    %277 = vector.load %arg11[%c1_126, %c0_127, %c0_128] : memref<2x1x32xf32, #tpu.memory_space<vmem>>, vector<1x1x32xf32>
    %278 = vector.shape_cast %277 : vector<1x1x32xf32> to vector<1x32xf32>
    %cst_129 = arith.constant dense<0.000000e+00> : vector<48xf32>
    %279 = vector.multi_reduction <add>, %274, %cst_129 [1] : vector<48x32xf32> to vector<48xf32>
    %280 = vector.shape_cast %279 : vector<48xf32> to vector<48x1xf32>
    %cst_130 = arith.constant 3.200000e+01 : f32
    %281 = vector.broadcast %cst_130 : f32 to vector<48x1xf32>
    %282 = arith.divf %280, %281 : vector<48x1xf32>
    %283 = vector.broadcast %282 : vector<48x1xf32> to vector<48x32xf32>
    %284 = arith.subf %274, %283 : vector<48x32xf32>
    %285 = arith.mulf %284, %284 : vector<48x32xf32>
    %cst_131 = arith.constant dense<0.000000e+00> : vector<48xf32>
    %286 = vector.multi_reduction <add>, %285, %cst_131 [1] : vector<48x32xf32> to vector<48xf32>
    %287 = vector.shape_cast %286 : vector<48xf32> to vector<48x1xf32>
    %cst_132 = arith.constant 3.200000e+01 : f32
    %288 = vector.broadcast %cst_132 : f32 to vector<48x1xf32>
    %289 = arith.divf %287, %288 : vector<48x1xf32>
    %290 = vector.broadcast %282 : vector<48x1xf32> to vector<48x32xf32>
    %291 = arith.subf %274, %290 : vector<48x32xf32>
    %cst_133 = arith.constant 9.99999974E-6 : f32
    %292 = vector.broadcast %cst_133 : f32 to vector<48x1xf32>
    %293 = arith.addf %289, %292 : vector<48x1xf32>
    %294 = math.rsqrt %293 : vector<48x1xf32>
    %295 = vector.broadcast %294 : vector<48x1xf32> to vector<48x32xf32>
    %296 = arith.mulf %291, %295 : vector<48x32xf32>
    %297 = vector.broadcast %276 : vector<1x32xf32> to vector<48x32xf32>
    %298 = arith.mulf %296, %297 : vector<48x32xf32>
    %299 = vector.broadcast %278 : vector<1x32xf32> to vector<48x32xf32>
    %300 = arith.addf %298, %299 : vector<48x32xf32>
    %c1_134 = arith.constant 1 : index
    %c0_135 = arith.constant 0 : index
    %c0_136 = arith.constant 0 : index
    %301 = vector.load %arg12[%c1_134, %c0_135, %c0_136] : memref<2x32x128xf32, #tpu.memory_space<vmem>>, vector<1x32x128xf32>
    %302 = vector.shape_cast %301 : vector<1x32x128xf32> to vector<32x128xf32>
    %cst_137 = arith.constant dense<0.000000e+00> : vector<48x128xf32>
    %303 = tpu.matmul %300, %302, %cst_137 {dimension_numbers = #tpu.dot_dimension_numbers<[1], [0], [0], [1], [0, 0, 1, 1], [], []>} : vector<48x32xf32>, vector<32x128xf32>, vector<48x128xf32> -> vector<48x128xf32>
    %c1_138 = arith.constant 1 : index
    %c0_139 = arith.constant 0 : index
    %c0_140 = arith.constant 0 : index
    %304 = vector.load %arg13[%c1_138, %c0_139, %c0_140] : memref<2x1x128xf32, #tpu.memory_space<vmem>>, vector<1x1x128xf32>
    %305 = vector.shape_cast %304 : vector<1x1x128xf32> to vector<1x128xf32>
    %306 = vector.broadcast %305 : vector<1x128xf32> to vector<48x128xf32>
    %307 = arith.addf %303, %306 : vector<48x128xf32>
    %cst_141 = arith.constant 5.000000e-01 : f32
    %308 = vector.broadcast %cst_141 : f32 to vector<48x128xf32>
    %309 = arith.mulf %308, %307 : vector<48x128xf32>
    %cst_142 = arith.constant 0.707106769 : f32
    %310 = vector.broadcast %cst_142 : f32 to vector<48x128xf32>
    %311 = arith.mulf %307, %310 : vector<48x128xf32>
    %312 = math.erf %311 : vector<48x128xf32>
    %cst_143 = arith.constant 1.000000e+00 : f32
    %313 = vector.broadcast %cst_143 : f32 to vector<48x128xf32>
    %314 = arith.addf %313, %312 : vector<48x128xf32>
    %315 = arith.mulf %309, %314 : vector<48x128xf32>
    %c1_144 = arith.constant 1 : index
    %c0_145 = arith.constant 0 : index
    %c0_146 = arith.constant 0 : index
    %316 = vector.load %arg14[%c1_144, %c0_145, %c0_146] : memref<2x128x32xf32, #tpu.memory_space<vmem>>, vector<1x128x32xf32>
    %317 = vector.shape_cast %316 : vector<1x128x32xf32> to vector<128x32xf32>
    %cst_147 = arith.constant dense<0.000000e+00> : vector<48x32xf32>
    %318 = tpu.matmul %315, %317, %cst_147 {dimension_numbers = #tpu.dot_dimension_numbers<[1], [0], [0], [1], [0, 0, 1, 1], [], []>} : vector<48x128xf32>, vector<128x32xf32>, vector<48x32xf32> -> vector<48x32xf32>
    %c1_148 = arith.constant 1 : index
    %c0_149 = arith.constant 0 : index
    %c0_150 = arith.constant 0 : index
    %319 = vector.load %arg15[%c1_148, %c0_149, %c0_150] : memref<2x1x32xf32, #tpu.memory_space<vmem>>, vector<1x1x32xf32>
    %320 = vector.shape_cast %319 : vector<1x1x32xf32> to vector<1x32xf32>
    %321 = vector.broadcast %320 : vector<1x32xf32> to vector<48x32xf32>
    %322 = arith.addf %318, %321 : vector<48x32xf32>
    %323 = arith.addf %274, %322 : vector<48x32xf32>
    %c0_151 = arith.constant 0 : index
    %c0_152 = arith.constant 0 : index
    %324 = vector.load %arg16[%c0_151, %c0_152] : memref<48x32xf32, #tpu.memory_space<vmem>>, vector<48x32xf32>
    tpu.vector_store %arg16[%c0_151, %c0_152], %323 {strides = array<i32>} : memref<48x32xf32, #tpu.memory_space<vmem>>, vector<48x32xf32>,
    return
  }
}

</mosaic_0001>

<llo_original>
// kernel: transreid_forward.1
$region0: #{transreid_forward.1}
  #allocation0 [shape = 'u32[]', space=smem, size = 0x4, offset = 0x4, fixed_abs, tag = 'smem constant byte address 0x4 - core index']
  #allocation1 [shape = 'u32[144,128]{1,0:T(1,128)}', space=vmem, size = 0x12000, scoped, tag = 'internal scratch']
  %s0 = inlined_call_operand.vmem [shape: f32[32,48], index: 0, kind: input, shape index: {}]
  %s1 = inlined_call_operand.vmem [shape: f32[48,32], index: 1, kind: input, shape index: {}]
  %s2 = inlined_call_operand.vmem [shape: f32[48,32], index: 2, kind: input, shape index: {}]
  %s3 = inlined_call_operand.vmem [shape: f32[48,32], index: 3, kind: input, shape index: {}]
  %s4 = inlined_call_operand.vmem [shape: f32[48,48], index: 4, kind: input, shape index: {}]
  %s5 = inlined_call_operand.vmem [shape: f32[2,1,32], index: 5, kind: input, shape index: {}]
  %s6 = inlined_call_operand.vmem [shape: f32[2,1,32], index: 6, kind: input, shape index: {}]
  %s7 = inlined_call_operand.vmem [shape: f32[2,32,96], index: 7, kind: input, shape index: {}]
  %s8 = inlined_call_operand.vmem [shape: f32[2,32,32], index: 8, kind: input, shape index: {}]
  %s9 = inlined_call_operand.vmem [shape: f32[2,1,32], index: 9, kind: input, shape index: {}]
  %s10 = inlined_call_operand.vmem [shape: f32[2,1,32], index: 10, kind: input, shape index: {}]
  %s11 = inlined_call_operand.vmem [shape: f32[2,1,32], index: 11, kind: input, shape index: {}]
  %s12 = inlined_call_operand.vmem [shape: f32[2,32,128], index: 12, kind: input, shape index: {}]
  %s13 = inlined_call_operand.vmem [shape: f32[2,1,128], index: 13, kind: input, shape index: {}]
  %s14 = inlined_call_operand.vmem [shape: f32[2,128,32], index: 14, kind: input, shape index: {}]
  %s15 = inlined_call_operand.vmem [shape: f32[2,1,32], index: 15, kind: input, shape index: {}]
  %s16 = inlined_call_operand.vmem [shape: f32[48,32], index: 16, kind: output, shape index: {0}]
  %s17 = inlined_call_operand.vmem [shape: f32[8,48], index: 17, kind: output, shape index: {1}]
  %18 = xla_tuple %s16, %s17
  %s19 = sld [smem:[#allocation0]]
  $region82: #{transreid_forward.1} parent=0
    _
  %s21 = ssub.s32 1, %s19
  %s22 = scalar_select 0, %s21, %s19
  // Predicated region
  $region2: #{transreid_forward.1} parent=0 // pred_check
    _
  $region3: #{transreid_forward.1} parent=0 // pred_check_branch
    %24 = sbr.rel (0) target = $region5
  $region4: #{transreid_forward.1} parent=0 // pred_region
    _
  $region5: #{transreid_forward.1} parent=0 // pred_fallthru
    _
  // Predicated region
  $region6: #{transreid_forward.1} parent=0 // pred_check
    _
  $region7: #{transreid_forward.1} parent=0 // pred_check_branch
    %26 = sbr.rel (0) target = $region9
  $region8: #{transreid_forward.1} parent=0 // pred_region
    _
  $region9: #{transreid_forward.1} parent=0 // pred_fallthru
    _
  // Predicated region
  $region10: #{transreid_forward.1} parent=0 // pred_check
    _
  $region11: #{transreid_forward.1} parent=0 // pred_check_branch
    %28 = sbr.rel (0) target = $region13
  $region12: #{transreid_forward.1} parent=0 // pred_region
    _
  $region13: #{transreid_forward.1} parent=0 // pred_fallthru
    _
  // Predicated region
  $region14: #{transreid_forward.1} parent=0 // pred_check
    _
  $region15: #{transreid_forward.1} parent=0 // pred_check_branch
    %30 = sbr.rel (0) target = $region17
  $region16: #{transreid_forward.1} parent=0 // pred_region
    _
  $region17: #{transreid_forward.1} parent=0 // pred_fallthru
    _
  // Predicated region
  $region18: #{transreid_forward.1} parent=0 // pred_check
    _
  $region19: #{transreid_forward.1} parent=0 // pred_check_branch
    %32 = sbr.rel (0) target = $region21
  $region20: #{transreid_forward.1} parent=0 // pred_region
    _
  $region21: #{transreid_forward.1} parent=0 // pred_fallthru
    _
  // Predicated region
  $region22: #{transreid_forward.1} parent=0 // pred_check
    _
  $region23: #{transreid_forward.1} parent=0 // pred_check_branch
    %34 = sbr.rel (0) target = $region25
  $region24: #{transreid_forward.1} parent=0 // pred_region
    _
  $region25: #{transreid_forward.1} parent=0 // pred_fallthru
    _
  // Predicated region
  $region26: #{transreid_forward.1} parent=0 // pred_check
    _
  $region27: #{transreid_forward.1} parent=0 // pred_check_branch
    %36 = sbr.rel (0) target = $region29
  $region28: #{transreid_forward.1} parent=0 // pred_region
    _
  $region29: #{transreid_forward.1} parent=0 // pred_fallthru
    _
  // Predicated region
  $region30: #{transreid_forward.1} parent=0 // pred_check
    _
  $region31: #{transreid_forward.1} parent=0 // pred_check_branch
    %38 = sbr.rel (0) target = $region33
  $region32: #{transreid_forward.1} parent=0 // pred_region
    _
  $region33: #{transreid_forward.1} parent=0 // pred_fallthru
    _
  // Predicated region
  $region34: #{transreid_forward.1} parent=0 // pred_check
    _
  $region35: #{transreid_forward.1} parent=0 // pred_check_branch
    %40 = sbr.rel (0) target = $region37
  $region36: #{transreid_forward.1} parent=0 // pred_region
    _
  $region37: #{transreid_forward.1} parent=0 // pred_fallthru
    _
  // Predicated region
  $region38: #{transreid_forward.1} parent=0 // pred_check
    _
  $region39: #{transreid_forward.1} parent=0 // pred_check_branch
    %42 = sbr.rel (0) target = $region41
  $region40: #{transreid_forward.1} parent=0 // pred_region
    _
  $region41: #{transreid_forward.1} parent=0 // pred_fallthru
    _
  // Predicated region
  $region42: #{transreid_forward.1} parent=0 // pred_check
    _
  $region43: #{transreid_forward.1} parent=0 // pred_check_branch
    %44 = sbr.rel (0) target = $region45
  $region44: #{transreid_forward.1} parent=0 // pred_region
    _
  $region45: #{transreid_forward.1} parent=0 // pred_fallthru
    _
  // Predicated region
  $region46: #{transreid_forward.1} parent=0 // pred_check
    _
  $region47: #{transreid_forward.1} parent=0 // pred_check_branch
    %46 = sbr.rel (0) target = $region49
  $region48: #{transreid_forward.1} parent=0 // pred_region
    _
  $region49: #{transreid_forward.1} parent=0 // pred_fallthru
    _
  // Predicated region
  $region50: #{transreid_forward.1} parent=0 // pred_check
    _
  $region51: #{transreid_forward.1} parent=0 // pred_check_branch
    %48 = sbr.rel (0) target = $region53
  $region52: #{transreid_forward.1} parent=0 // pred_region
    _
  $region53: #{transreid_forward.1} parent=0 // pred_fallthru
    _
  // Predicated region
  $region54: #{transreid_forward.1} parent=0 // pred_check
    _
  $region55: #{transreid_forward.1} parent=0 // pred_check_branch
    %50 = sbr.rel (0) target = $region57
  $region56: #{transreid_forward.1} parent=0 // pred_region
    _
  $region57: #{transreid_forward.1} parent=0 // pred_fallthru
    _
  // Predicated region
  $region58: #{transreid_forward.1} parent=0 // pred_check
    _
  $region59: #{transreid_forward.1} parent=0 // pred_check_branch
    %52 = sbr.rel (0) target = $region61
  $region60: #{transreid_forward.1} parent=0 // pred_region
    _
  $region61: #{transreid_forward.1} parent=0 // pred_fallthru
    _
  // Predicated region
  $region62: #{transreid_forward.1} parent=0 // pred_check
    _
  $region63: #{transreid_forward.1} parent=0 // pred_check_branch
    %54 = sbr.rel (0) target = $region65
  $region64: #{transreid_forward.1} parent=0 // pred_region
    _
  $region65: #{transreid_forward.1} parent=0 // pred_fallthru
    _
  %v55 = vld [vmem:[%s0] sm:$0xff]
  %v56 = vld [vmem:[%s0 + $0x8] sm:$0xff]
  %v57 = vld [vmem:[%s0 + $0x10] sm:$0xff]
  %v58 = vld [vmem:[%s0 + $0x18] sm:$0xff]
  %v59 = vld [vmem:[%s1] sm:$0xff]
  %v60 = vld [vmem:[%s1 + $0x8] sm:$0xff]
  %v61 = vld [vmem:[%s1 + $0x10] sm:$0xff]
  %v62 = vld [vmem:[%s1 + $0x18] sm:$0xff]
  %v63 = vld [vmem:[%s1 + $0x20] sm:$0xff]
  %v64 = vld [vmem:[%s1 + $0x28] sm:$0xff]
  %vm65 = vcmask 392192
  %v67 = vsel %vm65, %v55, 0
  %v70 = vsel %vm65, %v56, 0
  %v73 = vsel %vm65, %v57, 0
  %v76 = vsel %vm65, %v58, 0
  %78 = vmatprep.subr.mxu0 0.0
  %79 = vmatpush1.msra.mxu0 %v59
  %80 = vmatprep.subr.mxu0 0.0
  %81 = vmatpush1.msra.mxu0 %v60
  %82 = vmatprep.subr.mxu0 0.0
  %83 = vmatpush1.msra.mxu0 %v61
  %84 = vmatprep.subr.mxu0 0.0
  %85 = vmatpush1.msra.mxu0 %v62
  %86 = vmatprep.subr.mxu0 0.0
  %87 = vmatpush1.msra.mxu0 %v63
  %88 = vmatprep.subr.mxu0 0.0
  %89 = vmatpush1.msra.mxu0 %v64
  %90 = vmatprep.subr.mxu0 0.0
  %91 = vmatpush1.msra.mxu0 0.0
  %92 = vmatprep.subr.mxu0 0.0
  %93 = vmatpush1.msra.mxu0 0.0
  %94 = vmatprep.subr.mxu0 0.0
  %95 = vmatpush1.msra.mxu0 0.0
  %96 = vmatprep.subr.mxu0 0.0
  %97 = vmatpush1.msra.mxu0 0.0
  %98 = vmatprep.subr.mxu0 0.0
  %99 = vmatpush1.msra.mxu0 0.0
  %100 = vmatprep.subr.mxu0 0.0
  %101 = vmatpush1.msra.mxu0 0.0
  %102 = vmatprep.subr.mxu0 0.0
  %103 = vmatpush1.msra.mxu0 0.0
  %104 = vmatprep.subr.mxu0 0.0
  %105 = vmatpush1.msra.mxu0 0.0
  %106 = vmatprep.subr.mxu0 0.0
  %107 = vmatpush1.msra.mxu0 0.0
  %108 = vmatprep.subr.mxu0 0.0
  %109 = vmatpush1.msra.mxu0 0.0
  %110 = vmatprep.subr.mxu0 0.0
  %111 = vmatpush1.msra.mxu0 0.0
  %112 = vmatprep.subr.mxu0 0.0
  %113 = vmatpush1.msra.mxu0 0.0
  %114 = vmatprep.subr.mxu0 0.0
  %115 = vmatpush1.msra.mxu0 0.0
  %116 = vmatprep.subr.mxu0 0.0
  %117 = vmatpush1.msra.mxu0 0.0
  %118 = vmatprep.subr.mxu0 0.0
  %119 = vmatpush1.msra.mxu0 0.0
  %120 = vmatprep.subr.mxu0 0.0
  %121 = vmatpush1.msra.mxu0 0.0
  %122 = vmatprep.subr.mxu0 0.0
  %123 = vmatpush1.msra.mxu0 0.0
  %124 = vmatprep.subr.mxu0 0.0
  %125 = vmatpush1.msra.mxu0 0.0
  %126 = vmatprep.subr.mxu0 0.0
  %127 = vmatpush1.msra.mxu0 0.0
  %128 = vmatprep.subr.mxu0 0.0
  %129 = vmatpush1.msra.mxu0 0.0
  %130 = vmatprep.subr.mxu0 0.0
  %131 = vmatpush1.msra.mxu0 0.0
  %132 = vmatprep.subr.mxu0 0.0
  %133 = vmatpush1.msra.mxu0 0.0
  %134 = vmatprep.subr.mxu0 0.0
  %135 = vmatpush1.msra.mxu0 0.0
  %136 = vmatprep.subr.mxu0 0.0
  %137 = vmatpush1.msra.mxu0 0.0
  %138 = vmatprep.subr.mxu0 0.0
  %139 = vmatpush1.msra.mxu0 0.0
  %140 = vmatprep.subr.mxu0 0.0
  %141 = vmatpush1.msra.mxu0 0.0
  %142 = vmatprep.mubr.f32.mxu0 0.0
  %143 = vmatmul.mubr.f32.gmra.mrb[0].mxu0 %v67
  %v144 = vpop.f32.mrb[0].mxu0
  %v145 = vadd.f32 0.0, %v144
  %v146 = vpop.f32.mrb[0].mxu0
  %147 = vmatprep.mubr.f32.mxu0 0.0
  %148 = vmatmul.mubr.f32.gmra.mrb[0].mxu0 %v70
  %v149 = vpop.f32.mrb[0].mxu0
  %v150 = vadd.f32 0.0, %v149
  %v151 = vpop.f32.mrb[0].mxu0
  %152 = vmatprep.mubr.f32.mxu0 0.0
  %153 = vmatmul.mubr.f32.gmra.mrb[0].mxu0 %v73
  %v154 = vpop.f32.mrb[0].mxu0
  %v155 = vadd.f32 0.0, %v154
  %v156 = vpop.f32.mrb[0].mxu0
  %157 = vmatprep.mubr.f32.mxu0 0.0
  %158 = vmatmul.mubr.f32.gmra.mrb[0].mxu0 %v76
  %v159 = vpop.f32.mrb[0].mxu0
  %v160 = vadd.f32 0.0, %v159
  %v161 = vpop.f32.mrb[0].mxu0
  %162 = vdwg.mxu0
  %v163 = vld [vmem:[%s2] sm:$0xff]
  %v164 = vld [vmem:[%s2 + $0x8] sm:$0xff]
  %v165 = vld [vmem:[%s2 + $0x10] sm:$0xff]
  %v166 = vld [vmem:[%s2 + $0x18] sm:$0xff]
  %v167 = vld [vmem:[%s2 + $0x20] sm:$0xff]
  %v168 = vld [vmem:[%s2 + $0x28] sm:$0xff]
  %v169 = vld [vmem:[%s3] sm:$0xff]
  %v170 = vld [vmem:[%s3 + $0x8] sm:$0xff]
  %v171 = vld [vmem:[%s3 + $0x10] sm:$0xff]
  %v172 = vld [vmem:[%s3 + $0x18] sm:$0xff]
  %v173 = vld [vmem:[%s3 + $0x20] sm:$0xff]
  %v174 = vld [vmem:[%s3 + $0x28] sm:$0xff]
  %vm175 = vcmask 261120
  %v177 = vsel %vm175, %v169, 0
  %v180 = vsel %vm175, %v170, 0
  %v183 = vsel %vm175, %v171, 0
  %v186 = vsel %vm175, %v172, 0
  %v189 = vsel %vm175, %v173, 0
  %v192 = vsel %vm175, %v174, 0
  %194 = vmatprep.subr.mxu0 0.0
  %195 = vmatpush1.msra.mxu0 %v145
  %196 = vmatprep.subr.mxu0 0.0
  %197 = vmatpush1.msra.mxu0 %v150
  %198 = vmatprep.subr.mxu0 0.0
  %199 = vmatpush1.msra.mxu0 %v155
  %200 = vmatprep.subr.mxu0 0.0
  %201 = vmatpush1.msra.mxu0 %v160
  %202 = vmatprep.subr.mxu0 0.0
  %203 = vmatpush1.msra.mxu0 0.0
  %204 = vmatprep.subr.mxu0 0.0
  %205 = vmatpush1.msra.mxu0 0.0
  %206 = vmatprep.subr.mxu0 0.0
  %207 = vmatpush1.msra.mxu0 0.0
  %208 = vmatprep.subr.mxu0 0.0
  %209 = vmatpush1.msra.mxu0 0.0
  %210 = vmatprep.subr.mxu0 0.0
  %211 = vmatpush1.msra.mxu0 0.0
  %212 = vmatprep.subr.mxu0 0.0
  %213 = vmatpush1.msra.mxu0 0.0
  %214 = vmatprep.subr.mxu0 0.0
  %215 = vmatpush1.msra.mxu0 0.0
  %216 = vmatprep.subr.mxu0 0.0
  %217 = vmatpush1.msra.mxu0 0.0
  %218 = vmatprep.subr.mxu0 0.0
  %219 = vmatpush1.msra.mxu0 0.0
  %220 = vmatprep.subr.mxu0 0.0
  %221 = vmatpush1.msra.mxu0 0.0
  %222 = vmatprep.subr.mxu0 0.0
  %223 = vmatpush1.msra.mxu0 0.0
  %224 = vmatprep.subr.mxu0 0.0
  %225 = vmatpush1.msra.mxu0 0.0
  %226 = vmatprep.subr.mxu0 0.0
  %227 = vmatpush1.msra.mxu0 0.0
  %228 = vmatprep.subr.mxu0 0.0
  %229 = vmatpush1.msra.mxu0 0.0
  %230 = vmatprep.subr.mxu0 0.0
  %231 = vmatpush1.msra.mxu0 0.0
  %232 = vmatprep.subr.mxu0 0.0
  %233 = vmatpush1.msra.mxu0 0.0
  %234 = vmatprep.subr.mxu0 0.0
  %235 = vmatpush1.msra.mxu0 0.0
  %236 = vmatprep.subr.mxu0 0.0
  %237 = vmatpush1.msra.mxu0 0.0
  %238 = vmatprep.subr.mxu0 0.0
  %239 = vmatpush1.msra.mxu0 0.0
  %240 = vmatprep.subr.mxu0 0.0
  %241 = vmatpush1.msra.mxu0 0.0
  %242 = vmatprep.subr.mxu0 0.0
  %243 = vmatpush1.msra.mxu0 0.0
  %244 = vmatprep.subr.mxu0 0.0
  %245 = vmatpush1.msra.mxu0 0.0
  %246 = vmatprep.subr.mxu0 0.0
  %247 = vmatpush1.msra.mxu0 0.0
  %248 = vmatprep.subr.mxu0 0.0
  %249 = vmatpush1.msra.mxu0 0.0
  %250 = vmatprep.subr.mxu0 0.0
  %251 = vmatpush1.msra.mxu0 0.0
  %252 = vmatprep.subr.mxu0 0.0
  %253 = vmatpush1.msra.mxu0 0.0
  %254 = vmatprep.subr.mxu0 0.0
  %255 = vmatpush1.msra.mxu0 0.0
  %256 = vmatprep.subr.mxu0 0.0
  %257 = vmatpush1.msra.mxu0 0.0
  %258 = vmatprep.mubr.f32.mxu0 0.0
  %259 = vmatmul.mubr.f32.gmra.mrb[0].mxu0 %v177
  %v260 = vpop.f32.mrb[0].mxu0
  %v261 = vadd.f32 0.0, %v260
  %v262 = vpop.f32.mrb[0].mxu0
  %263 = vmatprep.mubr.f32.mxu0 0.0
  %264 = vmatmul.mubr.f32.gmra.mrb[0].mxu0 %v180
  %v265 = vpop.f32.mrb[0].mxu0
  %v266 = vadd.f32 0.0, %v265
  %v267 = vpop.f32.mrb[0].mxu0
  %268 = vmatprep.mubr.f32.mxu0 0.0
  %269 = vmatmul.mubr.f32.gmra.mrb[0].mxu0 %v183
  %v270 = vpop.f32.mrb[0].mxu0
  %v271 = vadd.f32 0.0, %v270
  %v272 = vpop.f32.mrb[0].mxu0
  %273 = vmatprep.mubr.f32.mxu0 0.0
  %274 = vmatmul.mubr.f32.gmra.mrb[0].mxu0 %v186
  %v275 = vpop.f32.mrb[0].mxu0
  %v276 = vadd.f32 0.0, %v275
  %v277 = vpop.f32.mrb[0].mxu0
  %278 = vmatprep.mubr.f32.mxu0 0.0
  %279 = vmatmul.mubr.f32.gmra.mrb[0].mxu0 %v189
  %v280 = vpop.f32.mrb[0].mxu0
  %v281 = vadd.f32 0.0, %v280
  %v282 = vpop.f32.mrb[0].mxu0
  %283 = vmatprep.mubr.f32.mxu0 0.0
  %284 = vmatmul.mubr.f32.gmra.mrb[0].mxu0 %v192
  %v285 = vpop.f32.mrb[0].mxu0
  %v286 = vadd.f32 0.0, %v285
  %v287 = vpop.f32.mrb[0].mxu0
  %288 = vdwg.mxu0
  %v289 = vadd.f32 %v163, %v261
  %v290 = vadd.f32 %v164, %v266
  %v291 = vadd.f32 %v165, %v271
  %v292 = vadd.f32 %v166, %v276
  %v293 = vadd.f32 %v167, %v281
  %v294 = vadd.f32 %v168, %v286
  %v295 = vld [vmem:[%s4] sm:$0xff]
  %v296 = vld [vmem:[%s4 + $0x8] sm:$0xff]
  %v297 = vld [vmem:[%s4 + $0x10] sm:$0xff]
  %v298 = vld [vmem:[%s4 + $0x18] sm:$0xff]
  %v299 = vld [vmem:[%s4 + $0x20] sm:$0xff]
  %v300 = vld [vmem:[%s4 + $0x28] sm:$0xff]
  %v301 = vld [vmem:[%s5] sm:$0x1]
  %v302 = vld [vmem:[%s6] sm:$0x1]
  %v303 = vsel %vm175, %v289, 0.0
  %304 = vadd.xlane.f32.xlu0 %v303
  %v305 = vpop.xlane.xlu0 %304
  %v306 = vsel %vm175, %v290, 0.0
  %307 = vadd.xlane.f32.xlu0 %v306
  %v308 = vpop.xlane.xlu0 %307
  %v309 = vsel %vm175, %v291, 0.0
  %310 = vadd.xlane.f32.xlu0 %v309
  %v311 = vpop.xlane.xlu0 %310
  %v312 = vsel %vm175, %v292, 0.0
  %313 = vadd.xlane.f32.xlu0 %v312
  %v314 = vpop.xlane.xlu0 %313
  %v315 = vsel %vm175, %v293, 0.0
  %316 = vadd.xlane.f32.xlu0 %v315
  %v317 = vpop.xlane.xlu0 %316
  %v318 = vsel %vm175, %v294, 0.0
  %319 = vadd.xlane.f32.xlu0 %v318
  %v320 = vpop.xlane.xlu0 %319
  %v321 = vrcp.pop 32.0
  %v322 = vmul.f32 %v305, %v321
  %v323 = vmul.f32 %v308, %v321
  %v324 = vmul.f32 %v311, %v321
  %v325 = vmul.f32 %v314, %v321
  %v326 = vmul.f32 %v317, %v321
  %v327 = vmul.f32 %v320, %v321
  %v328 = vsub.f32 %v289, %v322
  %v329 = vsub.f32 %v290, %v323
  %v330 = vsub.f32 %v291, %v324
  %v331 = vsub.f32 %v292, %v325
  %v332 = vsub.f32 %v293, %v326
  %v333 = vsub.f32 %v294, %v327
  %v334 = vmul.f32 %v328, %v328
  %v335 = vmul.f32 %v329, %v329
  %v336 = vmul.f32 %v330, %v330
  %v337 = vmul.f32 %v331, %v331
  %v338 = vmul.f32 %v332, %v332
  %v339 = vmul.f32 %v333, %v333
  %v340 = vsel %vm175, %v334, 0.0
  %341 = vadd.xlane.f32.xlu0 %v340
  %v342 = vpop.xlane.xlu0 %341
  %v343 = vsel %vm175, %v335, 0.0
  %344 = vadd.xlane.f32.xlu0 %v343
  %v345 = vpop.xlane.xlu0 %344
  %v346 = vsel %vm175, %v336, 0.0
  %347 = vadd.xlane.f32.xlu0 %v346
  %v348 = vpop.xlane.xlu0 %347
  %v349 = vsel %vm175, %v337, 0.0
  %350 = vadd.xlane.f32.xlu0 %v349
  %v351 = vpop.xlane.xlu0 %350
  %v352 = vsel %vm175, %v338, 0.0
  %353 = vadd.xlane.f32.xlu0 %v352
  %v354 = vpop.xlane.xlu0 %353
  %v355 = vsel %vm175, %v339, 0.0
  %356 = vadd.xlane.f32.xlu0 %v355
  %v357 = vpop.xlane.xlu0 %356
  %v358 = vmul.f32 %v342, %v321
  %v359 = vmul.f32 %v345, %v321
  %v360 = vmul.f32 %v348, %v321
  %v361 = vmul.f32 %v351, %v321
  %v362 = vmul.f32 %v354, %v321
  %v363 = vmul.f32 %v357, %v321
  %v364 = vadd.f32 %v358, 1e-05
  %v365 = vadd.f32 %v359, 1e-05
  %v366 = vadd.f32 %v360, 1e-05
  %v367 = vadd.f32 %v361, 1e-05
  %v368 = vadd.f32 %v362, 1e-05
  %v369 = vadd.f32 %v363, 1e-05
  %v370 = vrsqrt.pop %v364
  %v371 = vrsqrt.pop %v365
  %v372 = vrsqrt.pop %v366
  %v373 = vrsqrt.pop %v367
  %v374 = vrsqrt.pop %v368
  %v375 = vrsqrt.pop %v369
  %v376 = vmul.f32 %v328, %v370
  %v377 = vmul.f32 %v329, %v371
  %v378 = vmul.f32 %v330, %v372
  %v379 = vmul.f32 %v331, %v373
  %v380 = vmul.f32 %v332, %v374
  %v381 = vmul.f32 %v333, %v375
  %v383 = vlaneseq
  %v384 = vshrl.u32 %v383, 7
  %v385 = vsub.s32 0, %v384
  %v386 = vrot.slane %v301, %v385
  %v388 = vmul.f32 %v376, %v386
  %v389 = vmul.f32 %v377, %v386
  %v390 = vmul.f32 %v378, %v386
  %v391 = vmul.f32 %v379, %v386
  %v392 = vmul.f32 %v380, %v386
  %v393 = vmul.f32 %v381, %v386
  %v395 = vlaneseq
  %v396 = vshrl.u32 %v395, 7
  %v397 = vsub.s32 0, %v396
  %v398 = vrot.slane %v302, %v397
  %v400 = vadd.f32 %v388, %v398
  %v401 = vadd.f32 %v389, %v398
  %v402 = vadd.f32 %v390, %v398
  %v403 = vadd.f32 %v391, %v398
  %v404 = vadd.f32 %v392, %v398
  %v405 = vadd.f32 %v393, %v398
  %v406 = vld [vmem:[%s7] sm:$0xff]
  %v407 = vld [vmem:[%s7 + $0x8] sm:$0xff]
  %v408 = vld [vmem:[%s7 + $0x10] sm:$0xff]
  %v409 = vld [vmem:[%s7 + $0x18] sm:$0xff]
  %v411 = vsel %vm175, %v400, 0
  %v414 = vsel %vm175, %v401, 0
  %v417 = vsel %vm175, %v402, 0
  %v420 = vsel %vm175, %v403, 0
  %v423 = vsel %vm175, %v404, 0
  %v426 = vsel %vm175, %v405, 0
  %428 = vmatprep.subr.mxu0 0.0
  %429 = vmatpush1.msra.mxu0 %v406
  %430 = vmatprep.subr.mxu0 0.0
  %431 = vmatpush1.msra.mxu0 %v407
  %432 = vmatprep.subr.mxu0 0.0
  %433 = vmatpush1.msra.mxu0 %v408
  %434 = vmatprep.subr.mxu0 0.0
  %435 = vmatpush1.msra.mxu0 %v409
  %436 = vmatprep.subr.mxu0 0.0
  %437 = vmatpush1.msra.mxu0 0.0
  %438 = vmatprep.subr.mxu0 0.0
  %439 = vmatpush1.msra.mxu0 0.0
  %440 = vmatprep.subr.mxu0 0.0
  %441 = vmatpush1.msra.mxu0 0.0
  %442 = vmatprep.subr.mxu0 0.0
  %443 = vmatpush1.msra.mxu0 0.0
  %444 = vmatprep.subr.mxu0 0.0
  %445 = vmatpush1.msra.mxu0 0.0
  %446 = vmatprep.subr.mxu0 0.0
  %447 = vmatpush1.msra.mxu0 0.0
  %448 = vmatprep.subr.mxu0 0.0
  %449 = vmatpush1.msra.mxu0 0.0
  %450 = vmatprep.subr.mxu0 0.0
  %451 = vmatpush1.msra.mxu0 0.0
  %452 = vmatprep.subr.mxu0 0.0
  %453 = vmatpush1.msra.mxu0 0.0
  %454 = vmatprep.subr.mxu0 0.0
  %455 = vmatpush1.msra.mxu0 0.0
  %456 = vmatprep.subr.mxu0 0.0
  %457 = vmatpush1.msra.mxu0 0.0
  %458 = vmatprep.subr.mxu0 0.0
  %459 = vmatpush1.msra.mxu0 0.0
  %460 = vmatprep.subr.mxu0 0.0
  %461 = vmatpush1.msra.mxu0 0.0
  %462 = vmatprep.subr.mxu0 0.0
  %463 = vmatpush1.msra.mxu0 0.0
  %464 = vmatprep.subr.mxu0 0.0
  %465 = vmatpush1.msra.mxu0 0.0
  %466 = vmatprep.subr.mxu0 0.0
  %467 = vmatpush1.msra.mxu0 0.0
  %468 = vmatprep.subr.mxu0 0.0
  %469 = vmatpush1.msra.mxu0 0.0
  %470 = vmatprep.subr.mxu0 0.0
  %471 = vmatpush1.msra.mxu0 0.0
  %472 = vmatprep.subr.mxu0 0.0
  %473 = vmatpush1.msra.mxu0 0.0
  %474 = vmatprep.subr.mxu0 0.0
  %475 = vmatpush1.msra.mxu0 0.0
  %476 = vmatprep.subr.mxu0 0.0
  %477 = vmatpush1.msra.mxu0 0.0
  %478 = vmatprep.subr.mxu0 0.0
  %479 = vmatpush1.msra.mxu0 0.0
  %480 = vmatprep.subr.mxu0 0.0
  %481 = vmatpush1.msra.mxu0 0.0
  %482 = vmatprep.subr.mxu0 0.0
  %483 = vmatpush1.msra.mxu0 0.0
  %484 = vmatprep.subr.mxu0 0.0
  %485 = vmatpush1.msra.mxu0 0.0
  %486 = vmatprep.subr.mxu0 0.0
  %487 = vmatpush1.msra.mxu0 0.0
  %488 = vmatprep.subr.mxu0 0.0
  %489 = vmatpush1.msra.mxu0 0.0
  %490 = vmatprep.subr.mxu0 0.0
  %491 = vmatpush1.msra.mxu0 0.0
  %492 = vmatprep.mubr.f32.mxu0 0.0
  %493 = vmatmul.mubr.f32.gmra.mrb[0].mxu0 %v411
  %v494 = vpop.f32.mrb[0].mxu0
  %v495 = vadd.f32 0.0, %v494
  %v496 = vpop.f32.mrb[0].mxu0
  %497 = vmatprep.mubr.f32.mxu0 0.0
  %498 = vmatmul.mubr.f32.gmra.mrb[0].mxu0 %v414
  %v499 = vpop.f32.mrb[0].mxu0
  %v500 = vadd.f32 0.0, %v499
  %v501 = vpop.f32.mrb[0].mxu0
  %502 = vmatprep.mubr.f32.mxu0 0.0
  %503 = vmatmul.mubr.f32.gmra.mrb[0].mxu0 %v417
  %v504 = vpop.f32.mrb[0].mxu0
  %v505 = vadd.f32 0.0, %v504
  %v506 = vpop.f32.mrb[0].mxu0
  %507 = vmatprep.mubr.f32.mxu0 0.0
  %508 = vmatmul.mubr.f32.gmra.mrb[0].mxu0 %v420
  %v509 = vpop.f32.mrb[0].mxu0
  %v510 = vadd.f32 0.0, %v509
  %v511 = vpop.f32.mrb[0].mxu0
  %512 = vmatprep.mubr.f32.mxu0 0.0
  %513 = vmatmul.mubr.f32.gmra.mrb[0].mxu0 %v423
  %v514 = vpop.f32.mrb[0].mxu0
  %v515 = vadd.f32 0.0, %v514
  %v516 = vpop.f32.mrb[0].mxu0
  %517 = vmatprep.mubr.f32.mxu0 0.0
  %518 = vmatmul.mubr.f32.gmra.mrb[0].mxu0 %v426
  %v519 = vpop.f32.mrb[0].mxu0
  %v520 = vadd.f32 0.0, %v519
  %v521 = vpop.f32.mrb[0].mxu0
  %522 = vdwg.mxu0
  %529 = vrot.lane.b32.xlu0 %v495, 96
  %v530 = vpop.permute.xlu0 %529
  %531 = vrot.lane.b32.xlu0 %v500, 96
  %v532 = vpop.permute.xlu0 %531
  %533 = vrot.lane.b32.xlu0 %v505, 96
  %v534 = vpop.permute.xlu0 %533
  %535 = vrot.lane.b32.xlu0 %v510, 96
  %v536 = vpop.permute.xlu0 %535
  %537 = vrot.lane.b32.xlu0 %v515, 96
  %v538 = vpop.permute.xlu0 %537
  %539 = vrot.lane.b32.xlu0 %v520, 96
  %v540 = vpop.permute.xlu0 %539
  %vm541 = vcmask 64512
  %v542 = vsel %vm541, %v495, 0
  %v544 = vsel %vm541, %v500, 0
  %v546 = vsel %vm541, %v505, 0
  %v548 = vsel %vm541, %v510, 0
  %v550 = vsel %vm541, %v515, 0
  %v552 = vsel %vm541, %v520, 0
  %v554 = vsel %vm541, %v530, 0
  %v556 = vsel %vm541, %v532, 0
  %v558 = vsel %vm541, %v534, 0
  %v560 = vsel %vm541, %v536, 0
  %v562 = vsel %vm541, %v538, 0
  %v564 = vsel %vm541, %v540, 0
  %566 = vmatprep.subr.mxu0 0.0
  %567 = vmatpush1.xpose.msra.mxu0 %v554
  %568 = vmatprep.subr.mxu0 0.0
  %569 = vmatpush1.xpose.msra.mxu0 %v556
  %570 = vmatprep.subr.mxu0 0.0
  %571 = vmatpush1.xpose.msra.mxu0 %v558
  %572 = vmatprep.subr.mxu0 0.0
  %573 = vmatpush1.xpose.msra.mxu0 %v560
  %574 = vmatprep.subr.mxu0 0.0
  %575 = vmatpush1.xpose.msra.mxu0 %v562
  %576 = vmatprep.subr.mxu0 0.0
  %577 = vmatpush1.xpose.msra.mxu0 %v564
  %578 = vmatprep.subr.mxu0 0.0
  %579 = vmatpush1.xpose.msra.mxu0 0.0
  %580 = vmatprep.subr.mxu0 0.0
  %581 = vmatpush1.xpose.msra.mxu0 0.0
  %582 = vmatprep.subr.mxu0 0.0
  %583 = vmatpush1.xpose.msra.mxu0 0.0
  %584 = vmatprep.subr.mxu0 0.0
  %585 = vmatpush1.xpose.msra.mxu0 0.0
  %586 = vmatprep.subr.mxu0 0.0
  %587 = vmatpush1.xpose.msra.mxu0 0.0
  %588 = vmatprep.subr.mxu0 0.0
  %589 = vmatpush1.xpose.msra.mxu0 0.0
  %590 = vmatprep.subr.mxu0 0.0
  %591 = vmatpush1.xpose.msra.mxu0 0.0
  %592 = vmatprep.subr.mxu0 0.0
  %593 = vmatpush1.xpose.msra.mxu0 0.0
  %594 = vmatprep.subr.mxu0 0.0
  %595 = vmatpush1.xpose.msra.mxu0 0.0
  %596 = vmatprep.subr.mxu0 0.0
  %597 = vmatpush1.xpose.msra.mxu0 0.0
  %598 = vmatprep.subr.mxu0 0.0
  %599 = vmatpush1.xpose.msra.mxu0 0.0
  %600 = vmatprep.subr.mxu0 0.0
  %601 = vmatpush1.xpose.msra.mxu0 0.0
  %602 = vmatprep.subr.mxu0 0.0
  %603 = vmatpush1.xpose.msra.mxu0 0.0
  %604 = vmatprep.subr.mxu0 0.0
  %605 = vmatpush1.xpose.msra.mxu0 0.0
  %606 = vmatprep.subr.mxu0 0.0
  %607 = vmatpush1.xpose.msra.mxu0 0.0
  %608 = vmatprep.subr.mxu0 0.0
  %609 = vmatpush1.xpose.msra.mxu0 0.0
  %610 = vmatprep.subr.mxu0 0.0
  %611 = vmatpush1.xpose.msra.mxu0 0.0
  %612 = vmatprep.subr.mxu0 0.0
  %613 = vmatpush1.xpose.msra.mxu0 0.0
  %614 = vmatprep.subr.mxu0 0.0
  %615 = vmatpush1.xpose.msra.mxu0 0.0
  %616 = vmatprep.subr.mxu0 0.0
  %617 = vmatpush1.xpose.msra.mxu0 0.0
  %618 = vmatprep.subr.mxu0 0.0
  %619 = vmatpush1.xpose.msra.mxu0 0.0
  %620 = vmatprep.subr.mxu0 0.0
  %621 = vmatpush1.xpose.msra.mxu0 0.0
  %622 = vmatprep.subr.mxu0 0.0
  %623 = vmatpush1.xpose.msra.mxu0 0.0
  %624 = vmatprep.subr.mxu0 0.0
  %625 = vmatpush1.xpose.msra.mxu0 0.0
  %626 = vmatprep.subr.mxu0 0.0
  %627 = vmatpush1.xpose.msra.mxu0 0.0
  %628 = vmatprep.subr.mxu0 0.0
  %629 = vmatpush1.xpose.msra.mxu0 0.0
  %630 = vmatprep.mubr.f32.mxu0 0.0
  %631 = vmatmul.mubr.f32.gmra.mrb[0].mxu0 %v542
  %v632 = vpop.f32.mrb[0].mxu0
  %v633 = vadd.f32 %v295, %v632
  %v634 = vpop.f32.mrb[0].mxu0
  %635 = vmatprep.mubr.f32.mxu0 0.0
  %636 = vmatmul.mubr.f32.gmra.mrb[0].mxu0 %v544
  %v637 = vpop.f32.mrb[0].mxu0
  %v638 = vadd.f32 %v296, %v637
  %v639 = vpop.f32.mrb[0].mxu0
  %640 = vmatprep.mubr.f32.mxu0 0.0
  %641 = vmatmul.mubr.f32.gmra.mrb[0].mxu0 %v546
  %v642 = vpop.f32.mrb[0].mxu0
  %v643 = vadd.f32 %v297, %v642
  %v644 = vpop.f32.mrb[0].mxu0
  %645 = vmatprep.mubr.f32.mxu0 0.0
  %646 = vmatmul.mubr.f32.gmra.mrb[0].mxu0 %v548
  %v647 = vpop.f32.mrb[0].mxu0
  %v648 = vadd.f32 %v298, %v647
  %v649 = vpop.f32.mrb[0].mxu0
  %650 = vmatprep.mubr.f32.mxu0 0.0
  %651 = vmatmul.mubr.f32.gmra.mrb[0].mxu0 %v550
  %v652 = vpop.f32.mrb[0].mxu0
  %v653 = vadd.f32 %v299, %v652
  %v654 = vpop.f32.mrb[0].mxu0
  %655 = vmatprep.mubr.f32.mxu0 0.0
  %656 = vmatmul.mubr.f32.gmra.mrb[0].mxu0 %v552
  %v657 = vpop.f32.mrb[0].mxu0
  %v658 = vadd.f32 %v300, %v657
  %v659 = vpop.f32.mrb[0].mxu0
  %660 = vdwg.mxu0
  %v661 = vsel %vm65, %v633, -inf
  %662 = vmax.xlane.f32.xlu0 %v661
  %v663 = vpop.xlane.xlu0 %662
  %v664 = vsel %vm65, %v638, -inf
  %665 = vmax.xlane.f32.xlu0 %v664
  %v666 = vpop.xlane.xlu0 %665
  %v667 = vsel %vm65, %v643, -inf
  %668 = vmax.xlane.f32.xlu0 %v667
  %v669 = vpop.xlane.xlu0 %668
  %v670 = vsel %vm65, %v648, -inf
  %671 = vmax.xlane.f32.xlu0 %v670
  %v672 = vpop.xlane.xlu0 %671
  %v673 = vsel %vm65, %v653, -inf
  %674 = vmax.xlane.f32.xlu0 %v673
  %v675 = vpop.xlane.xlu0 %674
  %v676 = vsel %vm65, %v658, -inf
  %677 = vmax.xlane.f32.xlu0 %v676
  %v678 = vpop.xlane.xlu0 %677
  %v679 = vsub.f32 %v633, %v663
  %v680 = vsub.f32 %v638, %v666
  %v681 = vsub.f32 %v643, %v669
  %v682 = vsub.f32 %v648, %v672
  %v683 = vsub.f32 %v653, %v675
  %v684 = vsub.f32 %v658, %v678
  %v685 = vmul.f32 %v679, 1.442695
  %v686 = vpow.pop %v685
  %v687 = vmul.f32 %v680, 1.442695
  %v688 = vpow.pop %v687
  %v689 = vmul.f32 %v681, 1.442695
  %v690 = vpow.pop %v689
  %v691 = vmul.f32 %v682, 1.442695
  %v692 = vpow.pop %v691
  %v693 = vmul.f32 %v683, 1.442695
  %v694 = vpow.pop %v693
  %v695 = vmul.f32 %v684, 1.442695
  %v696 = vpow.pop %v695
  %v697 = vsel %vm65, %v686, 0.0
  %698 = vadd.xlane.f32.xlu0 %v697
  %v699 = vpop.xlane.xlu0 %698
  %v700 = vsel %vm65, %v688, 0.0
  %701 = vadd.xlane.f32.xlu0 %v700
  %v702 = vpop.xlane.xlu0 %701
  %v703 = vsel %vm65, %v690, 0.0
  %704 = vadd.xlane.f32.xlu0 %v703
  %v705 = vpop.xlane.xlu0 %704
  %v706 = vsel %vm65, %v692, 0.0
  %707 = vadd.xlane.f32.xlu0 %v706
  %v708 = vpop.xlane.xlu0 %707
  %v709 = vsel %vm65, %v694, 0.0
  %710 = vadd.xlane.f32.xlu0 %v709
  %v711 = vpop.xlane.xlu0 %710
  %v712 = vsel %vm65, %v696, 0.0
  %713 = vadd.xlane.f32.xlu0 %v712
  %v714 = vpop.xlane.xlu0 %713
  %v715 = vrcp.pop %v699
  %v716 = vmul.f32 %v686, %v715
  %v717 = vrcp.pop %v702
  %v718 = vmul.f32 %v688, %v717
  %v719 = vrcp.pop %v705
  %v720 = vmul.f32 %v690, %v719
  %v721 = vrcp.pop %v708
  %v722 = vmul.f32 %v692, %v721
  %v723 = vrcp.pop %v711
  %v724 = vmul.f32 %v694, %v723
  %v725 = vrcp.pop %v714
  %v726 = vmul.f32 %v696, %v725
  %727 = vrot.lane.b32.xlu0 %v495, 64
  %v728 = vpop.permute.xlu0 %727
  %729 = vrot.lane.b32.xlu0 %v500, 64
  %v730 = vpop.permute.xlu0 %729
  %731 = vrot.lane.b32.xlu0 %v505, 64
  %v732 = vpop.permute.xlu0 %731
  %733 = vrot.lane.b32.xlu0 %v510, 64
  %v734 = vpop.permute.xlu0 %733
  %735 = vrot.lane.b32.xlu0 %v515, 64
  %v736 = vpop.permute.xlu0 %735
  %737 = vrot.lane.b32.xlu0 %v520, 64
  %v738 = vpop.permute.xlu0 %737
  %v746 = vsel %vm65, %v716, 0
  %v749 = vsel %vm65, %v718, 0
  %v752 = vsel %vm65, %v720, 0
  %v755 = vsel %vm65, %v722, 0
  %v758 = vsel %vm65, %v724, 0
  %v761 = vsel %vm65, %v726, 0
  %763 = vmatprep.subr.mxu0 0.0
  %764 = vmatpush1.msra.mxu0 %v728
  %765 = vmatprep.subr.mxu0 0.0
  %766 = vmatpush1.msra.mxu0 %v730
  %767 = vmatprep.subr.mxu0 0.0
  %768 = vmatpush1.msra.mxu0 %v732
  %769 = vmatprep.subr.mxu0 0.0
  %770 = vmatpush1.msra.mxu0 %v734
  %771 = vmatprep.subr.mxu0 0.0
  %772 = vmatpush1.msra.mxu0 %v736
  %773 = vmatprep.subr.mxu0 0.0
  %774 = vmatpush1.msra.mxu0 %v738
  %775 = vmatprep.subr.mxu0 0.0
  %776 = vmatpush1.msra.mxu0 0.0
  %777 = vmatprep.subr.mxu0 0.0
  %778 = vmatpush1.msra.mxu0 0.0
  %779 = vmatprep.subr.mxu0 0.0
  %780 = vmatpush1.msra.mxu0 0.0
  %781 = vmatprep.subr.mxu0 0.0
  %782 = vmatpush1.msra.mxu0 0.0
  %783 = vmatprep.subr.mxu0 0.0
  %784 = vmatpush1.msra.mxu0 0.0
  %785 = vmatprep.subr.mxu0 0.0
  %786 = vmatpush1.msra.mxu0 0.0
  %787 = vmatprep.subr.mxu0 0.0
  %788 = vmatpush1.msra.mxu0 0.0
  %789 = vmatprep.subr.mxu0 0.0
  %790 = vmatpush1.msra.mxu0 0.0
  %791 = vmatprep.subr.mxu0 0.0
  %792 = vmatpush1.msra.mxu0 0.0
  %793 = vmatprep.subr.mxu0 0.0
  %794 = vmatpush1.msra.mxu0 0.0
  %795 = vmatprep.subr.mxu0 0.0
  %796 = vmatpush1.msra.mxu0 0.0
  %797 = vmatprep.subr.mxu0 0.0
  %798 = vmatpush1.msra.mxu0 0.0
  %799 = vmatprep.subr.mxu0 0.0
  %800 = vmatpush1.msra.mxu0 0.0
  %801 = vmatprep.subr.mxu0 0.0
  %802 = vmatpush1.msra.mxu0 0.0
  %803 = vmatprep.subr.mxu0 0.0
  %804 = vmatpush1.msra.mxu0 0.0
  %805 = vmatprep.subr.mxu0 0.0
  %806 = vmatpush1.msra.mxu0 0.0
  %807 = vmatprep.subr.mxu0 0.0
  %808 = vmatpush1.msra.mxu0 0.0
  %809 = vmatprep.subr.mxu0 0.0
  %810 = vmatpush1.msra.mxu0 0.0
  %811 = vmatprep.subr.mxu0 0.0
  %812 = vmatpush1.msra.mxu0 0.0
  %813 = vmatprep.subr.mxu0 0.0
  %814 = vmatpush1.msra.mxu0 0.0
  %815 = vmatprep.subr.mxu0 0.0
  %816 = vmatpush1.msra.mxu0 0.0
  %817 = vmatprep.subr.mxu0 0.0
  %818 = vmatpush1.msra.mxu0 0.0
  %819 = vmatprep.subr.mxu0 0.0
  %820 = vmatpush1.msra.mxu0 0.0
  %821 = vmatprep.subr.mxu0 0.0
  %822 = vmatpush1.msra.mxu0 0.0
  %823 = vmatprep.subr.mxu0 0.0
  %824 = vmatpush1.msra.mxu0 0.0
  %825 = vmatprep.subr.mxu0 0.0
  %826 = vmatpush1.msra.mxu0 0.0
  %827 = vmatprep.mubr.f32.mxu0 0.0
  %828 = vmatmul.mubr.f32.gmra.mrb[0].mxu0 %v746
  %v829 = vpop.f32.mrb[0].mxu0
  %v830 = vadd.f32 0.0, %v829
  %v831 = vpop.f32.mrb[0].mxu0
  %832 = vmatprep.mubr.f32.mxu0 0.0
  %833 = vmatmul.mubr.f32.gmra.mrb[0].mxu0 %v749
  %v834 = vpop.f32.mrb[0].mxu0
  %v835 = vadd.f32 0.0, %v834
  %v836 = vpop.f32.mrb[0].mxu0
  %837 = vmatprep.mubr.f32.mxu0 0.0
  %838 = vmatmul.mubr.f32.gmra.mrb[0].mxu0 %v752
  %v839 = vpop.f32.mrb[0].mxu0
  %v840 = vadd.f32 0.0, %v839
  %v841 = vpop.f32.mrb[0].mxu0
  %842 = vmatprep.mubr.f32.mxu0 0.0
  %843 = vmatmul.mubr.f32.gmra.mrb[0].mxu0 %v755
  %v844 = vpop.f32.mrb[0].mxu0
  %v845 = vadd.f32 0.0, %v844
  %v846 = vpop.f32.mrb[0].mxu0
  %847 = vmatprep.mubr.f32.mxu0 0.0
  %848 = vmatmul.mubr.f32.gmra.mrb[0].mxu0 %v758
  %v849 = vpop.f32.mrb[0].mxu0
  %v850 = vadd.f32 0.0, %v849
  %v851 = vpop.f32.mrb[0].mxu0
  %852 = vmatprep.mubr.f32.mxu0 0.0
  %853 = vmatmul.mubr.f32.gmra.mrb[0].mxu0 %v761
  %v854 = vpop.f32.mrb[0].mxu0
  %v855 = vadd.f32 0.0, %v854
  %v856 = vpop.f32.mrb[0].mxu0
  %857 = vdwg.mxu0
  %858 = vrot.lane.b32.xlu0 %v495, 120
  %v859 = vpop.permute.xlu0 %858
  %860 = vrot.lane.b32.xlu0 %v500, 120
  %v861 = vpop.permute.xlu0 %860
  %862 = vrot.lane.b32.xlu0 %v505, 120
  %v863 = vpop.permute.xlu0 %862
  %864 = vrot.lane.b32.xlu0 %v510, 120
  %v865 = vpop.permute.xlu0 %864
  %866 = vrot.lane.b32.xlu0 %v515, 120
  %v867 = vpop.permute.xlu0 %866
  %868 = vrot.lane.b32.xlu0 %v520, 120
  %v869 = vpop.permute.xlu0 %868
  %870 = vrot.lane.b32.xlu0 %v495, 88
  %v871 = vpop.permute.xlu0 %870
  %872 = vrot.lane.b32.xlu0 %v500, 88
  %v873 = vpop.permute.xlu0 %872
  %874 = vrot.lane.b32.xlu0 %v505, 88
  %v875 = vpop.permute.xlu0 %874
  %876 = vrot.lane.b32.xlu0 %v510, 88
  %v877 = vpop.permute.xlu0 %876
  %878 = vrot.lane.b32.xlu0 %v515, 88
  %v879 = vpop.permute.xlu0 %878
  %880 = vrot.lane.b32.xlu0 %v520, 88
  %v881 = vpop.permute.xlu0 %880
  %v882 = vsel %vm541, %v859, 0
  %v884 = vsel %vm541, %v861, 0
  %v886 = vsel %vm541, %v863, 0
  %v888 = vsel %vm541, %v865, 0
  %v890 = vsel %vm541, %v867, 0
  %v892 = vsel %vm541, %v869, 0
  %v894 = vsel %vm541, %v871, 0
  %v896 = vsel %vm541, %v873, 0
  %v898 = vsel %vm541, %v875, 0
  %v900 = vsel %vm541, %v877, 0
  %v902 = vsel %vm541, %v879, 0
  %v904 = vsel %vm541, %v881, 0
  %906 = vmatprep.subr.mxu0 0.0
  %907 = vmatpush1.xpose.msra.mxu0 %v894
  %908 = vmatprep.subr.mxu0 0.0
  %909 = vmatpush1.xpose.msra.mxu0 %v896
  %910 = vmatprep.subr.mxu0 0.0
  %911 = vmatpush1.xpose.msra.mxu0 %v898
  %912 = vmatprep.subr.mxu0 0.0
  %913 = vmatpush1.xpose.msra.mxu0 %v900
  %914 = vmatprep.subr.mxu0 0.0
  %915 = vmatpush1.xpose.msra.mxu0 %v902
  %916 = vmatprep.subr.mxu0 0.0
  %917 = vmatpush1.xpose.msra.mxu0 %v904
  %918 = vmatprep.subr.mxu0 0.0
  %919 = vmatpush1.xpose.msra.mxu0 0.0
  %920 = vmatprep.subr.mxu0 0.0
  %921 = vmatpush1.xpose.msra.mxu0 0.0
  %922 = vmatprep.subr.mxu0 0.0
  %923 = vmatpush1.xpose.msra.mxu0 0.0
  %924 = vmatprep.subr.mxu0 0.0
  %925 = vmatpush1.xpose.msra.mxu0 0.0
  %926 = vmatprep.subr.mxu0 0.0
  %927 = vmatpush1.xpose.msra.mxu0 0.0
  %928 = vmatprep.subr.mxu0 0.0
  %929 = vmatpush1.xpose.msra.mxu0 0.0
  %930 = vmatprep.subr.mxu0 0.0
  %931 = vmatpush1.xpose.msra.mxu0 0.0
  %932 = vmatprep.subr.mxu0 0.0
  %933 = vmatpush1.xpose.msra.mxu0 0.0
  %934 = vmatprep.subr.mxu0 0.0
  %935 = vmatpush1.xpose.msra.mxu0 0.0
  %936 = vmatprep.subr.mxu0 0.0
  %937 = vmatpush1.xpose.msra.mxu0 0.0
  %938 = vmatprep.subr.mxu0 0.0
  %939 = vmatpush1.xpose.msra.mxu0 0.0
  %940 = vmatprep.subr.mxu0 0.0
  %941 = vmatpush1.xpose.msra.mxu0 0.0
  %942 = vmatprep.subr.mxu0 0.0
  %943 = vmatpush1.xpose.msra.mxu0 0.0
  %944 = vmatprep.subr.mxu0 0.0
  %945 = vmatpush1.xpose.msra.mxu0 0.0
  %946 = vmatprep.subr.mxu0 0.0
  %947 = vmatpush1.xpose.msra.mxu0 0.0
  %948 = vmatprep.subr.mxu0 0.0
  %949 = vmatpush1.xpose.msra.mxu0 0.0
  %950 = vmatprep.subr.mxu0 0.0
  %951 = vmatpush1.xpose.msra.mxu0 0.0
  %952 = vmatprep.subr.mxu0 0.0
  %953 = vmatpush1.xpose.msra.mxu0 0.0
  %954 = vmatprep.subr.mxu0 0.0
  %955 = vmatpush1.xpose.msra.mxu0 0.0
  %956 = vmatprep.subr.mxu0 0.0
  %957 = vmatpush1.xpose.msra.mxu0 0.0
  %958 = vmatprep.subr.mxu0 0.0
  %959 = vmatpush1.xpose.msra.mxu0 0.0
  %960 = vmatprep.subr.mxu0 0.0
  %961 = vmatpush1.xpose.msra.mxu0 0.0
  %962 = vmatprep.subr.mxu0 0.0
  %963 = vmatpush1.xpose.msra.mxu0 0.0
  %964 = vmatprep.subr.mxu0 0.0
  %965 = vmatpush1.xpose.msra.mxu0 0.0
  %966 = vmatprep.subr.mxu0 0.0
  %967 = vmatpush1.xpose.msra.mxu0 0.0
  %968 = vmatprep.subr.mxu0 0.0
  %969 = vmatpush1.xpose.msra.mxu0 0.0
  %970 = vmatprep.mubr.f32.mxu0 0.0
  %971 = vmatmul.mubr.f32.gmra.mrb[0].mxu0 %v882
  %v972 = vpop.f32.mrb[0].mxu0
  %v973 = vadd.f32 %v295, %v972
  %v974 = vpop.f32.mrb[0].mxu0
  %975 = vmatprep.mubr.f32.mxu0 0.0
  %976 = vmatmul.mubr.f32.gmra.mrb[0].mxu0 %v884
  %v977 = vpop.f32.mrb[0].mxu0
  %v978 = vadd.f32 %v296, %v977
  %v979 = vpop.f32.mrb[0].mxu0
  %980 = vmatprep.mubr.f32.mxu0 0.0
  %981 = vmatmul.mubr.f32.gmra.mrb[0].mxu0 %v886
  %v982 = vpop.f32.mrb[0].mxu0
  %v983 = vadd.f32 %v297, %v982
  %v984 = vpop.f32.mrb[0].mxu0
  %985 = vmatprep.mubr.f32.mxu0 0.0
  %986 = vmatmul.mubr.f32.gmra.mrb[0].mxu0 %v888
  %v987 = vpop.f32.mrb[0].mxu0
  %v988 = vadd.f32 %v298, %v987
  %v989 = vpop.f32.mrb[0].mxu0
  %990 = vmatprep.mubr.f32.mxu0 0.0
  %991 = vmatmul.mubr.f32.gmra.mrb[0].mxu0 %v890
  %v992 = vpop.f32.mrb[0].mxu0
  %v993 = vadd.f32 %v299, %v992
  %v994 = vpop.f32.mrb[0].mxu0
  %995 = vmatprep.mubr.f32.mxu0 0.0
  %996 = vmatmul.mubr.f32.gmra.mrb[0].mxu0 %v892
  %v997 = vpop.f32.mrb[0].mxu0
  %v998 = vadd.f32 %v300, %v997
  %v999 = vpop.f32.mrb[0].mxu0
  %1000 = vdwg.mxu0
  %v1001 = vsel %vm65, %v973, -inf
  %1002 = vmax.xlane.f32.xlu0 %v1001
  %v1003 = vpop.xlane.xlu0 %1002
  %v1004 = vsel %vm65, %v978, -inf
  %1005 = vmax.xlane.f32.xlu0 %v1004
  %v1006 = vpop.xlane.xlu0 %1005
  %v1007 = vsel %vm65, %v983, -inf
  %1008 = vmax.xlane.f32.xlu0 %v1007
  %v1009 = vpop.xlane.xlu0 %1008
  %v1010 = vsel %vm65, %v988, -inf
  %1011 = vmax.xlane.f32.xlu0 %v1010
  %v1012 = vpop.xlane.xlu0 %1011
  %v1013 = vsel %vm65, %v993, -inf
  %1014 = vmax.xlane.f32.xlu0 %v1013
  %v1015 = vpop.xlane.xlu0 %1014
  %v1016 = vsel %vm65, %v998, -inf
  %1017 = vmax.xlane.f32.xlu0 %v1016
  %v1018 = vpop.xlane.xlu0 %1017
  %v1019 = vsub.f32 %v973, %v1003
  %v1020 = vsub.f32 %v978, %v1006
  %v1021 = vsub.f32 %v983, %v1009
  %v1022 = vsub.f32 %v988, %v1012
  %v1023 = vsub.f32 %v993, %v1015
  %v1024 = vsub.f32 %v998, %v1018
  %v1025 = vmul.f32 %v1019, 1.442695
  %v1026 = vpow.pop %v1025
  %v1027 = vmul.f32 %v1020, 1.442695
  %v1028 = vpow.pop %v1027
  %v1029 = vmul.f32 %v1021, 1.442695
  %v1030 = vpow.pop %v1029
  %v1031 = vmul.f32 %v1022, 1.442695
  %v1032 = vpow.pop %v1031
  %v1033 = vmul.f32 %v1023, 1.442695
  %v1034 = vpow.pop %v1033
  %v1035 = vmul.f32 %v1024, 1.442695
  %v1036 = vpow.pop %v1035
  %v1037 = vsel %vm65, %v1026, 0.0
  %1038 = vadd.xlane.f32.xlu0 %v1037
  %v1039 = vpop.xlane.xlu0 %1038
  %v1040 = vsel %vm65, %v1028, 0.0
  %1041 = vadd.xlane.f32.xlu0 %v1040
  %v1042 = vpop.xlane.xlu0 %1041
  %v1043 = vsel %vm65, %v1030, 0.0
  %1044 = vadd.xlane.f32.xlu0 %v1043
  %v1045 = vpop.xlane.xlu0 %1044
  %v1046 = vsel %vm65, %v1032, 0.0
  %1047 = vadd.xlane.f32.xlu0 %v1046
  %v1048 = vpop.xlane.xlu0 %1047
  %v1049 = vsel %vm65, %v1034, 0.0
  %1050 = vadd.xlane.f32.xlu0 %v1049
  %v1051 = vpop.xlane.xlu0 %1050
  %v1052 = vsel %vm65, %v1036, 0.0
  %1053 = vadd.xlane.f32.xlu0 %v1052
  %v1054 = vpop.xlane.xlu0 %1053
  %v1055 = vrcp.pop %v1039
  %v1056 = vmul.f32 %v1026, %v1055
  %v1057 = vrcp.pop %v1042
  %v1058 = vmul.f32 %v1028, %v1057
  %v1059 = vrcp.pop %v1045
  %v1060 = vmul.f32 %v1030, %v1059
  %v1061 = vrcp.pop %v1048
  %v1062 = vmul.f32 %v1032, %v1061
  %v1063 = vrcp.pop %v1051
  %v1064 = vmul.f32 %v1034, %v1063
  %v1065 = vrcp.pop %v1054
  %v1066 = vmul.f32 %v1036, %v1065
  %1067 = vrot.lane.b32.xlu0 %v495, 56
  %v1068 = vpop.permute.xlu0 %1067
  %1069 = vrot.lane.b32.xlu0 %v500, 56
  %v1070 = vpop.permute.xlu0 %1069
  %1071 = vrot.lane.b32.xlu0 %v505, 56
  %v1072 = vpop.permute.xlu0 %1071
  %1073 = vrot.lane.b32.xlu0 %v510, 56
  %v1074 = vpop.permute.xlu0 %1073
  %1075 = vrot.lane.b32.xlu0 %v515, 56
  %v1076 = vpop.permute.xlu0 %1075
  %1077 = vrot.lane.b32.xlu0 %v520, 56
  %v1078 = vpop.permute.xlu0 %1077
  %v1086 = vsel %vm65, %v1056, 0
  %v1089 = vsel %vm65, %v1058, 0
  %v1092 = vsel %vm65, %v1060, 0
  %v1095 = vsel %vm65, %v1062, 0
  %v1098 = vsel %vm65, %v1064, 0
  %v1101 = vsel %vm65, %v1066, 0
  %1103 = vmatprep.subr.mxu0 0.0
  %1104 = vmatpush1.msra.mxu0 %v1068
  %1105 = vmatprep.subr.mxu0 0.0
  %1106 = vmatpush1.msra.mxu0 %v1070
  %1107 = vmatprep.subr.mxu0 0.0
  %1108 = vmatpush1.msra.mxu0 %v1072
  %1109 = vmatprep.subr.mxu0 0.0
  %1110 = vmatpush1.msra.mxu0 %v1074
  %1111 = vmatprep.subr.mxu0 0.0
  %1112 = vmatpush1.msra.mxu0 %v1076
  %1113 = vmatprep.subr.mxu0 0.0
  %1114 = vmatpush1.msra.mxu0 %v1078
  %1115 = vmatprep.subr.mxu0 0.0
  %1116 = vmatpush1.msra.mxu0 0.0
  %1117 = vmatprep.subr.mxu0 0.0
  %1118 = vmatpush1.msra.mxu0 0.0
  %1119 = vmatprep.subr.mxu0 0.0
  %1120 = vmatpush1.msra.mxu0 0.0
  %1121 = vmatprep.subr.mxu0 0.0
  %1122 = vmatpush1.msra.mxu0 0.0
  %1123 = vmatprep.subr.mxu0 0.0
  %1124 = vmatpush1.msra.mxu0 0.0
  %1125 = vmatprep.subr.mxu0 0.0
  %1126 = vmatpush1.msra.mxu0 0.0
  %1127 = vmatprep.subr.mxu0 0.0
  %1128 = vmatpush1.msra.mxu0 0.0
  %1129 = vmatprep.subr.mxu0 0.0
  %1130 = vmatpush1.msra.mxu0 0.0
  %1131 = vmatprep.subr.mxu0 0.0
  %1132 = vmatpush1.msra.mxu0 0.0
  %1133 = vmatprep.subr.mxu0 0.0
  %1134 = vmatpush1.msra.mxu0 0.0
  %1135 = vmatprep.subr.mxu0 0.0
  %1136 = vmatpush1.msra.mxu0 0.0
  %1137 = vmatprep.subr.mxu0 0.0
  %1138 = vmatpush1.msra.mxu0 0.0
  %1139 = vmatprep.subr.mxu0 0.0
  %1140 = vmatpush1.msra.mxu0 0.0
  %1141 = vmatprep.subr.mxu0 0.0
  %1142 = vmatpush1.msra.mxu0 0.0
  %1143 = vmatprep.subr.mxu0 0.0
  %1144 = vmatpush1.msra.mxu0 0.0
  %1145 = vmatprep.subr.mxu0 0.0
  %1146 = vmatpush1.msra.mxu0 0.0
  %1147 = vmatprep.subr.mxu0 0.0
  %1148 = vmatpush1.msra.mxu0 0.0
  %1149 = vmatprep.subr.mxu0 0.0
  %1150 = vmatpush1.msra.mxu0 0.0
  %1151 = vmatprep.subr.mxu0 0.0
  %1152 = vmatpush1.msra.mxu0 0.0
  %1153 = vmatprep.subr.mxu0 0.0
  %1154 = vmatpush1.msra.mxu0 0.0
  %1155 = vmatprep.subr.mxu0 0.0
  %1156 = vmatpush1.msra.mxu0 0.0
  %1157 = vmatprep.subr.mxu0 0.0
  %1158 = vmatpush1.msra.mxu0 0.0
  %1159 = vmatprep.subr.mxu0 0.0
  %1160 = vmatpush1.msra.mxu0 0.0
  %1161 = vmatprep.subr.mxu0 0.0
  %1162 = vmatpush1.msra.mxu0 0.0
  %1163 = vmatprep.subr.mxu0 0.0
  %1164 = vmatpush1.msra.mxu0 0.0
  %1165 = vmatprep.subr.mxu0 0.0
  %1166 = vmatpush1.msra.mxu0 0.0
  %1167 = vmatprep.mubr.f32.mxu0 0.0
  %1168 = vmatmul.mubr.f32.gmra.mrb[0].mxu0 %v1086
  %v1169 = vpop.f32.mrb[0].mxu0
  %v1170 = vadd.f32 0.0, %v1169
  %v1171 = vpop.f32.mrb[0].mxu0
  %1172 = vmatprep.mubr.f32.mxu0 0.0
  %1173 = vmatmul.mubr.f32.gmra.mrb[0].mxu0 %v1089
  %v1174 = vpop.f32.mrb[0].mxu0
  %v1175 = vadd.f32 0.0, %v1174
  %v1176 = vpop.f32.mrb[0].mxu0
  %1177 = vmatprep.mubr.f32.mxu0 0.0
  %1178 = vmatmul.mubr.f32.gmra.mrb[0].mxu0 %v1092
  %v1179 = vpop.f32.mrb[0].mxu0
  %v1180 = vadd.f32 0.0, %v1179
  %v1181 = vpop.f32.mrb[0].mxu0
  %1182 = vmatprep.mubr.f32.mxu0 0.0
  %1183 = vmatmul.mubr.f32.gmra.mrb[0].mxu0 %v1095
  %v1184 = vpop.f32.mrb[0].mxu0
  %v1185 = vadd.f32 0.0, %v1184
  %v1186 = vpop.f32.mrb[0].mxu0
  %1187 = vmatprep.mubr.f32.mxu0 0.0
  %1188 = vmatmul.mubr.f32.gmra.mrb[0].mxu0 %v1098
  %v1189 = vpop.f32.mrb[0].mxu0
  %v1190 = vadd.f32 0.0, %v1189
  %v1191 = vpop.f32.mrb[0].mxu0
  %1192 = vmatprep.mubr.f32.mxu0 0.0
  %1193 = vmatmul.mubr.f32.gmra.mrb[0].mxu0 %v1101
  %v1194 = vpop.f32.mrb[0].mxu0
  %v1195 = vadd.f32 0.0, %v1194
  %v1196 = vpop.f32.mrb[0].mxu0
  %1197 = vdwg.mxu0
  %1198 = vrot.lane.b32.xlu0 %v495, 112
  %v1199 = vpop.permute.xlu0 %1198
  %1200 = vrot.lane.b32.xlu0 %v500, 112
  %v1201 = vpop.permute.xlu0 %1200
  %1202 = vrot.lane.b32.xlu0 %v505, 112
  %v1203 = vpop.permute.xlu0 %1202
  %1204 = vrot.lane.b32.xlu0 %v510, 112
  %v1205 = vpop.permute.xlu0 %1204
  %1206 = vrot.lane.b32.xlu0 %v515, 112
  %v1207 = vpop.permute.xlu0 %1206
  %1208 = vrot.lane.b32.xlu0 %v520, 112
  %v1209 = vpop.permute.xlu0 %1208
  %1210 = vrot.lane.b32.xlu0 %v495, 80
  %v1211 = vpop.permute.xlu0 %1210
  %1212 = vrot.lane.b32.xlu0 %v500, 80
  %v1213 = vpop.permute.xlu0 %1212
  %1214 = vrot.lane.b32.xlu0 %v505, 80
  %v1215 = vpop.permute.xlu0 %1214
  %1216 = vrot.lane.b32.xlu0 %v510, 80
  %v1217 = vpop.permute.xlu0 %1216
  %1218 = vrot.lane.b32.xlu0 %v515, 80
  %v1219 = vpop.permute.xlu0 %1218
  %1220 = vrot.lane.b32.xlu0 %v520, 80
  %v1221 = vpop.permute.xlu0 %1220
  %v1222 = vsel %vm541, %v1199, 0
  %v1224 = vsel %vm541, %v1201, 0
  %v1226 = vsel %vm541, %v1203, 0
  %v1228 = vsel %vm541, %v1205, 0
  %v1230 = vsel %vm541, %v1207, 0
  %v1232 = vsel %vm541, %v1209, 0
  %v1234 = vsel %vm541, %v1211, 0
  %v1236 = vsel %vm541, %v1213, 0
  %v1238 = vsel %vm541, %v1215, 0
  %v1240 = vsel %vm541, %v1217, 0
  %v1242 = vsel %vm541, %v1219, 0
  %v1244 = vsel %vm541, %v1221, 0
  %1246 = vmatprep.subr.mxu0 0.0
  %1247 = vmatpush1.xpose.msra.mxu0 %v1234
  %1248 = vmatprep.subr.mxu0 0.0
  %1249 = vmatpush1.xpose.msra.mxu0 %v1236
  %1250 = vmatprep.subr.mxu0 0.0
  %1251 = vmatpush1.xpose.msra.mxu0 %v1238
  %1252 = vmatprep.subr.mxu0 0.0
  %1253 = vmatpush1.xpose.msra.mxu0 %v1240
  %1254 = vmatprep.subr.mxu0 0.0
  %1255 = vmatpush1.xpose.msra.mxu0 %v1242
  %1256 = vmatprep.subr.mxu0 0.0
  %1257 = vmatpush1.xpose.msra.mxu0 %v1244
  %1258 = vmatprep.subr.mxu0 0.0
  %1259 = vmatpush1.xpose.msra.mxu0 0.0
  %1260 = vmatprep.subr.mxu0 0.0
  %1261 = vmatpush1.xpose.msra.mxu0 0.0
  %1262 = vmatprep.subr.mxu0 0.0
  %1263 = vmatpush1.xpose.msra.mxu0 0.0
  %1264 = vmatprep.subr.mxu0 0.0
  %1265 = vmatpush1.xpose.msra.mxu0 0.0
  %1266 = vmatprep.subr.mxu0 0.0
  %1267 = vmatpush1.xpose.msra.mxu0 0.0
  %1268 = vmatprep.subr.mxu0 0.0
  %1269 = vmatpush1.xpose.msra.mxu0 0.0
  %1270 = vmatprep.subr.mxu0 0.0
  %1271 = vmatpush1.xpose.msra.mxu0 0.0
  %1272 = vmatprep.subr.mxu0 0.0
  %1273 = vmatpush1.xpose.msra.mxu0 0.0
  %1274 = vmatprep.subr.mxu0 0.0
  %1275 = vmatpush1.xpose.msra.mxu0 0.0
  %1276 = vmatprep.subr.mxu0 0.0
  %1277 = vmatpush1.xpose.msra.mxu0 0.0
  %1278 = vmatprep.subr.mxu0 0.0
  %1279 = vmatpush1.xpose.msra.mxu0 0.0
  %1280 = vmatprep.subr.mxu0 0.0
  %1281 = vmatpush1.xpose.msra.mxu0 0.0
  %1282 = vmatprep.subr.mxu0 0.0
  %1283 = vmatpush1.xpose.msra.mxu0 0.0
  %1284 = vmatprep.subr.mxu0 0.0
  %1285 = vmatpush1.xpose.msra.mxu0 0.0
  %1286 = vmatprep.subr.mxu0 0.0
  %1287 = vmatpush1.xpose.msra.mxu0 0.0
  %1288 = vmatprep.subr.mxu0 0.0
  %1289 = vmatpush1.xpose.msra.mxu0 0.0
  %1290 = vmatprep.subr.mxu0 0.0
  %1291 = vmatpush1.xpose.msra.mxu0 0.0
  %1292 = vmatprep.subr.mxu0 0.0
  %1293 = vmatpush1.xpose.msra.mxu0 0.0
  %1294 = vmatprep.subr.mxu0 0.0
  %1295 = vmatpush1.xpose.msra.mxu0 0.0
  %1296 = vmatprep.subr.mxu0 0.0
  %1297 = vmatpush1.xpose.msra.mxu0 0.0
  %1298 = vmatprep.subr.mxu0 0.0
  %1299 = vmatpush1.xpose.msra.mxu0 0.0
  %1300 = vmatprep.subr.mxu0 0.0
  %1301 = vmatpush1.xpose.msra.mxu0 0.0
  %1302 = vmatprep.subr.mxu0 0.0
  %1303 = vmatpush1.xpose.msra.mxu0 0.0
  %1304 = vmatprep.subr.mxu0 0.0
  %1305 = vmatpush1.xpose.msra.mxu0 0.0
  %1306 = vmatprep.subr.mxu0 0.0
  %1307 = vmatpush1.xpose.msra.mxu0 0.0
  %1308 = vmatprep.subr.mxu0 0.0
  %1309 = vmatpush1.xpose.msra.mxu0 0.0
  %1310 = vmatprep.mubr.f32.mxu0 0.0
  %1311 = vmatmul.mubr.f32.gmra.mrb[0].mxu0 %v1222
  %v1312 = vpop.f32.mrb[0].mxu0
  %v1313 = vadd.f32 %v295, %v1312
  %v1314 = vpop.f32.mrb[0].mxu0
  %1315 = vmatprep.mubr.f32.mxu0 0.0
  %1316 = vmatmul.mubr.f32.gmra.mrb[0].mxu0 %v1224
  %v1317 = vpop.f32.mrb[0].mxu0
  %v1318 = vadd.f32 %v296, %v1317
  %v1319 = vpop.f32.mrb[0].mxu0
  %1320 = vmatprep.mubr.f32.mxu0 0.0
  %1321 = vmatmul.mubr.f32.gmra.mrb[0].mxu0 %v1226
  %v1322 = vpop.f32.mrb[0].mxu0
  %v1323 = vadd.f32 %v297, %v1322
  %v1324 = vpop.f32.mrb[0].mxu0
  %1325 = vmatprep.mubr.f32.mxu0 0.0
  %1326 = vmatmul.mubr.f32.gmra.mrb[0].mxu0 %v1228
  %v1327 = vpop.f32.mrb[0].mxu0
  %v1328 = vadd.f32 %v298, %v1327
  %v1329 = vpop.f32.mrb[0].mxu0
  %1330 = vmatprep.mubr.f32.mxu0 0.0
  %1331 = vmatmul.mubr.f32.gmra.mrb[0].mxu0 %v1230
  %v1332 = vpop.f32.mrb[0].mxu0
  %v1333 = vadd.f32 %v299, %v1332
  %v1334 = vpop.f32.mrb[0].mxu0
  %1335 = vmatprep.mubr.f32.mxu0 0.0
  %1336 = vmatmul.mubr.f32.gmra.mrb[0].mxu0 %v1232
  %v1337 = vpop.f32.mrb[0].mxu0
  %v1338 = vadd.f32 %v300, %v1337
  %v1339 = vpop.f32.mrb[0].mxu0
  %1340 = vdwg.mxu0
  %v1341 = vsel %vm65, %v1313, -inf
  %1342 = vmax.xlane.f32.xlu0 %v1341
  %v1343 = vpop.xlane.xlu0 %1342
  %v1344 = vsel %vm65, %v1318, -inf
  %1345 = vmax.xlane.f32.xlu0 %v1344
  %v1346 = vpop.xlane.xlu0 %1345
  %v1347 = vsel %vm65, %v1323, -inf
  %1348 = vmax.xlane.f32.xlu0 %v1347
  %v1349 = vpop.xlane.xlu0 %1348
  %v1350 = vsel %vm65, %v1328, -inf
  %1351 = vmax.xlane.f32.xlu0 %v1350
  %v1352 = vpop.xlane.xlu0 %1351
  %v1353 = vsel %vm65, %v1333, -inf
  %1354 = vmax.xlane.f32.xlu0 %v1353
  %v1355 = vpop.xlane.xlu0 %1354
  %v1356 = vsel %vm65, %v1338, -inf
  %1357 = vmax.xlane.f32.xlu0 %v1356
  %v1358 = vpop.xlane.xlu0 %1357
  %v1359 = vsub.f32 %v1313, %v1343
  %v1360 = vsub.f32 %v1318, %v1346
  %v1361 = vsub.f32 %v1323, %v1349
  %v1362 = vsub.f32 %v1328, %v1352
  %v1363 = vsub.f32 %v1333, %v1355
  %v1364 = vsub.f32 %v1338, %v1358
  %v1365 = vmul.f32 %v1359, 1.442695
  %v1366 = vpow.pop %v1365
  %v1367 = vmul.f32 %v1360, 1.442695
  %v1368 = vpow.pop %v1367
  %v1369 = vmul.f32 %v1361, 1.442695
  %v1370 = vpow.pop %v1369
  %v1371 = vmul.f32 %v1362, 1.442695
  %v1372 = vpow.pop %v1371
  %v1373 = vmul.f32 %v1363, 1.442695
  %v1374 = vpow.pop %v1373
  %v1375 = vmul.f32 %v1364, 1.442695
  %v1376 = vpow.pop %v1375
  %v1377 = vsel %vm65, %v1366, 0.0
  %1378 = vadd.xlane.f32.xlu0 %v1377
  %v1379 = vpop.xlane.xlu0 %1378
  %v1380 = vsel %vm65, %v1368, 0.0
  %1381 = vadd.xlane.f32.xlu0 %v1380
  %v1382 = vpop.xlane.xlu0 %1381
  %v1383 = vsel %vm65, %v1370, 0.0
  %1384 = vadd.xlane.f32.xlu0 %v1383
  %v1385 = vpop.xlane.xlu0 %1384
  %v1386 = vsel %vm65, %v1372, 0.0
  %1387 = vadd.xlane.f32.xlu0 %v1386
  %v1388 = vpop.xlane.xlu0 %1387
  %v1389 = vsel %vm65, %v1374, 0.0
  %1390 = vadd.xlane.f32.xlu0 %v1389
  %v1391 = vpop.xlane.xlu0 %1390
  %v1392 = vsel %vm65, %v1376, 0.0
  %1393 = vadd.xlane.f32.xlu0 %v1392
  %v1394 = vpop.xlane.xlu0 %1393
  %v1395 = vrcp.pop %v1379
  %v1396 = vmul.f32 %v1366, %v1395
  %v1397 = vrcp.pop %v1382
  %v1398 = vmul.f32 %v1368, %v1397
  %v1399 = vrcp.pop %v1385
  %v1400 = vmul.f32 %v1370, %v1399
  %v1401 = vrcp.pop %v1388
  %v1402 = vmul.f32 %v1372, %v1401
  %v1403 = vrcp.pop %v1391
  %v1404 = vmul.f32 %v1374, %v1403
  %v1405 = vrcp.pop %v1394
  %v1406 = vmul.f32 %v1376, %v1405
  %1407 = vrot.lane.b32.xlu0 %v495, 48
  %v1408 = vpop.permute.xlu0 %1407
  %1409 = vrot.lane.b32.xlu0 %v500, 48
  %v1410 = vpop.permute.xlu0 %1409
  %1411 = vrot.lane.b32.xlu0 %v505, 48
  %v1412 = vpop.permute.xlu0 %1411
  %1413 = vrot.lane.b32.xlu0 %v510, 48
  %v1414 = vpop.permute.xlu0 %1413
  %1415 = vrot.lane.b32.xlu0 %v515, 48
  %v1416 = vpop.permute.xlu0 %1415
  %1417 = vrot.lane.b32.xlu0 %v520, 48
  %v1418 = vpop.permute.xlu0 %1417
  %v1426 = vsel %vm65, %v1396, 0
  %v1429 = vsel %vm65, %v1398, 0
  %v1432 = vsel %vm65, %v1400, 0
  %v1435 = vsel %vm65, %v1402, 0
  %v1438 = vsel %vm65, %v1404, 0
  %v1441 = vsel %vm65, %v1406, 0
  %1443 = vmatprep.subr.mxu0 0.0
  %1444 = vmatpush1.msra.mxu0 %v1408
  %1445 = vmatprep.subr.mxu0 0.0
  %1446 = vmatpush1.msra.mxu0 %v1410
  %1447 = vmatprep.subr.mxu0 0.0
  %1448 = vmatpush1.msra.mxu0 %v1412
  %1449 = vmatprep.subr.mxu0 0.0
  %1450 = vmatpush1.msra.mxu0 %v1414
  %1451 = vmatprep.subr.mxu0 0.0
  %1452 = vmatpush1.msra.mxu0 %v1416
  %1453 = vmatprep.subr.mxu0 0.0
  %1454 = vmatpush1.msra.mxu0 %v1418
  %1455 = vmatprep.subr.mxu0 0.0
  %1456 = vmatpush1.msra.mxu0 0.0
  %1457 = vmatprep.subr.mxu0 0.0
  %1458 = vmatpush1.msra.mxu0 0.0
  %1459 = vmatprep.subr.mxu0 0.0
  %1460 = vmatpush1.msra.mxu0 0.0
  %1461 = vmatprep.subr.mxu0 0.0
  %1462 = vmatpush1.msra.mxu0 0.0
  %1463 = vmatprep.subr.mxu0 0.0
  %1464 = vmatpush1.msra.mxu0 0.0
  %1465 = vmatprep.subr.mxu0 0.0
  %1466 = vmatpush1.msra.mxu0 0.0
  %1467 = vmatprep.subr.mxu0 0.0
  %1468 = vmatpush1.msra.mxu0 0.0
  %1469 = vmatprep.subr.mxu0 0.0
  %1470 = vmatpush1.msra.mxu0 0.0
  %1471 = vmatprep.subr.mxu0 0.0
  %1472 = vmatpush1.msra.mxu0 0.0
  %1473 = vmatprep.subr.mxu0 0.0
  %1474 = vmatpush1.msra.mxu0 0.0
  %1475 = vmatprep.subr.mxu0 0.0
  %1476 = vmatpush1.msra.mxu0 0.0
  %1477 = vmatprep.subr.mxu0 0.0
  %1478 = vmatpush1.msra.mxu0 0.0
  %1479 = vmatprep.subr.mxu0 0.0
  %1480 = vmatpush1.msra.mxu0 0.0
  %1481 = vmatprep.subr.mxu0 0.0
  %1482 = vmatpush1.msra.mxu0 0.0
  %1483 = vmatprep.subr.mxu0 0.0
  %1484 = vmatpush1.msra.mxu0 0.0
  %1485 = vmatprep.subr.mxu0 0.0
  %1486 = vmatpush1.msra.mxu0 0.0
  %1487 = vmatprep.subr.mxu0 0.0
  %1488 = vmatpush1.msra.mxu0 0.0
  %1489 = vmatprep.subr.mxu0 0.0
  %1490 = vmatpush1.msra.mxu0 0.0
  %1491 = vmatprep.subr.mxu0 0.0
  %1492 = vmatpush1.msra.mxu0 0.0
  %1493 = vmatprep.subr.mxu0 0.0
  %1494 = vmatpush1.msra.mxu0 0.0
  %1495 = vmatprep.subr.mxu0 0.0
  %1496 = vmatpush1.msra.mxu0 0.0
  %1497 = vmatprep.subr.mxu0 0.0
  %1498 = vmatpush1.msra.mxu0 0.0
  %1499 = vmatprep.subr.mxu0 0.0
  %1500 = vmatpush1.msra.mxu0 0.0
  %1501 = vmatprep.subr.mxu0 0.0
  %1502 = vmatpush1.msra.mxu0 0.0
  %1503 = vmatprep.subr.mxu0 0.0
  %1504 = vmatpush1.msra.mxu0 0.0
  %1505 = vmatprep.subr.mxu0 0.0
  %1506 = vmatpush1.msra.mxu0 0.0
  %1507 = vmatprep.mubr.f32.mxu0 0.0
  %1508 = vmatmul.mubr.f32.gmra.mrb[0].mxu0 %v1426
  %v1509 = vpop.f32.mrb[0].mxu0
  %v1510 = vadd.f32 0.0, %v1509
  %v1511 = vpop.f32.mrb[0].mxu0
  %1512 = vmatprep.mubr.f32.mxu0 0.0
  %1513 = vmatmul.mubr.f32.gmra.mrb[0].mxu0 %v1429
  %v1514 = vpop.f32.mrb[0].mxu0
  %v1515 = vadd.f32 0.0, %v1514
  %v1516 = vpop.f32.mrb[0].mxu0
  %1517 = vmatprep.mubr.f32.mxu0 0.0
  %1518 = vmatmul.mubr.f32.gmra.mrb[0].mxu0 %v1432
  %v1519 = vpop.f32.mrb[0].mxu0
  %v1520 = vadd.f32 0.0, %v1519
  %v1521 = vpop.f32.mrb[0].mxu0
  %1522 = vmatprep.mubr.f32.mxu0 0.0
  %1523 = vmatmul.mubr.f32.gmra.mrb[0].mxu0 %v1435
  %v1524 = vpop.f32.mrb[0].mxu0
  %v1525 = vadd.f32 0.0, %v1524
  %v1526 = vpop.f32.mrb[0].mxu0
  %1527 = vmatprep.mubr.f32.mxu0 0.0
  %1528 = vmatmul.mubr.f32.gmra.mrb[0].mxu0 %v1438
  %v1529 = vpop.f32.mrb[0].mxu0
  %v1530 = vadd.f32 0.0, %v1529
  %v1531 = vpop.f32.mrb[0].mxu0
  %1532 = vmatprep.mubr.f32.mxu0 0.0
  %1533 = vmatmul.mubr.f32.gmra.mrb[0].mxu0 %v1441
  %v1534 = vpop.f32.mrb[0].mxu0
  %v1535 = vadd.f32 0.0, %v1534
  %v1536 = vpop.f32.mrb[0].mxu0
  %1537 = vdwg.mxu0
  %1538 = vrot.lane.b32.xlu0 %v495, 104
  %v1539 = vpop.permute.xlu0 %1538
  %1540 = vrot.lane.b32.xlu0 %v500, 104
  %v1541 = vpop.permute.xlu0 %1540
  %1542 = vrot.lane.b32.xlu0 %v505, 104
  %v1543 = vpop.permute.xlu0 %1542
  %1544 = vrot.lane.b32.xlu0 %v510, 104
  %v1545 = vpop.permute.xlu0 %1544
  %1546 = vrot.lane.b32.xlu0 %v515, 104
  %v1547 = vpop.permute.xlu0 %1546
  %1548 = vrot.lane.b32.xlu0 %v520, 104
  %v1549 = vpop.permute.xlu0 %1548
  %1550 = vrot.lane.b32.xlu0 %v495, 72
  %v1551 = vpop.permute.xlu0 %1550
  %1552 = vrot.lane.b32.xlu0 %v500, 72
  %v1553 = vpop.permute.xlu0 %1552
  %1554 = vrot.lane.b32.xlu0 %v505, 72
  %v1555 = vpop.permute.xlu0 %1554
  %1556 = vrot.lane.b32.xlu0 %v510, 72
  %v1557 = vpop.permute.xlu0 %1556
  %1558 = vrot.lane.b32.xlu0 %v515, 72
  %v1559 = vpop.permute.xlu0 %1558
  %1560 = vrot.lane.b32.xlu0 %v520, 72
  %v1561 = vpop.permute.xlu0 %1560
  %v1562 = vsel %vm541, %v1539, 0
  %v1564 = vsel %vm541, %v1541, 0
  %v1566 = vsel %vm541, %v1543, 0
  %v1568 = vsel %vm541, %v1545, 0
  %v1570 = vsel %vm541, %v1547, 0
  %v1572 = vsel %vm541, %v1549, 0
  %v1574 = vsel %vm541, %v1551, 0
  %v1576 = vsel %vm541, %v1553, 0
  %v1578 = vsel %vm541, %v1555, 0
  %v1580 = vsel %vm541, %v1557, 0
  %v1582 = vsel %vm541, %v1559, 0
  %v1584 = vsel %vm541, %v1561, 0
  %1586 = vmatprep.subr.mxu0 0.0
  %1587 = vmatpush1.xpose.msra.mxu0 %v1574
  %1588 = vmatprep.subr.mxu0 0.0
  %1589 = vmatpush1.xpose.msra.mxu0 %v1576
  %1590 = vmatprep.subr.mxu0 0.0
  %1591 = vmatpush1.xpose.msra.mxu0 %v1578
  %1592 = vmatprep.subr.mxu0 0.0
  %1593 = vmatpush1.xpose.msra.mxu0 %v1580
  %1594 = vmatprep.subr.mxu0 0.0
  %1595 = vmatpush1.xpose.msra.mxu0 %v1582
  %1596 = vmatprep.subr.mxu0 0.0
  %1597 = vmatpush1.xpose.msra.mxu0 %v1584
  %1598 = vmatprep.subr.mxu0 0.0
  %1599 = vmatpush1.xpose.msra.mxu0 0.0
  %1600 = vmatprep.subr.mxu0 0.0
  %1601 = vmatpush1.xpose.msra.mxu0 0.0
  %1602 = vmatprep.subr.mxu0 0.0
  %1603 = vmatpush1.xpose.msra.mxu0 0.0
  %1604 = vmatprep.subr.mxu0 0.0
  %1605 = vmatpush1.xpose.msra.mxu0 0.0
  %1606 = vmatprep.subr.mxu0 0.0
  %1607 = vmatpush1.xpose.msra.mxu0 0.0
  %1608 = vmatprep.subr.mxu0 0.0
  %1609 = vmatpush1.xpose.msra.mxu0 0.0
  %1610 = vmatprep.subr.mxu0 0.0
  %1611 = vmatpush1.xpose.msra.mxu0 0.0
  %1612 = vmatprep.subr.mxu0 0.0
  %1613 = vmatpush1.xpose.msra.mxu0 0.0
  %1614 = vmatprep.subr.mxu0 0.0
  %1615 = vmatpush1.xpose.msra.mxu0 0.0
  %1616 = vmatprep.subr.mxu0 0.0
  %1617 = vmatpush1.xpose.msra.mxu0 0.0
  %1618 = vmatprep.subr.mxu0 0.0
  %1619 = vmatpush1.xpose.msra.mxu0 0.0
  %1620 = vmatprep.subr.mxu0 0.0
  %1621 = vmatpush1.xpose.msra.mxu0 0.0
  %1622 = vmatprep.subr.mxu0 0.0
  %1623 = vmatpush1.xpose.msra.mxu0 0.0
  %1624 = vmatprep.subr.mxu0 0.0
  %1625 = vmatpush1.xpose.msra.mxu0 0.0
  %1626 = vmatprep.subr.mxu0 0.0
  %1627 = vmatpush1.xpose.msra.mxu0 0.0
  %1628 = vmatprep.subr.mxu0 0.0
  %1629 = vmatpush1.xpose.msra.mxu0 0.0
  %1630 = vmatprep.subr.mxu0 0.0
  %1631 = vmatpush1.xpose.msra.mxu0 0.0
  %1632 = vmatprep.subr.mxu0 0.0
  %1633 = vmatpush1.xpose.msra.mxu0 0.0
  %1634 = vmatprep.subr.mxu0 0.0
  %1635 = vmatpush1.xpose.msra.mxu0 0.0
  %1636 = vmatprep.subr.mxu0 0.0
  %1637 = vmatpush1.xpose.msra.mxu0 0.0
  %1638 = vmatprep.subr.mxu0 0.0
  %1639 = vmatpush1.xpose.msra.mxu0 0.0
  %1640 = vmatprep.subr.mxu0 0.0
  %1641 = vmatpush1.xpose.msra.mxu0 0.0
  %1642 = vmatprep.subr.mxu0 0.0
  %1643 = vmatpush1.xpose.msra.mxu0 0.0
  %1644 = vmatprep.subr.mxu0 0.0
  %1645 = vmatpush1.xpose.msra.mxu0 0.0
  %1646 = vmatprep.subr.mxu0 0.0
  %1647 = vmatpush1.xpose.msra.mxu0 0.0
  %1648 = vmatprep.subr.mxu0 0.0
  %1649 = vmatpush1.xpose.msra.mxu0 0.0
  %1650 = vmatprep.mubr.f32.mxu0 0.0
  %1651 = vmatmul.mubr.f32.gmra.mrb[0].mxu0 %v1562
  %v1652 = vpop.f32.mrb[0].mxu0
  %v1653 = vadd.f32 %v295, %v1652
  %v1654 = vpop.f32.mrb[0].mxu0
  %1655 = vmatprep.mubr.f32.mxu0 0.0
  %1656 = vmatmul.mubr.f32.gmra.mrb[0].mxu0 %v1564
  %v1657 = vpop.f32.mrb[0].mxu0
  %v1658 = vadd.f32 %v296, %v1657
  %v1659 = vpop.f32.mrb[0].mxu0
  %1660 = vmatprep.mubr.f32.mxu0 0.0
  %1661 = vmatmul.mubr.f32.gmra.mrb[0].mxu0 %v1566
  %v1662 = vpop.f32.mrb[0].mxu0
  %v1663 = vadd.f32 %v297, %v1662
  %v1664 = vpop.f32.mrb[0].mxu0
  %1665 = vmatprep.mubr.f32.mxu0 0.0
  %1666 = vmatmul.mubr.f32.gmra.mrb[0].mxu0 %v1568
  %v1667 = vpop.f32.mrb[0].mxu0
  %v1668 = vadd.f32 %v298, %v1667
  %v1669 = vpop.f32.mrb[0].mxu0
  %1670 = vmatprep.mubr.f32.mxu0 0.0
  %1671 = vmatmul.mubr.f32.gmra.mrb[0].mxu0 %v1570
  %v1672 = vpop.f32.mrb[0].mxu0
  %v1673 = vadd.f32 %v299, %v1672
  %v1674 = vpop.f32.mrb[0].mxu0
  %1675 = vmatprep.mubr.f32.mxu0 0.0
  %1676 = vmatmul.mubr.f32.gmra.mrb[0].mxu0 %v1572
  %v1677 = vpop.f32.mrb[0].mxu0
  %v1678 = vadd.f32 %v300, %v1677
  %v1679 = vpop.f32.mrb[0].mxu0
  %1680 = vdwg.mxu0
  %v1681 = vsel %vm65, %v1653, -inf
  %1682 = vmax.xlane.f32.xlu0 %v1681
  %v1683 = vpop.xlane.xlu0 %1682
  %v1684 = vsel %vm65, %v1658, -inf
  %1685 = vmax.xlane.f32.xlu0 %v1684
  %v1686 = vpop.xlane.xlu0 %1685
  %v1687 = vsel %vm65, %v1663, -inf
  %1688 = vmax.xlane.f32.xlu0 %v1687
  %v1689 = vpop.xlane.xlu0 %1688
  %v1690 = vsel %vm65, %v1668, -inf
  %1691 = vmax.xlane.f32.xlu0 %v1690
  %v1692 = vpop.xlane.xlu0 %1691
  %v1693 = vsel %vm65, %v1673, -inf
  %1694 = vmax.xlane.f32.xlu0 %v1693
  %v1695 = vpop.xlane.xlu0 %1694
  %v1696 = vsel %vm65, %v1678, -inf
  %1697 = vmax.xlane.f32.xlu0 %v1696
  %v1698 = vpop.xlane.xlu0 %1697
  %v1699 = vsub.f32 %v1653, %v1683
  %v1700 = vsub.f32 %v1658, %v1686
  %v1701 = vsub.f32 %v1663, %v1689
  %v1702 = vsub.f32 %v1668, %v1692
  %v1703 = vsub.f32 %v1673, %v1695
  %v1704 = vsub.f32 %v1678, %v1698
  %v1705 = vmul.f32 %v1699, 1.442695
  %v1706 = vpow.pop %v1705
  %v1707 = vmul.f32 %v1700, 1.442695
  %v1708 = vpow.pop %v1707
  %v1709 = vmul.f32 %v1701, 1.442695
  %v1710 = vpow.pop %v1709
  %v1711 = vmul.f32 %v1702, 1.442695
  %v1712 = vpow.pop %v1711
  %v1713 = vmul.f32 %v1703, 1.442695
  %v1714 = vpow.pop %v1713
  %v1715 = vmul.f32 %v1704, 1.442695
  %v1716 = vpow.pop %v1715
  %v1717 = vsel %vm65, %v1706, 0.0
  %1718 = vadd.xlane.f32.xlu0 %v1717
  %v1719 = vpop.xlane.xlu0 %1718
  %v1720 = vsel %vm65, %v1708, 0.0
  %1721 = vadd.xlane.f32.xlu0 %v1720
  %v1722 = vpop.xlane.xlu0 %1721
  %v1723 = vsel %vm65, %v1710, 0.0
  %1724 = vadd.xlane.f32.xlu0 %v1723
  %v1725 = vpop.xlane.xlu0 %1724
  %v1726 = vsel %vm65, %v1712, 0.0
  %1727 = vadd.xlane.f32.xlu0 %v1726
  %v1728 = vpop.xlane.xlu0 %1727
  %v1729 = vsel %vm65, %v1714, 0.0
  %1730 = vadd.xlane.f32.xlu0 %v1729
  %v1731 = vpop.xlane.xlu0 %1730
  %v1732 = vsel %vm65, %v1716, 0.0
  %1733 = vadd.xlane.f32.xlu0 %v1732
  %v1734 = vpop.xlane.xlu0 %1733
  %v1735 = vrcp.pop %v1719
  %v1736 = vmul.f32 %v1706, %v1735
  %v1737 = vrcp.pop %v1722
  %v1738 = vmul.f32 %v1708, %v1737
  %v1739 = vrcp.pop %v1725
  %v1740 = vmul.f32 %v1710, %v1739
  %v1741 = vrcp.pop %v1728
  %v1742 = vmul.f32 %v1712, %v1741
  %v1743 = vrcp.pop %v1731
  %v1744 = vmul.f32 %v1714, %v1743
  %v1745 = vrcp.pop %v1734
  %v1746 = vmul.f32 %v1716, %v1745
  %1747 = vrot.lane.b32.xlu0 %v495, 40
  %v1748 = vpop.permute.xlu0 %1747
  %1749 = vrot.lane.b32.xlu0 %v500, 40
  %v1750 = vpop.permute.xlu0 %1749
  %1751 = vrot.lane.b32.xlu0 %v505, 40
  %v1752 = vpop.permute.xlu0 %1751
  %1753 = vrot.lane.b32.xlu0 %v510, 40
  %v1754 = vpop.permute.xlu0 %1753
  %1755 = vrot.lane.b32.xlu0 %v515, 40
  %v1756 = vpop.permute.xlu0 %1755
  %1757 = vrot.lane.b32.xlu0 %v520, 40
  %v1758 = vpop.permute.xlu0 %1757
  %v1766 = vsel %vm65, %v1736, 0
  %v1769 = vsel %vm65, %v1738, 0
  %v1772 = vsel %vm65, %v1740, 0
  %v1775 = vsel %vm65, %v1742, 0
  %v1778 = vsel %vm65, %v1744, 0
  %v1781 = vsel %vm65, %v1746, 0
  %1783 = vmatprep.subr.mxu0 0.0
  %1784 = vmatpush1.msra.mxu0 %v1748
  %1785 = vmatprep.subr.mxu0 0.0
  %1786 = vmatpush1.msra.mxu0 %v1750
  %1787 = vmatprep.subr.mxu0 0.0
  %1788 = vmatpush1.msra.mxu0 %v1752
  %1789 = vmatprep.subr.mxu0 0.0
  %1790 = vmatpush1.msra.mxu0 %v1754
  %1791 = vmatprep.subr.mxu0 0.0
  %1792 = vmatpush1.msra.mxu0 %v1756
  %1793 = vmatprep.subr.mxu0 0.0
  %1794 = vmatpush1.msra.mxu0 %v1758
  %1795 = vmatprep.subr.mxu0 0.0
  %1796 = vmatpush1.msra.mxu0 0.0
  %1797 = vmatprep.subr.mxu0 0.0
  %1798 = vmatpush1.msra.mxu0 0.0
  %1799 = vmatprep.subr.mxu0 0.0
  %1800 = vmatpush1.msra.mxu0 0.0
  %1801 = vmatprep.subr.mxu0 0.0
  %1802 = vmatpush1.msra.mxu0 0.0
  %1803 = vmatprep.subr.mxu0 0.0
  %1804 = vmatpush1.msra.mxu0 0.0
  %1805 = vmatprep.subr.mxu0 0.0
  %1806 = vmatpush1.msra.mxu0 0.0
  %1807 = vmatprep.subr.mxu0 0.0
  %1808 = vmatpush1.msra.mxu0 0.0
  %1809 = vmatprep.subr.mxu0 0.0
  %1810 = vmatpush1.msra.mxu0 0.0
  %1811 = vmatprep.subr.mxu0 0.0
  %1812 = vmatpush1.msra.mxu0 0.0
  %1813 = vmatprep.subr.mxu0 0.0
  %1814 = vmatpush1.msra.mxu0 0.0
  %1815 = vmatprep.subr.mxu0 0.0
  %1816 = vmatpush1.msra.mxu0 0.0
  %1817 = vmatprep.subr.mxu0 0.0
  %1818 = vmatpush1.msra.mxu0 0.0
  %1819 = vmatprep.subr.mxu0 0.0
  %1820 = vmatpush1.msra.mxu0 0.0
  %1821 = vmatprep.subr.mxu0 0.0
  %1822 = vmatpush1.msra.mxu0 0.0
  %1823 = vmatprep.subr.mxu0 0.0
  %1824 = vmatpush1.msra.mxu0 0.0
  %1825 = vmatprep.subr.mxu0 0.0
  %1826 = vmatpush1.msra.mxu0 0.0
  %1827 = vmatprep.subr.mxu0 0.0
  %1828 = vmatpush1.msra.mxu0 0.0
  %1829 = vmatprep.subr.mxu0 0.0
  %1830 = vmatpush1.msra.mxu0 0.0
  %1831 = vmatprep.subr.mxu0 0.0
  %1832 = vmatpush1.msra.mxu0 0.0
  %1833 = vmatprep.subr.mxu0 0.0
  %1834 = vmatpush1.msra.mxu0 0.0
  %1835 = vmatprep.subr.mxu0 0.0
  %1836 = vmatpush1.msra.mxu0 0.0
  %1837 = vmatprep.subr.mxu0 0.0
  %1838 = vmatpush1.msra.mxu0 0.0
  %1839 = vmatprep.subr.mxu0 0.0
  %1840 = vmatpush1.msra.mxu0 0.0
  %1841 = vmatprep.subr.mxu0 0.0
  %1842 = vmatpush1.msra.mxu0 0.0
  %1843 = vmatprep.subr.mxu0 0.0
  %1844 = vmatpush1.msra.mxu0 0.0
  %1845 = vmatprep.subr.mxu0 0.0
  %1846 = vmatpush1.msra.mxu0 0.0
  %1847 = vmatprep.mubr.f32.mxu0 0.0
  %1848 = vmatmul.mubr.f32.gmra.mrb[0].mxu0 %v1766
  %v1849 = vpop.f32.mrb[0].mxu0
  %v1850 = vadd.f32 0.0, %v1849
  %v1851 = vpop.f32.mrb[0].mxu0
  %1852 = vmatprep.mubr.f32.mxu0 0.0
  %1853 = vmatmul.mubr.f32.gmra.mrb[0].mxu0 %v1769
  %v1854 = vpop.f32.mrb[0].mxu0
  %v1855 = vadd.f32 0.0, %v1854
  %v1856 = vpop.f32.mrb[0].mxu0
  %1857 = vmatprep.mubr.f32.mxu0 0.0
  %1858 = vmatmul.mubr.f32.gmra.mrb[0].mxu0 %v1772
  %v1859 = vpop.f32.mrb[0].mxu0
  %v1860 = vadd.f32 0.0, %v1859
  %v1861 = vpop.f32.mrb[0].mxu0
  %1862 = vmatprep.mubr.f32.mxu0 0.0
  %1863 = vmatmul.mubr.f32.gmra.mrb[0].mxu0 %v1775
  %v1864 = vpop.f32.mrb[0].mxu0
  %v1865 = vadd.f32 0.0, %v1864
  %v1866 = vpop.f32.mrb[0].mxu0
  %1867 = vmatprep.mubr.f32.mxu0 0.0
  %1868 = vmatmul.mubr.f32.gmra.mrb[0].mxu0 %v1778
  %v1869 = vpop.f32.mrb[0].mxu0
  %v1870 = vadd.f32 0.0, %v1869
  %v1871 = vpop.f32.mrb[0].mxu0
  %1872 = vmatprep.mubr.f32.mxu0 0.0
  %1873 = vmatmul.mubr.f32.gmra.mrb[0].mxu0 %v1781
  %v1874 = vpop.f32.mrb[0].mxu0
  %v1875 = vadd.f32 0.0, %v1874
  %v1876 = vpop.f32.mrb[0].mxu0
  %1877 = vdwg.mxu0
  %1884 = vrot.lane.b32.xlu0 %v1170, 8
  %v1885 = vpop.permute.xlu0 %1884
  %1886 = vrot.lane.b32.xlu0 %v1175, 8
  %v1887 = vpop.permute.xlu0 %1886
  %1888 = vrot.lane.b32.xlu0 %v1180, 8
  %v1889 = vpop.permute.xlu0 %1888
  %1890 = vrot.lane.b32.xlu0 %v1185, 8
  %v1891 = vpop.permute.xlu0 %1890
  %1892 = vrot.lane.b32.xlu0 %v1190, 8
  %v1893 = vpop.permute.xlu0 %1892
  %1894 = vrot.lane.b32.xlu0 %v1195, 8
  %v1895 = vpop.permute.xlu0 %1894
  %1908 = vrot.lane.b32.xlu0 %v1510, 16
  %v1909 = vpop.permute.xlu0 %1908
  %1910 = vrot.lane.b32.xlu0 %v1515, 16
  %v1911 = vpop.permute.xlu0 %1910
  %1912 = vrot.lane.b32.xlu0 %v1520, 16
  %v1913 = vpop.permute.xlu0 %1912
  %1914 = vrot.lane.b32.xlu0 %v1525, 16
  %v1915 = vpop.permute.xlu0 %1914
  %1916 = vrot.lane.b32.xlu0 %v1530, 16
  %v1917 = vpop.permute.xlu0 %1916
  %1918 = vrot.lane.b32.xlu0 %v1535, 16
  %v1919 = vpop.permute.xlu0 %1918
  %1932 = vrot.lane.b32.xlu0 %v1850, 24
  %v1933 = vpop.permute.xlu0 %1932
  %1934 = vrot.lane.b32.xlu0 %v1855, 24
  %v1935 = vpop.permute.xlu0 %1934
  %1936 = vrot.lane.b32.xlu0 %v1860, 24
  %v1937 = vpop.permute.xlu0 %1936
  %1938 = vrot.lane.b32.xlu0 %v1865, 24
  %v1939 = vpop.permute.xlu0 %1938
  %1940 = vrot.lane.b32.xlu0 %v1870, 24
  %v1941 = vpop.permute.xlu0 %1940
  %1942 = vrot.lane.b32.xlu0 %v1875, 24
  %v1943 = vpop.permute.xlu0 %1942
  %v1950 = vsel %vm541, %v830, %v1885
  %v1951 = vsel %vm541, %v835, %v1887
  %v1952 = vsel %vm541, %v840, %v1889
  %v1953 = vsel %vm541, %v845, %v1891
  %v1954 = vsel %vm541, %v850, %v1893
  %v1955 = vsel %vm541, %v855, %v1895
  %vm1956 = vcmask 130048
  %v1957 = vsel %vm1956, %v1950, %v1909
  %v1958 = vsel %vm1956, %v1951, %v1911
  %v1959 = vsel %vm1956, %v1952, %v1913
  %v1960 = vsel %vm1956, %v1953, %v1915
  %v1961 = vsel %vm1956, %v1954, %v1917
  %v1962 = vsel %vm1956, %v1955, %v1919
  %vm1963 = vcmask 195584
  %v1964 = vsel %vm1963, %v1957, %v1933
  %v1965 = vsel %vm1963, %v1958, %v1935
  %v1966 = vsel %vm1963, %v1959, %v1937
  %v1967 = vsel %vm1963, %v1960, %v1939
  %v1968 = vsel %vm1963, %v1961, %v1941
  %v1969 = vsel %vm1963, %v1962, %v1943
  %v1970 = vld [vmem:[%s8] sm:$0xff]
  %v1971 = vld [vmem:[%s8 + $0x8] sm:$0xff]
  %v1972 = vld [vmem:[%s8 + $0x10] sm:$0xff]
  %v1973 = vld [vmem:[%s8 + $0x18] sm:$0xff]
  %v1975 = vsel %vm175, %v1964, 0
  %v1978 = vsel %vm175, %v1965, 0
  %v1981 = vsel %vm175, %v1966, 0
  %v1984 = vsel %vm175, %v1967, 0
  %v1987 = vsel %vm175, %v1968, 0
  %v1990 = vsel %vm175, %v1969, 0
  %1992 = vmatprep.subr.mxu0 0.0
  %1993 = vmatpush1.msra.mxu0 %v1970
  %1994 = vmatprep.subr.mxu0 0.0
  %1995 = vmatpush1.msra.mxu0 %v1971
  %1996 = vmatprep.subr.mxu0 0.0
  %1997 = vmatpush1.msra.mxu0 %v1972
  %1998 = vmatprep.subr.mxu0 0.0
  %1999 = vmatpush1.msra.mxu0 %v1973
  %2000 = vmatprep.subr.mxu0 0.0
  %2001 = vmatpush1.msra.mxu0 0.0
  %2002 = vmatprep.subr.mxu0 0.0
  %2003 = vmatpush1.msra.mxu0 0.0
  %2004 = vmatprep.subr.mxu0 0.0
  %2005 = vmatpush1.msra.mxu0 0.0
  %2006 = vmatprep.subr.mxu0 0.0
  %2007 = vmatpush1.msra.mxu0 0.0
  %2008 = vmatprep.subr.mxu0 0.0
  %2009 = vmatpush1.msra.mxu0 0.0
  %2010 = vmatprep.subr.mxu0 0.0
  %2011 = vmatpush1.msra.mxu0 0.0
  %2012 = vmatprep.subr.mxu0 0.0
  %2013 = vmatpush1.msra.mxu0 0.0
  %2014 = vmatprep.subr.mxu0 0.0
  %2015 = vmatpush1.msra.mxu0 0.0
  %2016 = vmatprep.subr.mxu0 0.0
  %2017 = vmatpush1.msra.mxu0 0.0
  %2018 = vmatprep.subr.mxu0 0.0
  %2019 = vmatpush1.msra.mxu0 0.0
  %2020 = vmatprep.subr.mxu0 0.0
  %2021 = vmatpush1.msra.mxu0 0.0
  %2022 = vmatprep.subr.mxu0 0.0
  %2023 = vmatpush1.msra.mxu0 0.0
  %2024 = vmatprep.subr.mxu0 0.0
  %2025 = vmatpush1.msra.mxu0 0.0
  %2026 = vmatprep.subr.mxu0 0.0
  %2027 = vmatpush1.msra.mxu0 0.0
  %2028 = vmatprep.subr.mxu0 0.0
  %2029 = vmatpush1.msra.mxu0 0.0
  %2030 = vmatprep.subr.mxu0 0.0
  %2031 = vmatpush1.msra.mxu0 0.0
  %2032 = vmatprep.subr.mxu0 0.0
  %2033 = vmatpush1.msra.mxu0 0.0
  %2034 = vmatprep.subr.mxu0 0.0
  %2035 = vmatpush1.msra.mxu0 0.0
  %2036 = vmatprep.subr.mxu0 0.0
  %2037 = vmatpush1.msra.mxu0 0.0
  %2038 = vmatprep.subr.mxu0 0.0
  %2039 = vmatpush1.msra.mxu0 0.0
  %2040 = vmatprep.subr.mxu0 0.0
  %2041 = vmatpush1.msra.mxu0 0.0
  %2042 = vmatprep.subr.mxu0 0.0
  %2043 = vmatpush1.msra.mxu0 0.0
  %2044 = vmatprep.subr.mxu0 0.0
  %2045 = vmatpush1.msra.mxu0 0.0
  %2046 = vmatprep.subr.mxu0 0.0
  %2047 = vmatpush1.msra.mxu0 0.0
  %2048 = vmatprep.subr.mxu0 0.0
  %2049 = vmatpush1.msra.mxu0 0.0
  %2050 = vmatprep.subr.mxu0 0.0
  %2051 = vmatpush1.msra.mxu0 0.0
  %2052 = vmatprep.subr.mxu0 0.0
  %2053 = vmatpush1.msra.mxu0 0.0
  %2054 = vmatprep.subr.mxu0 0.0
  %2055 = vmatpush1.msra.mxu0 0.0
  %2056 = vmatprep.mubr.f32.mxu0 0.0
  %2057 = vmatmul.mubr.f32.gmra.mrb[0].mxu0 %v1975
  %v2058 = vpop.f32.mrb[0].mxu0
  %v2059 = vadd.f32 0.0, %v2058
  %v2060 = vpop.f32.mrb[0].mxu0
  %2061 = vmatprep.mubr.f32.mxu0 0.0
  %2062 = vmatmul.mubr.f32.gmra.mrb[0].mxu0 %v1978
  %v2063 = vpop.f32.mrb[0].mxu0
  %v2064 = vadd.f32 0.0, %v2063
  %v2065 = vpop.f32.mrb[0].mxu0
  %2066 = vmatprep.mubr.f32.mxu0 0.0
  %2067 = vmatmul.mubr.f32.gmra.mrb[0].mxu0 %v1981
  %v2068 = vpop.f32.mrb[0].mxu0
  %v2069 = vadd.f32 0.0, %v2068
  %v2070 = vpop.f32.mrb[0].mxu0
  %2071 = vmatprep.mubr.f32.mxu0 0.0
  %2072 = vmatmul.mubr.f32.gmra.mrb[0].mxu0 %v1984
  %v2073 = vpop.f32.mrb[0].mxu0
  %v2074 = vadd.f32 0.0, %v2073
  %v2075 = vpop.f32.mrb[0].mxu0
  %2076 = vmatprep.mubr.f32.mxu0 0.0
  %2077 = vmatmul.mubr.f32.gmra.mrb[0].mxu0 %v1987
  %v2078 = vpop.f32.mrb[0].mxu0
  %v2079 = vadd.f32 0.0, %v2078
  %v2080 = vpop.f32.mrb[0].mxu0
  %2081 = vmatprep.mubr.f32.mxu0 0.0
  %2082 = vmatmul.mubr.f32.gmra.mrb[0].mxu0 %v1990
  %v2083 = vpop.f32.mrb[0].mxu0
  %v2084 = vadd.f32 0.0, %v2083
  %v2085 = vpop.f32.mrb[0].mxu0
  %2086 = vdwg.mxu0
  %v2087 = vadd.f32 %v289, %v2059
  %v2088 = vadd.f32 %v290, %v2064
  %v2089 = vadd.f32 %v291, %v2069
  %v2090 = vadd.f32 %v292, %v2074
  %v2091 = vadd.f32 %v293, %v2079
  %v2092 = vadd.f32 %v294, %v2084
  %v2093 = vld [vmem:[%s9] sm:$0x1]
  %v2095 = vlaneseq
  %v2096 = vshrl.u32 %v2095, 7
  %v2097 = vsub.s32 0, %v2096
  %v2098 = vrot.slane %v2093, %v2097
  %v2100 = vadd.f32 %v2087, %v2098
  %v2101 = vadd.f32 %v2088, %v2098
  %v2102 = vadd.f32 %v2089, %v2098
  %v2103 = vadd.f32 %v2090, %v2098
  %v2104 = vadd.f32 %v2091, %v2098
  %v2105 = vadd.f32 %v2092, %v2098
  %v2106 = vld [vmem:[%s10] sm:$0x1]
  %v2107 = vld [vmem:[%s11] sm:$0x1]
  %v2108 = vsel %vm175, %v2100, 0.0
  %2109 = vadd.xlane.f32.xlu0 %v2108
  %v2110 = vpop.xlane.xlu0 %2109
  %v2111 = vsel %vm175, %v2101, 0.0
  %2112 = vadd.xlane.f32.xlu0 %v2111
  %v2113 = vpop.xlane.xlu0 %2112
  %v2114 = vsel %vm175, %v2102, 0.0
  %2115 = vadd.xlane.f32.xlu0 %v2114
  %v2116 = vpop.xlane.xlu0 %2115
  %v2117 = vsel %vm175, %v2103, 0.0
  %2118 = vadd.xlane.f32.xlu0 %v2117
  %v2119 = vpop.xlane.xlu0 %2118
  %v2120 = vsel %vm175, %v2104, 0.0
  %2121 = vadd.xlane.f32.xlu0 %v2120
  %v2122 = vpop.xlane.xlu0 %2121
  %v2123 = vsel %vm175, %v2105, 0.0
  %2124 = vadd.xlane.f32.xlu0 %v2123
  %v2125 = vpop.xlane.xlu0 %2124
  %v2126 = vmul.f32 %v2110, %v321
  %v2127 = vmul.f32 %v2113, %v321
  %v2128 = vmul.f32 %v2116, %v321
  %v2129 = vmul.f32 %v2119, %v321
  %v2130 = vmul.f32 %v2122, %v321
  %v2131 = vmul.f32 %v2125, %v321
  %v2132 = vsub.f32 %v2100, %v2126
  %v2133 = vsub.f32 %v2101, %v2127
  %v2134 = vsub.f32 %v2102, %v2128
  %v2135 = vsub.f32 %v2103, %v2129
  %v2136 = vsub.f32 %v2104, %v2130
  %v2137 = vsub.f32 %v2105, %v2131
  %v2138 = vmul.f32 %v2132, %v2132
  %v2139 = vmul.f32 %v2133, %v2133
  %v2140 = vmul.f32 %v2134, %v2134
  %v2141 = vmul.f32 %v2135, %v2135
  %v2142 = vmul.f32 %v2136, %v2136
  %v2143 = vmul.f32 %v2137, %v2137
  %v2144 = vsel %vm175, %v2138, 0.0
  %2145 = vadd.xlane.f32.xlu0 %v2144
  %v2146 = vpop.xlane.xlu0 %2145
  %v2147 = vsel %vm175, %v2139, 0.0
  %2148 = vadd.xlane.f32.xlu0 %v2147
  %v2149 = vpop.xlane.xlu0 %2148
  %v2150 = vsel %vm175, %v2140, 0.0
  %2151 = vadd.xlane.f32.xlu0 %v2150
  %v2152 = vpop.xlane.xlu0 %2151
  %v2153 = vsel %vm175, %v2141, 0.0
  %2154 = vadd.xlane.f32.xlu0 %v2153
  %v2155 = vpop.xlane.xlu0 %2154
  %v2156 = vsel %vm175, %v2142, 0.0
  %2157 = vadd.xlane.f32.xlu0 %v2156
  %v2158 = vpop.xlane.xlu0 %2157
  %v2159 = vsel %vm175, %v2143, 0.0
  %2160 = vadd.xlane.f32.xlu0 %v2159
  %v2161 = vpop.xlane.xlu0 %2160
  %v2162 = vmul.f32 %v2146, %v321
  %v2163 = vmul.f32 %v2149, %v321
  %v2164 = vmul.f32 %v2152, %v321
  %v2165 = vmul.f32 %v2155, %v321
  %v2166 = vmul.f32 %v2158, %v321
  %v2167 = vmul.f32 %v2161, %v321
  %v2168 = vadd.f32 %v2162, 1e-05
  %v2169 = vadd.f32 %v2163, 1e-05
  %v2170 = vadd.f32 %v2164, 1e-05
  %v2171 = vadd.f32 %v2165, 1e-05
  %v2172 = vadd.f32 %v2166, 1e-05
  %v2173 = vadd.f32 %v2167, 1e-05
  %v2174 = vrsqrt.pop %v2168
  %v2175 = vrsqrt.pop %v2169
  %v2176 = vrsqrt.pop %v2170
  %v2177 = vrsqrt.pop %v2171
  %v2178 = vrsqrt.pop %v2172
  %v2179 = vrsqrt.pop %v2173
  %v2180 = vmul.f32 %v2132, %v2174
  %v2181 = vmul.f32 %v2133, %v2175
  %v2182 = vmul.f32 %v2134, %v2176
  %v2183 = vmul.f32 %v2135, %v2177
  %v2184 = vmul.f32 %v2136, %v2178
  %v2185 = vmul.f32 %v2137, %v2179
  %v2187 = vlaneseq
  %v2188 = vshrl.u32 %v2187, 7
  %v2189 = vsub.s32 0, %v2188
  %v2190 = vrot.slane %v2106, %v2189
  %v2192 = vmul.f32 %v2180, %v2190
  %v2193 = vmul.f32 %v2181, %v2190
  %v2194 = vmul.f32 %v2182, %v2190
  %v2195 = vmul.f32 %v2183, %v2190
  %v2196 = vmul.f32 %v2184, %v2190
  %v2197 = vmul.f32 %v2185, %v2190
  %v2199 = vlaneseq
  %v2200 = vshrl.u32 %v2199, 7
  %v2201 = vsub.s32 0, %v2200
  %v2202 = vrot.slane %v2107, %v2201
  %v2204 = vadd.f32 %v2192, %v2202
  %v2205 = vadd.f32 %v2193, %v2202
  %v2206 = vadd.f32 %v2194, %v2202
  %v2207 = vadd.f32 %v2195, %v2202
  %v2208 = vadd.f32 %v2196, %v2202
  %v2209 = vadd.f32 %v2197, %v2202
  %v2210 = vld [vmem:[%s12] sm:$0xff]
  %v2211 = vld [vmem:[%s12 + $0x8] sm:$0xff]
  %v2212 = vld [vmem:[%s12 + $0x10] sm:$0xff]
  %v2213 = vld [vmem:[%s12 + $0x18] sm:$0xff]
  %v2214 = vld [vmem:[%s13] sm:$0x1]
  %v2216 = vlaneseq
  %v2217 = vshrl.u32 %v2216, 7
  %v2218 = vsub.s32 0, %v2217
  %v2219 = vrot.slane %v2214, %v2218
  %v2222 = vsel %vm175, %v2204, 0
  %v2225 = vsel %vm175, %v2205, 0
  %v2228 = vsel %vm175, %v2206, 0
  %v2231 = vsel %vm175, %v2207, 0
  %v2234 = vsel %vm175, %v2208, 0
  %v2237 = vsel %vm175, %v2209, 0
  %2239 = vmatprep.subr.mxu0 0.0
  %2240 = vmatpush1.msra.mxu0 %v2210
  %2241 = vmatprep.subr.mxu0 0.0
  %2242 = vmatpush1.msra.mxu0 %v2211
  %2243 = vmatprep.subr.mxu0 0.0
  %2244 = vmatpush1.msra.mxu0 %v2212
  %2245 = vmatprep.subr.mxu0 0.0
  %2246 = vmatpush1.msra.mxu0 %v2213
  %2247 = vmatprep.subr.mxu0 0.0
  %2248 = vmatpush1.msra.mxu0 0.0
  %2249 = vmatprep.subr.mxu0 0.0
  %2250 = vmatpush1.msra.mxu0 0.0
  %2251 = vmatprep.subr.mxu0 0.0
  %2252 = vmatpush1.msra.mxu0 0.0
  %2253 = vmatprep.subr.mxu0 0.0
  %2254 = vmatpush1.msra.mxu0 0.0
  %2255 = vmatprep.subr.mxu0 0.0
  %2256 = vmatpush1.msra.mxu0 0.0
  %2257 = vmatprep.subr.mxu0 0.0
  %2258 = vmatpush1.msra.mxu0 0.0
  %2259 = vmatprep.subr.mxu0 0.0
  %2260 = vmatpush1.msra.mxu0 0.0
  %2261 = vmatprep.subr.mxu0 0.0
  %2262 = vmatpush1.msra.mxu0 0.0
  %2263 = vmatprep.subr.mxu0 0.0
  %2264 = vmatpush1.msra.mxu0 0.0
  %2265 = vmatprep.subr.mxu0 0.0
  %2266 = vmatpush1.msra.mxu0 0.0
  %2267 = vmatprep.subr.mxu0 0.0
  %2268 = vmatpush1.msra.mxu0 0.0
  %2269 = vmatprep.subr.mxu0 0.0
  %2270 = vmatpush1.msra.mxu0 0.0
  %2271 = vmatprep.subr.mxu0 0.0
  %2272 = vmatpush1.msra.mxu0 0.0
  %2273 = vmatprep.subr.mxu0 0.0
  %2274 = vmatpush1.msra.mxu0 0.0
  %2275 = vmatprep.subr.mxu0 0.0
  %2276 = vmatpush1.msra.mxu0 0.0
  %2277 = vmatprep.subr.mxu0 0.0
  %2278 = vmatpush1.msra.mxu0 0.0
  %2279 = vmatprep.subr.mxu0 0.0
  %2280 = vmatpush1.msra.mxu0 0.0
  %2281 = vmatprep.subr.mxu0 0.0
  %2282 = vmatpush1.msra.mxu0 0.0
  %2283 = vmatprep.subr.mxu0 0.0
  %2284 = vmatpush1.msra.mxu0 0.0
  %2285 = vmatprep.subr.mxu0 0.0
  %2286 = vmatpush1.msra.mxu0 0.0
  %2287 = vmatprep.subr.mxu0 0.0
  %2288 = vmatpush1.msra.mxu0 0.0
  %2289 = vmatprep.subr.mxu0 0.0
  %2290 = vmatpush1.msra.mxu0 0.0
  %2291 = vmatprep.subr.mxu0 0.0
  %2292 = vmatpush1.msra.mxu0 0.0
  %2293 = vmatprep.subr.mxu0 0.0
  %2294 = vmatpush1.msra.mxu0 0.0
  %2295 = vmatprep.subr.mxu0 0.0
  %2296 = vmatpush1.msra.mxu0 0.0
  %2297 = vmatprep.subr.mxu0 0.0
  %2298 = vmatpush1.msra.mxu0 0.0
  %2299 = vmatprep.subr.mxu0 0.0
  %2300 = vmatpush1.msra.mxu0 0.0
  %2301 = vmatprep.subr.mxu0 0.0
  %2302 = vmatpush1.msra.mxu0 0.0
  %2303 = vmatprep.mubr.f32.mxu0 0.0
  %2304 = vmatmul.mubr.f32.gmra.mrb[0].mxu0 %v2222
  %v2305 = vpop.f32.mrb[0].mxu0
  %v2306 = vadd.f32 %v2219, %v2305
  %v2307 = vpop.f32.mrb[0].mxu0
  %2308 = vmatprep.mubr.f32.mxu0 0.0
  %2309 = vmatmul.mubr.f32.gmra.mrb[0].mxu0 %v2225
  %v2310 = vpop.f32.mrb[0].mxu0
  %v2311 = vadd.f32 %v2219, %v2310
  %v2312 = vpop.f32.mrb[0].mxu0
  %2313 = vmatprep.mubr.f32.mxu0 0.0
  %2314 = vmatmul.mubr.f32.gmra.mrb[0].mxu0 %v2228
  %v2315 = vpop.f32.mrb[0].mxu0
  %v2316 = vadd.f32 %v2219, %v2315
  %v2317 = vpop.f32.mrb[0].mxu0
  %2318 = vmatprep.mubr.f32.mxu0 0.0
  %2319 = vmatmul.mubr.f32.gmra.mrb[0].mxu0 %v2231
  %v2320 = vpop.f32.mrb[0].mxu0
  %v2321 = vadd.f32 %v2219, %v2320
  %v2322 = vpop.f32.mrb[0].mxu0
  %2323 = vmatprep.mubr.f32.mxu0 0.0
  %2324 = vmatmul.mubr.f32.gmra.mrb[0].mxu0 %v2234
  %v2325 = vpop.f32.mrb[0].mxu0
  %v2326 = vadd.f32 %v2219, %v2325
  %v2327 = vpop.f32.mrb[0].mxu0
  %2328 = vmatprep.mubr.f32.mxu0 0.0
  %2329 = vmatmul.mubr.f32.gmra.mrb[0].mxu0 %v2237
  %v2330 = vpop.f32.mrb[0].mxu0
  %v2331 = vadd.f32 %v2219, %v2330
  %v2332 = vpop.f32.mrb[0].mxu0
  %2333 = vdwg.mxu0
  %v2334 = vmul.f32 %v2306, 0.5
  %v2335 = vmul.f32 %v2311, 0.5
  %v2336 = vmul.f32 %v2316, 0.5
  %v2337 = vmul.f32 %v2321, 0.5
  %v2338 = vmul.f32 %v2326, 0.5
  %v2339 = vmul.f32 %v2331, 0.5
  %v2340 = vmul.f32 %v2306, 0.70710677
  %v2341 = vmul.f32 %v2311, 0.70710677
  %v2342 = vmul.f32 %v2316, 0.70710677
  %v2343 = vmul.f32 %v2321, 0.70710677
  %v2344 = vmul.f32 %v2326, 0.70710677
  %v2345 = vmul.f32 %v2331, 0.70710677
  %v2346 = verf.f32.pop %v2340
  %v2347 = verf.f32.pop %v2341
  %v2348 = verf.f32.pop %v2342
  %v2349 = verf.f32.pop %v2343
  %v2350 = verf.f32.pop %v2344
  %v2351 = verf.f32.pop %v2345
  %v2352 = vadd.f32 %v2346, 1.0
  %v2353 = vadd.f32 %v2347, 1.0
  %v2354 = vadd.f32 %v2348, 1.0
  %v2355 = vadd.f32 %v2349, 1.0
  %v2356 = vadd.f32 %v2350, 1.0
  %v2357 = vadd.f32 %v2351, 1.0
  %v2358 = vmul.f32 %v2334, %v2352
  %v2359 = vmul.f32 %v2335, %v2353
  %v2360 = vmul.f32 %v2336, %v2354
  %v2361 = vmul.f32 %v2337, %v2355
  %v2362 = vmul.f32 %v2338, %v2356
  %v2363 = vmul.f32 %v2339, %v2357
  %v2364 = vld [vmem:[%s14] sm:$0xff]
  %v2365 = vld [vmem:[%s14 + $0x8] sm:$0xff]
  %v2366 = vld [vmem:[%s14 + $0x10] sm:$0xff]
  %v2367 = vld [vmem:[%s14 + $0x18] sm:$0xff]
  %v2368 = vld [vmem:[%s14 + $0x20] sm:$0xff]
  %v2369 = vld [vmem:[%s14 + $0x28] sm:$0xff]
  %v2370 = vld [vmem:[%s14 + $0x30] sm:$0xff]
  %v2371 = vld [vmem:[%s14 + $0x38] sm:$0xff]
  %v2372 = vld [vmem:[%s14 + $0x40] sm:$0xff]
  %v2373 = vld [vmem:[%s14 + $0x48] sm:$0xff]
  %v2374 = vld [vmem:[%s14 + $0x50] sm:$0xff]
  %v2375 = vld [vmem:[%s14 + $0x58] sm:$0xff]
  %v2376 = vld [vmem:[%s14 + $0x60] sm:$0xff]
  %v2377 = vld [vmem:[%s14 + $0x68] sm:$0xff]
  %v2378 = vld [vmem:[%s14 + $0x70] sm:$0xff]
  %v2379 = vld [vmem:[%s14 + $0x78] sm:$0xff]
  %v2380 = vld [vmem:[%s15] sm:$0x1]
  %v2382 = vlaneseq
  %v2383 = vshrl.u32 %v2382, 7
  %v2384 = vsub.s32 0, %v2383
  %v2385 = vrot.slane %v2380, %v2384
  %2387 = vmatprep.subr.mxu0 0.0
  %2388 = vmatpush1.msra.mxu0 %v2364
  %2389 = vmatprep.subr.mxu0 0.0
  %2390 = vmatpush1.msra.mxu0 %v2365
  %2391 = vmatprep.subr.mxu0 0.0
  %2392 = vmatpush1.msra.mxu0 %v2366
  %2393 = vmatprep.subr.mxu0 0.0
  %2394 = vmatpush1.msra.mxu0 %v2367
  %2395 = vmatprep.subr.mxu0 0.0
  %2396 = vmatpush1.msra.mxu0 %v2368
  %2397 = vmatprep.subr.mxu0 0.0
  %2398 = vmatpush1.msra.mxu0 %v2369
  %2399 = vmatprep.subr.mxu0 0.0
  %2400 = vmatpush1.msra.mxu0 %v2370
  %2401 = vmatprep.subr.mxu0 0.0
  %2402 = vmatpush1.msra.mxu0 %v2371
  %2403 = vmatprep.subr.mxu0 0.0
  %2404 = vmatpush1.msra.mxu0 %v2372
  %2405 = vmatprep.subr.mxu0 0.0
  %2406 = vmatpush1.msra.mxu0 %v2373
  %2407 = vmatprep.subr.mxu0 0.0
  %2408 = vmatpush1.msra.mxu0 %v2374
  %2409 = vmatprep.subr.mxu0 0.0
  %2410 = vmatpush1.msra.mxu0 %v2375
  %2411 = vmatprep.subr.mxu0 0.0
  %2412 = vmatpush1.msra.mxu0 %v2376
  %2413 = vmatprep.subr.mxu0 0.0
  %2414 = vmatpush1.msra.mxu0 %v2377
  %2415 = vmatprep.subr.mxu0 0.0
  %2416 = vmatpush1.msra.mxu0 %v2378
  %2417 = vmatprep.subr.mxu0 0.0
  %2418 = vmatpush1.msra.mxu0 %v2379
  %2419 = vmatprep.subr.mxu0 0.0
  %2420 = vmatpush1.msra.mxu0 0.0
  %2421 = vmatprep.subr.mxu0 0.0
  %2422 = vmatpush1.msra.mxu0 0.0
  %2423 = vmatprep.subr.mxu0 0.0
  %2424 = vmatpush1.msra.mxu0 0.0
  %2425 = vmatprep.subr.mxu0 0.0
  %2426 = vmatpush1.msra.mxu0 0.0
  %2427 = vmatprep.subr.mxu0 0.0
  %2428 = vmatpush1.msra.mxu0 0.0
  %2429 = vmatprep.subr.mxu0 0.0
  %2430 = vmatpush1.msra.mxu0 0.0
  %2431 = vmatprep.subr.mxu0 0.0
  %2432 = vmatpush1.msra.mxu0 0.0
  %2433 = vmatprep.subr.mxu0 0.0
  %2434 = vmatpush1.msra.mxu0 0.0
  %2435 = vmatprep.subr.mxu0 0.0
  %2436 = vmatpush1.msra.mxu0 0.0
  %2437 = vmatprep.subr.mxu0 0.0
  %2438 = vmatpush1.msra.mxu0 0.0
  %2439 = vmatprep.subr.mxu0 0.0
  %2440 = vmatpush1.msra.mxu0 0.0
  %2441 = vmatprep.subr.mxu0 0.0
  %2442 = vmatpush1.msra.mxu0 0.0
  %2443 = vmatprep.subr.mxu0 0.0
  %2444 = vmatpush1.msra.mxu0 0.0
  %2445 = vmatprep.subr.mxu0 0.0
  %2446 = vmatpush1.msra.mxu0 0.0
  %2447 = vmatprep.subr.mxu0 0.0
  %2448 = vmatpush1.msra.mxu0 0.0
  %2449 = vmatprep.subr.mxu0 0.0
  %2450 = vmatpush1.msra.mxu0 0.0
  %2451 = vmatprep.mubr.f32.mxu0 0.0
  %2452 = vmatmul.mubr.f32.gmra.mrb[0].mxu0 %v2358
  %v2453 = vpop.f32.mrb[0].mxu0
  %v2454 = vadd.f32 %v2385, %v2453
  %v2455 = vpop.f32.mrb[0].mxu0
  %2456 = vmatprep.mubr.f32.mxu0 0.0
  %2457 = vmatmul.mubr.f32.gmra.mrb[0].mxu0 %v2359
  %v2458 = vpop.f32.mrb[0].mxu0
  %v2459 = vadd.f32 %v2385, %v2458
  %v2460 = vpop.f32.mrb[0].mxu0
  %2461 = vmatprep.mubr.f32.mxu0 0.0
  %2462 = vmatmul.mubr.f32.gmra.mrb[0].mxu0 %v2360
  %v2463 = vpop.f32.mrb[0].mxu0
  %v2464 = vadd.f32 %v2385, %v2463
  %v2465 = vpop.f32.mrb[0].mxu0
  %2466 = vmatprep.mubr.f32.mxu0 0.0
  %2467 = vmatmul.mubr.f32.gmra.mrb[0].mxu0 %v2361
  %v2468 = vpop.f32.mrb[0].mxu0
  %v2469 = vadd.f32 %v2385, %v2468
  %v2470 = vpop.f32.mrb[0].mxu0
  %2471 = vmatprep.mubr.f32.mxu0 0.0
  %2472 = vmatmul.mubr.f32.gmra.mrb[0].mxu0 %v2362
  %v2473 = vpop.f32.mrb[0].mxu0
  %v2474 = vadd.f32 %v2385, %v2473
  %v2475 = vpop.f32.mrb[0].mxu0
  %2476 = vmatprep.mubr.f32.mxu0 0.0
  %2477 = vmatmul.mubr.f32.gmra.mrb[0].mxu0 %v2363
  %v2478 = vpop.f32.mrb[0].mxu0
  %v2479 = vadd.f32 %v2385, %v2478
  %v2480 = vpop.f32.mrb[0].mxu0
  %2481 = vdwg.mxu0
  %v2482 = vadd.f32 %v2100, %v2454
  %v2483 = vadd.f32 %v2101, %v2459
  %v2484 = vadd.f32 %v2102, %v2464
  %v2485 = vadd.f32 %v2103, %v2469
  %v2486 = vadd.f32 %v2104, %v2474
  %v2487 = vadd.f32 %v2105, %v2479
  %s2488 = scalar_lea.vmem %s5, 1
  %v2489 = vld [vmem:[%s2488] sm:$0x1]
  %s2490 = scalar_lea.vmem %s6, 1
  %v2491 = vld [vmem:[%s2490] sm:$0x1]
  %v2492 = vsel %vm175, %v2482, 0.0
  %2493 = vadd.xlane.f32.xlu0 %v2492
  %v2494 = vpop.xlane.xlu0 %2493
  %v2495 = vsel %vm175, %v2483, 0.0
  %2496 = vadd.xlane.f32.xlu0 %v2495
  %v2497 = vpop.xlane.xlu0 %2496
  %v2498 = vsel %vm175, %v2484, 0.0
  %2499 = vadd.xlane.f32.xlu0 %v2498
  %v2500 = vpop.xlane.xlu0 %2499
  %v2501 = vsel %vm175, %v2485, 0.0
  %2502 = vadd.xlane.f32.xlu0 %v2501
  %v2503 = vpop.xlane.xlu0 %2502
  %v2504 = vsel %vm175, %v2486, 0.0
  %2505 = vadd.xlane.f32.xlu0 %v2504
  %v2506 = vpop.xlane.xlu0 %2505
  %v2507 = vsel %vm175, %v2487, 0.0
  %2508 = vadd.xlane.f32.xlu0 %v2507
  %v2509 = vpop.xlane.xlu0 %2508
  %v2510 = vmul.f32 %v2494, %v321
  %v2511 = vmul.f32 %v2497, %v321
  %v2512 = vmul.f32 %v2500, %v321
  %v2513 = vmul.f32 %v2503, %v321
  %v2514 = vmul.f32 %v2506, %v321
  %v2515 = vmul.f32 %v2509, %v321
  %v2516 = vsub.f32 %v2482, %v2510
  %v2517 = vsub.f32 %v2483, %v2511
  %v2518 = vsub.f32 %v2484, %v2512
  %v2519 = vsub.f32 %v2485, %v2513
  %v2520 = vsub.f32 %v2486, %v2514
  %v2521 = vsub.f32 %v2487, %v2515
  %v2522 = vmul.f32 %v2516, %v2516
  %v2523 = vmul.f32 %v2517, %v2517
  %v2524 = vmul.f32 %v2518, %v2518
  %v2525 = vmul.f32 %v2519, %v2519
  %v2526 = vmul.f32 %v2520, %v2520
  %v2527 = vmul.f32 %v2521, %v2521
  %v2528 = vsel %vm175, %v2522, 0.0
  %2529 = vadd.xlane.f32.xlu0 %v2528
  %v2530 = vpop.xlane.xlu0 %2529
  %v2531 = vsel %vm175, %v2523, 0.0
  %2532 = vadd.xlane.f32.xlu0 %v2531
  %v2533 = vpop.xlane.xlu0 %2532
  %v2534 = vsel %vm175, %v2524, 0.0
  %2535 = vadd.xlane.f32.xlu0 %v2534
  %v2536 = vpop.xlane.xlu0 %2535
  %v2537 = vsel %vm175, %v2525, 0.0
  %2538 = vadd.xlane.f32.xlu0 %v2537
  %v2539 = vpop.xlane.xlu0 %2538
  %v2540 = vsel %vm175, %v2526, 0.0
  %2541 = vadd.xlane.f32.xlu0 %v2540
  %v2542 = vpop.xlane.xlu0 %2541
  %v2543 = vsel %vm175, %v2527, 0.0
  %2544 = vadd.xlane.f32.xlu0 %v2543
  %v2545 = vpop.xlane.xlu0 %2544
  %v2546 = vmul.f32 %v2530, %v321
  %v2547 = vmul.f32 %v2533, %v321
  %v2548 = vmul.f32 %v2536, %v321
  %v2549 = vmul.f32 %v2539, %v321
  %v2550 = vmul.f32 %v2542, %v321
  %v2551 = vmul.f32 %v2545, %v321
  %v2552 = vadd.f32 %v2546, 1e-05
  %v2553 = vadd.f32 %v2547, 1e-05
  %v2554 = vadd.f32 %v2548, 1e-05
  %v2555 = vadd.f32 %v2549, 1e-05
  %v2556 = vadd.f32 %v2550, 1e-05
  %v2557 = vadd.f32 %v2551, 1e-05
  %v2558 = vrsqrt.pop %v2552
  %v2559 = vrsqrt.pop %v2553
  %v2560 = vrsqrt.pop %v2554
  %v2561 = vrsqrt.pop %v2555
  %v2562 = vrsqrt.pop %v2556
  %v2563 = vrsqrt.pop %v2557
  %v2564 = vmul.f32 %v2516, %v2558
  %v2565 = vmul.f32 %v2517, %v2559
  %v2566 = vmul.f32 %v2518, %v2560
  %v2567 = vmul.f32 %v2519, %v2561
  %v2568 = vmul.f32 %v2520, %v2562
  %v2569 = vmul.f32 %v2521, %v2563
  %v2571 = vlaneseq
  %v2572 = vshrl.u32 %v2571, 7
  %v2573 = vsub.s32 0, %v2572
  %v2574 = vrot.slane %v2489, %v2573
  %v2576 = vmul.f32 %v2564, %v2574
  %v2577 = vmul.f32 %v2565, %v2574
  %v2578 = vmul.f32 %v2566, %v2574
  %v2579 = vmul.f32 %v2567, %v2574
  %v2580 = vmul.f32 %v2568, %v2574
  %v2581 = vmul.f32 %v2569, %v2574
  %v2583 = vlaneseq
  %v2584 = vshrl.u32 %v2583, 7
  %v2585 = vsub.s32 0, %v2584
  %v2586 = vrot.slane %v2491, %v2585
  %v2588 = vadd.f32 %v2576, %v2586
  %v2589 = vadd.f32 %v2577, %v2586
  %v2590 = vadd.f32 %v2578, %v2586
  %v2591 = vadd.f32 %v2579, %v2586
  %v2592 = vadd.f32 %v2580, %v2586
  %v2593 = vadd.f32 %v2581, %v2586
  %s2594 = scalar_lea.vmem %s7, 32
  %v2595 = vld [vmem:[%s2594] sm:$0xff]
  %v2596 = vld [vmem:[%s2594 + $0x8] sm:$0xff]
  %v2597 = vld [vmem:[%s2594 + $0x10] sm:$0xff]
  %v2598 = vld [vmem:[%s2594 + $0x18] sm:$0xff]
  %v2600 = vsel %vm175, %v2588, 0
  %v2603 = vsel %vm175, %v2589, 0
  %v2606 = vsel %vm175, %v2590, 0
  %v2609 = vsel %vm175, %v2591, 0
  %v2612 = vsel %vm175, %v2592, 0
  %v2615 = vsel %vm175, %v2593, 0
  %2617 = vmatprep.subr.mxu0 0.0
  %2618 = vmatpush1.msra.mxu0 %v2595
  %2619 = vmatprep.subr.mxu0 0.0
  %2620 = vmatpush1.msra.mxu0 %v2596
  %2621 = vmatprep.subr.mxu0 0.0
  %2622 = vmatpush1.msra.mxu0 %v2597
  %2623 = vmatprep.subr.mxu0 0.0
  %2624 = vmatpush1.msra.mxu0 %v2598
  %2625 = vmatprep.subr.mxu0 0.0
  %2626 = vmatpush1.msra.mxu0 0.0
  %2627 = vmatprep.subr.mxu0 0.0
  %2628 = vmatpush1.msra.mxu0 0.0
  %2629 = vmatprep.subr.mxu0 0.0
  %2630 = vmatpush1.msra.mxu0 0.0
  %2631 = vmatprep.subr.mxu0 0.0
  %2632 = vmatpush1.msra.mxu0 0.0
  %2633 = vmatprep.subr.mxu0 0.0
  %2634 = vmatpush1.msra.mxu0 0.0
  %2635 = vmatprep.subr.mxu0 0.0
  %2636 = vmatpush1.msra.mxu0 0.0
  %2637 = vmatprep.subr.mxu0 0.0
  %2638 = vmatpush1.msra.mxu0 0.0
  %2639 = vmatprep.subr.mxu0 0.0
  %2640 = vmatpush1.msra.mxu0 0.0
  %2641 = vmatprep.subr.mxu0 0.0
  %2642 = vmatpush1.msra.mxu0 0.0
  %2643 = vmatprep.subr.mxu0 0.0
  %2644 = vmatpush1.msra.mxu0 0.0
  %2645 = vmatprep.subr.mxu0 0.0
  %2646 = vmatpush1.msra.mxu0 0.0
  %2647 = vmatprep.subr.mxu0 0.0
  %2648 = vmatpush1.msra.mxu0 0.0
  %2649 = vmatprep.subr.mxu0 0.0
  %2650 = vmatpush1.msra.mxu0 0.0
  %2651 = vmatprep.subr.mxu0 0.0
  %2652 = vmatpush1.msra.mxu0 0.0
  %2653 = vmatprep.subr.mxu0 0.0
  %2654 = vmatpush1.msra.mxu0 0.0
  %2655 = vmatprep.subr.mxu0 0.0
  %2656 = vmatpush1.msra.mxu0 0.0
  %2657 = vmatprep.subr.mxu0 0.0
  %2658 = vmatpush1.msra.mxu0 0.0
  %2659 = vmatprep.subr.mxu0 0.0
  %2660 = vmatpush1.msra.mxu0 0.0
  %2661 = vmatprep.subr.mxu0 0.0
  %2662 = vmatpush1.msra.mxu0 0.0
  %2663 = vmatprep.subr.mxu0 0.0
  %2664 = vmatpush1.msra.mxu0 0.0
  %2665 = vmatprep.subr.mxu0 0.0
  %2666 = vmatpush1.msra.mxu0 0.0
  %2667 = vmatprep.subr.mxu0 0.0
  %2668 = vmatpush1.msra.mxu0 0.0
  %2669 = vmatprep.subr.mxu0 0.0
  %2670 = vmatpush1.msra.mxu0 0.0
  %2671 = vmatprep.subr.mxu0 0.0
  %2672 = vmatpush1.msra.mxu0 0.0
  %2673 = vmatprep.subr.mxu0 0.0
  %2674 = vmatpush1.msra.mxu0 0.0
  %2675 = vmatprep.subr.mxu0 0.0
  %2676 = vmatpush1.msra.mxu0 0.0
  %2677 = vmatprep.subr.mxu0 0.0
  %2678 = vmatpush1.msra.mxu0 0.0
  %2679 = vmatprep.subr.mxu0 0.0
  %2680 = vmatpush1.msra.mxu0 0.0
  %2681 = vmatprep.mubr.f32.mxu0 0.0
  %2682 = vmatmul.mubr.f32.gmra.mrb[0].mxu0 %v2600
  %v2683 = vpop.f32.mrb[0].mxu0
  %v2684 = vadd.f32 0.0, %v2683
  %v2685 = vpop.f32.mrb[0].mxu0
  %2686 = vmatprep.mubr.f32.mxu0 0.0
  %2687 = vmatmul.mubr.f32.gmra.mrb[0].mxu0 %v2603
  %v2688 = vpop.f32.mrb[0].mxu0
  %v2689 = vadd.f32 0.0, %v2688
  %v2690 = vpop.f32.mrb[0].mxu0
  %2691 = vmatprep.mubr.f32.mxu0 0.0
  %2692 = vmatmul.mubr.f32.gmra.mrb[0].mxu0 %v2606
  %v2693 = vpop.f32.mrb[0].mxu0
  %v2694 = vadd.f32 0.0, %v2693
  %v2695 = vpop.f32.mrb[0].mxu0
  %2696 = vmatprep.mubr.f32.mxu0 0.0
  %2697 = vmatmul.mubr.f32.gmra.mrb[0].mxu0 %v2609
  %v2698 = vpop.f32.mrb[0].mxu0
  %v2699 = vadd.f32 0.0, %v2698
  %v2700 = vpop.f32.mrb[0].mxu0
  %2701 = vmatprep.mubr.f32.mxu0 0.0
  %2702 = vmatmul.mubr.f32.gmra.mrb[0].mxu0 %v2612
  %v2703 = vpop.f32.mrb[0].mxu0
  %v2704 = vadd.f32 0.0, %v2703
  %v2705 = vpop.f32.mrb[0].mxu0
  %2706 = vmatprep.mubr.f32.mxu0 0.0
  %2707 = vmatmul.mubr.f32.gmra.mrb[0].mxu0 %v2615
  %v2708 = vpop.f32.mrb[0].mxu0
  %v2709 = vadd.f32 0.0, %v2708
  %v2710 = vpop.f32.mrb[0].mxu0
  %2711 = vdwg.mxu0
  %2718 = vrot.lane.b32.xlu0 %v2684, 96
  %v2719 = vpop.permute.xlu0 %2718
  %2720 = vrot.lane.b32.xlu0 %v2689, 96
  %v2721 = vpop.permute.xlu0 %2720
  %2722 = vrot.lane.b32.xlu0 %v2694, 96
  %v2723 = vpop.permute.xlu0 %2722
  %2724 = vrot.lane.b32.xlu0 %v2699, 96
  %v2725 = vpop.permute.xlu0 %2724
  %2726 = vrot.lane.b32.xlu0 %v2704, 96
  %v2727 = vpop.permute.xlu0 %2726
  %2728 = vrot.lane.b32.xlu0 %v2709, 96
  %v2729 = vpop.permute.xlu0 %2728
  %v2730 = vsel %vm541, %v2684, 0
  %v2732 = vsel %vm541, %v2689, 0
  %v2734 = vsel %vm541, %v2694, 0
  %v2736 = vsel %vm541, %v2699, 0
  %v2738 = vsel %vm541, %v2704, 0
  %v2740 = vsel %vm541, %v2709, 0
  %v2742 = vsel %vm541, %v2719, 0
  %v2744 = vsel %vm541, %v2721, 0
  %v2746 = vsel %vm541, %v2723, 0
  %v2748 = vsel %vm541, %v2725, 0
  %v2750 = vsel %vm541, %v2727, 0
  %v2752 = vsel %vm541, %v2729, 0
  %2754 = vmatprep.subr.mxu0 0.0
  %2755 = vmatpush1.xpose.msra.mxu0 %v2742
  %2756 = vmatprep.subr.mxu0 0.0
  %2757 = vmatpush1.xpose.msra.mxu0 %v2744
  %2758 = vmatprep.subr.mxu0 0.0
  %2759 = vmatpush1.xpose.msra.mxu0 %v2746
  %2760 = vmatprep.subr.mxu0 0.0
  %2761 = vmatpush1.xpose.msra.mxu0 %v2748
  %2762 = vmatprep.subr.mxu0 0.0
  %2763 = vmatpush1.xpose.msra.mxu0 %v2750
  %2764 = vmatprep.subr.mxu0 0.0
  %2765 = vmatpush1.xpose.msra.mxu0 %v2752
  %2766 = vmatprep.subr.mxu0 0.0
  %2767 = vmatpush1.xpose.msra.mxu0 0.0
  %2768 = vmatprep.subr.mxu0 0.0
  %2769 = vmatpush1.xpose.msra.mxu0 0.0
  %2770 = vmatprep.subr.mxu0 0.0
  %2771 = vmatpush1.xpose.msra.mxu0 0.0
  %2772 = vmatprep.subr.mxu0 0.0
  %2773 = vmatpush1.xpose.msra.mxu0 0.0
  %2774 = vmatprep.subr.mxu0 0.0
  %2775 = vmatpush1.xpose.msra.mxu0 0.0
  %2776 = vmatprep.subr.mxu0 0.0
  %2777 = vmatpush1.xpose.msra.mxu0 0.0
  %2778 = vmatprep.subr.mxu0 0.0
  %2779 = vmatpush1.xpose.msra.mxu0 0.0
  %2780 = vmatprep.subr.mxu0 0.0
  %2781 = vmatpush1.xpose.msra.mxu0 0.0
  %2782 = vmatprep.subr.mxu0 0.0
  %2783 = vmatpush1.xpose.msra.mxu0 0.0
  %2784 = vmatprep.subr.mxu0 0.0
  %2785 = vmatpush1.xpose.msra.mxu0 0.0
  %2786 = vmatprep.subr.mxu0 0.0
  %2787 = vmatpush1.xpose.msra.mxu0 0.0
  %2788 = vmatprep.subr.mxu0 0.0
  %2789 = vmatpush1.xpose.msra.mxu0 0.0
  %2790 = vmatprep.subr.mxu0 0.0
  %2791 = vmatpush1.xpose.msra.mxu0 0.0
  %2792 = vmatprep.subr.mxu0 0.0
  %2793 = vmatpush1.xpose.msra.mxu0 0.0
  %2794 = vmatprep.subr.mxu0 0.0
  %2795 = vmatpush1.xpose.msra.mxu0 0.0
  %2796 = vmatprep.subr.mxu0 0.0
  %2797 = vmatpush1.xpose.msra.mxu0 0.0
  %2798 = vmatprep.subr.mxu0 0.0
  %2799 = vmatpush1.xpose.msra.mxu0 0.0
  %2800 = vmatprep.subr.mxu0 0.0
  %2801 = vmatpush1.xpose.msra.mxu0 0.0
  %2802 = vmatprep.subr.mxu0 0.0
  %2803 = vmatpush1.xpose.msra.mxu0 0.0
  %2804 = vmatprep.subr.mxu0 0.0
  %2805 = vmatpush1.xpose.msra.mxu0 0.0
  %2806 = vmatprep.subr.mxu0 0.0
  %2807 = vmatpush1.xpose.msra.mxu0 0.0
  %2808 = vmatprep.subr.mxu0 0.0
  %2809 = vmatpush1.xpose.msra.mxu0 0.0
  %2810 = vmatprep.subr.mxu0 0.0
  %2811 = vmatpush1.xpose.msra.mxu0 0.0
  %2812 = vmatprep.subr.mxu0 0.0
  %2813 = vmatpush1.xpose.msra.mxu0 0.0
  %2814 = vmatprep.subr.mxu0 0.0
  %2815 = vmatpush1.xpose.msra.mxu0 0.0
  %2816 = vmatprep.subr.mxu0 0.0
  %2817 = vmatpush1.xpose.msra.mxu0 0.0
  %2818 = vmatprep.mubr.f32.mxu0 0.0
  %2819 = vmatmul.mubr.f32.gmra.mrb[0].mxu0 %v2730
  %v2820 = vpop.f32.mrb[0].mxu0
  %v2821 = vadd.f32 0.0, %v2820
  %v2822 = vpop.f32.mrb[0].mxu0
  %2823 = vmatprep.mubr.f32.mxu0 0.0
  %2824 = vmatmul.mubr.f32.gmra.mrb[0].mxu0 %v2732
  %v2825 = vpop.f32.mrb[0].mxu0
  %v2826 = vadd.f32 0.0, %v2825
  %v2827 = vpop.f32.mrb[0].mxu0
  %2828 = vmatprep.mubr.f32.mxu0 0.0
  %2829 = vmatmul.mubr.f32.gmra.mrb[0].mxu0 %v2734
  %v2830 = vpop.f32.mrb[0].mxu0
  %v2831 = vadd.f32 0.0, %v2830
  %v2832 = vpop.f32.mrb[0].mxu0
  %2833 = vmatprep.mubr.f32.mxu0 0.0
  %2834 = vmatmul.mubr.f32.gmra.mrb[0].mxu0 %v2736
  %v2835 = vpop.f32.mrb[0].mxu0
  %v2836 = vadd.f32 0.0, %v2835
  %v2837 = vpop.f32.mrb[0].mxu0
  %2838 = vmatprep.mubr.f32.mxu0 0.0
  %2839 = vmatmul.mubr.f32.gmra.mrb[0].mxu0 %v2738
  %v2840 = vpop.f32.mrb[0].mxu0
  %v2841 = vadd.f32 0.0, %v2840
  %v2842 = vpop.f32.mrb[0].mxu0
  %2843 = vmatprep.mubr.f32.mxu0 0.0
  %2844 = vmatmul.mubr.f32.gmra.mrb[0].mxu0 %v2740
  %v2845 = vpop.f32.mrb[0].mxu0
  %v2846 = vadd.f32 0.0, %v2845
  %v2847 = vpop.f32.mrb[0].mxu0
  %2848 = vdwg.mxu0
  %vm2849 = vcmask 385024
  %2850 = vst.msk [vmem:[%s17] sm:$0x1] %vm2849, %v2821
  %2851 = vst.msk [vmem:[%s17 + $0x4] sm:$0x1] %vm2849, %v2836
  %v2852 = vadd.f32 %v2821, %v295
  %v2853 = vadd.f32 %v2826, %v296
  %v2854 = vadd.f32 %v2831, %v297
  %v2855 = vadd.f32 %v2836, %v298
  %v2856 = vadd.f32 %v2841, %v299
  %v2857 = vadd.f32 %v2846, %v300
  %v2858 = vsel %vm65, %v2852, -inf
  %2859 = vmax.xlane.f32.xlu0 %v2858
  %v2860 = vpop.xlane.xlu0 %2859
  %v2861 = vsel %vm65, %v2853, -inf
  %2862 = vmax.xlane.f32.xlu0 %v2861
  %v2863 = vpop.xlane.xlu0 %2862
  %v2864 = vsel %vm65, %v2854, -inf
  %2865 = vmax.xlane.f32.xlu0 %v2864
  %v2866 = vpop.xlane.xlu0 %2865
  %v2867 = vsel %vm65, %v2855, -inf
  %2868 = vmax.xlane.f32.xlu0 %v2867
  %v2869 = vpop.xlane.xlu0 %2868
  %v2870 = vsel %vm65, %v2856, -inf
  %2871 = vmax.xlane.f32.xlu0 %v2870
  %v2872 = vpop.xlane.xlu0 %2871
  %v2873 = vsel %vm65, %v2857, -inf
  %2874 = vmax.xlane.f32.xlu0 %v2873
  %v2875 = vpop.xlane.xlu0 %2874
  %v2876 = vsub.f32 %v2852, %v2860
  %v2877 = vsub.f32 %v2853, %v2863
  %v2878 = vsub.f32 %v2854, %v2866
  %v2879 = vsub.f32 %v2855, %v2869
  %v2880 = vsub.f32 %v2856, %v2872
  %v2881 = vsub.f32 %v2857, %v2875
  %v2882 = vmul.f32 %v2876, 1.442695
  %v2883 = vpow.pop %v2882
  %v2884 = vmul.f32 %v2877, 1.442695
  %v2885 = vpow.pop %v2884
  %v2886 = vmul.f32 %v2878, 1.442695
  %v2887 = vpow.pop %v2886
  %v2888 = vmul.f32 %v2879, 1.442695
  %v2889 = vpow.pop %v2888
  %v2890 = vmul.f32 %v2880, 1.442695
  %v2891 = vpow.pop %v2890
  %v2892 = vmul.f32 %v2881, 1.442695
  %v2893 = vpow.pop %v2892
  %v2894 = vsel %vm65, %v2883, 0.0
  %2895 = vadd.xlane.f32.xlu0 %v2894
  %v2896 = vpop.xlane.xlu0 %2895
  %v2897 = vsel %vm65, %v2885, 0.0
  %2898 = vadd.xlane.f32.xlu0 %v2897
  %v2899 = vpop.xlane.xlu0 %2898
  %v2900 = vsel %vm65, %v2887, 0.0
  %2901 = vadd.xlane.f32.xlu0 %v2900
  %v2902 = vpop.xlane.xlu0 %2901
  %v2903 = vsel %vm65, %v2889, 0.0
  %2904 = vadd.xlane.f32.xlu0 %v2903
  %v2905 = vpop.xlane.xlu0 %2904
  %v2906 = vsel %vm65, %v2891, 0.0
  %2907 = vadd.xlane.f32.xlu0 %v2906
  %v2908 = vpop.xlane.xlu0 %2907
  %v2909 = vsel %vm65, %v2893, 0.0
  %2910 = vadd.xlane.f32.xlu0 %v2909
  %v2911 = vpop.xlane.xlu0 %2910
  %v2912 = vrcp.pop %v2896
  %v2913 = vmul.f32 %v2883, %v2912
  %v2914 = vrcp.pop %v2899
  %v2915 = vmul.f32 %v2885, %v2914
  %v2916 = vrcp.pop %v2902
  %v2917 = vmul.f32 %v2887, %v2916
  %v2918 = vrcp.pop %v2905
  %v2919 = vmul.f32 %v2889, %v2918
  %v2920 = vrcp.pop %v2908
  %v2921 = vmul.f32 %v2891, %v2920
  %v2922 = vrcp.pop %v2911
  %v2923 = vmul.f32 %v2893, %v2922
  %2924 = vrot.lane.b32.xlu0 %v2684, 64
  %v2925 = vpop.permute.xlu0 %2924
  %2926 = vrot.lane.b32.xlu0 %v2689, 64
  %v2927 = vpop.permute.xlu0 %2926
  %2928 = vrot.lane.b32.xlu0 %v2694, 64
  %v2929 = vpop.permute.xlu0 %2928
  %2930 = vrot.lane.b32.xlu0 %v2699, 64
  %v2931 = vpop.permute.xlu0 %2930
  %2932 = vrot.lane.b32.xlu0 %v2704, 64
  %v2933 = vpop.permute.xlu0 %2932
  %2934 = vrot.lane.b32.xlu0 %v2709, 64
  %v2935 = vpop.permute.xlu0 %2934
  %v2943 = vsel %vm65, %v2913, 0
  %v2946 = vsel %vm65, %v2915, 0
  %v2949 = vsel %vm65, %v2917, 0
  %v2952 = vsel %vm65, %v2919, 0
  %v2955 = vsel %vm65, %v2921, 0
  %v2958 = vsel %vm65, %v2923, 0
  %2960 = vmatprep.subr.mxu0 0.0
  %2961 = vmatpush1.msra.mxu0 %v2925
  %2962 = vmatprep.subr.mxu0 0.0
  %2963 = vmatpush1.msra.mxu0 %v2927
  %2964 = vmatprep.subr.mxu0 0.0
  %2965 = vmatpush1.msra.mxu0 %v2929
  %2966 = vmatprep.subr.mxu0 0.0
  %2967 = vmatpush1.msra.mxu0 %v2931
  %2968 = vmatprep.subr.mxu0 0.0
  %2969 = vmatpush1.msra.mxu0 %v2933
  %2970 = vmatprep.subr.mxu0 0.0
  %2971 = vmatpush1.msra.mxu0 %v2935
  %2972 = vmatprep.subr.mxu0 0.0
  %2973 = vmatpush1.msra.mxu0 0.0
  %2974 = vmatprep.subr.mxu0 0.0
  %2975 = vmatpush1.msra.mxu0 0.0
  %2976 = vmatprep.subr.mxu0 0.0
  %2977 = vmatpush1.msra.mxu0 0.0
  %2978 = vmatprep.subr.mxu0 0.0
  %2979 = vmatpush1.msra.mxu0 0.0
  %2980 = vmatprep.subr.mxu0 0.0
  %2981 = vmatpush1.msra.mxu0 0.0
  %2982 = vmatprep.subr.mxu0 0.0
  %2983 = vmatpush1.msra.mxu0 0.0
  %2984 = vmatprep.subr.mxu0 0.0
  %2985 = vmatpush1.msra.mxu0 0.0
  %2986 = vmatprep.subr.mxu0 0.0
  %2987 = vmatpush1.msra.mxu0 0.0
  %2988 = vmatprep.subr.mxu0 0.0
  %2989 = vmatpush1.msra.mxu0 0.0
  %2990 = vmatprep.subr.mxu0 0.0
  %2991 = vmatpush1.msra.mxu0 0.0
  %2992 = vmatprep.subr.mxu0 0.0
  %2993 = vmatpush1.msra.mxu0 0.0
  %2994 = vmatprep.subr.mxu0 0.0
  %2995 = vmatpush1.msra.mxu0 0.0
  %2996 = vmatprep.subr.mxu0 0.0
  %2997 = vmatpush1.msra.mxu0 0.0
  %2998 = vmatprep.subr.mxu0 0.0
  %2999 = vmatpush1.msra.mxu0 0.0
  %3000 = vmatprep.subr.mxu0 0.0
  %3001 = vmatpush1.msra.mxu0 0.0
  %3002 = vmatprep.subr.mxu0 0.0
  %3003 = vmatpush1.msra.mxu0 0.0
  %3004 = vmatprep.subr.mxu0 0.0
  %3005 = vmatpush1.msra.mxu0 0.0
  %3006 = vmatprep.subr.mxu0 0.0
  %3007 = vmatpush1.msra.mxu0 0.0
  %3008 = vmatprep.subr.mxu0 0.0
  %3009 = vmatpush1.msra.mxu0 0.0
  %3010 = vmatprep.subr.mxu0 0.0
  %3011 = vmatpush1.msra.mxu0 0.0
  %3012 = vmatprep.subr.mxu0 0.0
  %3013 = vmatpush1.msra.mxu0 0.0
  %3014 = vmatprep.subr.mxu0 0.0
  %3015 = vmatpush1.msra.mxu0 0.0
  %3016 = vmatprep.subr.mxu0 0.0
  %3017 = vmatpush1.msra.mxu0 0.0
  %3018 = vmatprep.subr.mxu0 0.0
  %3019 = vmatpush1.msra.mxu0 0.0
  %3020 = vmatprep.subr.mxu0 0.0
  %3021 = vmatpush1.msra.mxu0 0.0
  %3022 = vmatprep.subr.mxu0 0.0
  %3023 = vmatpush1.msra.mxu0 0.0
  %3024 = vmatprep.mubr.f32.mxu0 0.0
  %3025 = vmatmul.mubr.f32.gmra.mrb[0].mxu0 %v2943
  %v3026 = vpop.f32.mrb[0].mxu0
  %v3027 = vadd.f32 0.0, %v3026
  %v3028 = vpop.f32.mrb[0].mxu0
  %3029 = vmatprep.mubr.f32.mxu0 0.0
  %3030 = vmatmul.mubr.f32.gmra.mrb[0].mxu0 %v2946
  %v3031 = vpop.f32.mrb[0].mxu0
  %v3032 = vadd.f32 0.0, %v3031
  %v3033 = vpop.f32.mrb[0].mxu0
  %3034 = vmatprep.mubr.f32.mxu0 0.0
  %3035 = vmatmul.mubr.f32.gmra.mrb[0].mxu0 %v2949
  %v3036 = vpop.f32.mrb[0].mxu0
  %v3037 = vadd.f32 0.0, %v3036
  %v3038 = vpop.f32.mrb[0].mxu0
  %3039 = vmatprep.mubr.f32.mxu0 0.0
  %3040 = vmatmul.mubr.f32.gmra.mrb[0].mxu0 %v2952
  %v3041 = vpop.f32.mrb[0].mxu0
  %v3042 = vadd.f32 0.0, %v3041
  %v3043 = vpop.f32.mrb[0].mxu0
  %3044 = vmatprep.mubr.f32.mxu0 0.0
  %3045 = vmatmul.mubr.f32.gmra.mrb[0].mxu0 %v2955
  %v3046 = vpop.f32.mrb[0].mxu0
  %v3047 = vadd.f32 0.0, %v3046
  %v3048 = vpop.f32.mrb[0].mxu0
  %3049 = vmatprep.mubr.f32.mxu0 0.0
  %3050 = vmatmul.mubr.f32.gmra.mrb[0].mxu0 %v2958
  %v3051 = vpop.f32.mrb[0].mxu0
  %v3052 = vadd.f32 0.0, %v3051
  %v3053 = vpop.f32.mrb[0].mxu0
  %3054 = vdwg.mxu0
  %3055 = vrot.lane.b32.xlu0 %v2684, 120
  %v3056 = vpop.permute.xlu0 %3055
  %3057 = vrot.lane.b32.xlu0 %v2689, 120
  %v3058 = vpop.permute.xlu0 %3057
  %3059 = vrot.lane.b32.xlu0 %v2694, 120
  %v3060 = vpop.permute.xlu0 %3059
  %3061 = vrot.lane.b32.xlu0 %v2699, 120
  %v3062 = vpop.permute.xlu0 %3061
  %3063 = vrot.lane.b32.xlu0 %v2704, 120
  %v3064 = vpop.permute.xlu0 %3063
  %3065 = vrot.lane.b32.xlu0 %v2709, 120
  %v3066 = vpop.permute.xlu0 %3065
  %3067 = vrot.lane.b32.xlu0 %v2684, 88
  %v3068 = vpop.permute.xlu0 %3067
  %3069 = vrot.lane.b32.xlu0 %v2689, 88
  %v3070 = vpop.permute.xlu0 %3069
  %3071 = vrot.lane.b32.xlu0 %v2694, 88
  %v3072 = vpop.permute.xlu0 %3071
  %3073 = vrot.lane.b32.xlu0 %v2699, 88
  %v3074 = vpop.permute.xlu0 %3073
  %3075 = vrot.lane.b32.xlu0 %v2704, 88
  %v3076 = vpop.permute.xlu0 %3075
  %3077 = vrot.lane.b32.xlu0 %v2709, 88
  %v3078 = vpop.permute.xlu0 %3077
  %v3079 = vsel %vm541, %v3056, 0
  %v3081 = vsel %vm541, %v3058, 0
  %v3083 = vsel %vm541, %v3060, 0
  %v3085 = vsel %vm541, %v3062, 0
  %v3087 = vsel %vm541, %v3064, 0
  %v3089 = vsel %vm541, %v3066, 0
  %v3091 = vsel %vm541, %v3068, 0
  %v3093 = vsel %vm541, %v3070, 0
  %v3095 = vsel %vm541, %v3072, 0
  %v3097 = vsel %vm541, %v3074, 0
  %v3099 = vsel %vm541, %v3076, 0
  %v3101 = vsel %vm541, %v3078, 0
  %3103 = vmatprep.subr.mxu0 0.0
  %3104 = vmatpush1.xpose.msra.mxu0 %v3091
  %3105 = vmatprep.subr.mxu0 0.0
  %3106 = vmatpush1.xpose.msra.mxu0 %v3093
  %3107 = vmatprep.subr.mxu0 0.0
  %3108 = vmatpush1.xpose.msra.mxu0 %v3095
  %3109 = vmatprep.subr.mxu0 0.0
  %3110 = vmatpush1.xpose.msra.mxu0 %v3097
  %3111 = vmatprep.subr.mxu0 0.0
  %3112 = vmatpush1.xpose.msra.mxu0 %v3099
  %3113 = vmatprep.subr.mxu0 0.0
  %3114 = vmatpush1.xpose.msra.mxu0 %v3101
  %3115 = vmatprep.subr.mxu0 0.0
  %3116 = vmatpush1.xpose.msra.mxu0 0.0
  %3117 = vmatprep.subr.mxu0 0.0
  %3118 = vmatpush1.xpose.msra.mxu0 0.0
  %3119 = vmatprep.subr.mxu0 0.0
  %3120 = vmatpush1.xpose.msra.mxu0 0.0
  %3121 = vmatprep.subr.mxu0 0.0
  %3122 = vmatpush1.xpose.msra.mxu0 0.0
  %3123 = vmatprep.subr.mxu0 0.0
  %3124 = vmatpush1.xpose.msra.mxu0 0.0
  %3125 = vmatprep.subr.mxu0 0.0
  %3126 = vmatpush1.xpose.msra.mxu0 0.0
  %3127 = vmatprep.subr.mxu0 0.0
  %3128 = vmatpush1.xpose.msra.mxu0 0.0
  %3129 = vmatprep.subr.mxu0 0.0
  %3130 = vmatpush1.xpose.msra.mxu0 0.0
  %3131 = vmatprep.subr.mxu0 0.0
  %3132 = vmatpush1.xpose.msra.mxu0 0.0
  %3133 = vmatprep.subr.mxu0 0.0
  %3134 = vmatpush1.xpose.msra.mxu0 0.0
  %3135 = vmatprep.subr.mxu0 0.0
  %3136 = vmatpush1.xpose.msra.mxu0 0.0
  %3137 = vmatprep.subr.mxu0 0.0
  %3138 = vmatpush1.xpose.msra.mxu0 0.0
  %3139 = vmatprep.subr.mxu0 0.0
  %3140 = vmatpush1.xpose.msra.mxu0 0.0
  %3141 = vmatprep.subr.mxu0 0.0
  %3142 = vmatpush1.xpose.msra.mxu0 0.0
  %3143 = vmatprep.subr.mxu0 0.0
  %3144 = vmatpush1.xpose.msra.mxu0 0.0
  %3145 = vmatprep.subr.mxu0 0.0
  %3146 = vmatpush1.xpose.msra.mxu0 0.0
  %3147 = vmatprep.subr.mxu0 0.0
  %3148 = vmatpush1.xpose.msra.mxu0 0.0
  %3149 = vmatprep.subr.mxu0 0.0
  %3150 = vmatpush1.xpose.msra.mxu0 0.0
  %3151 = vmatprep.subr.mxu0 0.0
  %3152 = vmatpush1.xpose.msra.mxu0 0.0
  %3153 = vmatprep.subr.mxu0 0.0
  %3154 = vmatpush1.xpose.msra.mxu0 0.0
  %3155 = vmatprep.subr.mxu0 0.0
  %3156 = vmatpush1.xpose.msra.mxu0 0.0
  %3157 = vmatprep.subr.mxu0 0.0
  %3158 = vmatpush1.xpose.msra.mxu0 0.0
  %3159 = vmatprep.subr.mxu0 0.0
  %3160 = vmatpush1.xpose.msra.mxu0 0.0
  %3161 = vmatprep.subr.mxu0 0.0
  %3162 = vmatpush1.xpose.msra.mxu0 0.0
  %3163 = vmatprep.subr.mxu0 0.0
  %3164 = vmatpush1.xpose.msra.mxu0 0.0
  %3165 = vmatprep.subr.mxu0 0.0
  %3166 = vmatpush1.xpose.msra.mxu0 0.0
  %3167 = vmatprep.mubr.f32.mxu0 0.0
  %3168 = vmatmul.mubr.f32.gmra.mrb[0].mxu0 %v3079
  %v3169 = vpop.f32.mrb[0].mxu0
  %v3170 = vadd.f32 0.0, %v3169
  %v3171 = vpop.f32.mrb[0].mxu0
  %3172 = vmatprep.mubr.f32.mxu0 0.0
  %3173 = vmatmul.mubr.f32.gmra.mrb[0].mxu0 %v3081
  %v3174 = vpop.f32.mrb[0].mxu0
  %v3175 = vadd.f32 0.0, %v3174
  %v3176 = vpop.f32.mrb[0].mxu0
  %3177 = vmatprep.mubr.f32.mxu0 0.0
  %3178 = vmatmul.mubr.f32.gmra.mrb[0].mxu0 %v3083
  %v3179 = vpop.f32.mrb[0].mxu0
  %v3180 = vadd.f32 0.0, %v3179
  %v3181 = vpop.f32.mrb[0].mxu0
  %3182 = vmatprep.mubr.f32.mxu0 0.0
  %3183 = vmatmul.mubr.f32.gmra.mrb[0].mxu0 %v3085
  %v3184 = vpop.f32.mrb[0].mxu0
  %v3185 = vadd.f32 0.0, %v3184
  %v3186 = vpop.f32.mrb[0].mxu0
  %3187 = vmatprep.mubr.f32.mxu0 0.0
  %3188 = vmatmul.mubr.f32.gmra.mrb[0].mxu0 %v3087
  %v3189 = vpop.f32.mrb[0].mxu0
  %v3190 = vadd.f32 0.0, %v3189
  %v3191 = vpop.f32.mrb[0].mxu0
  %3192 = vmatprep.mubr.f32.mxu0 0.0
  %3193 = vmatmul.mubr.f32.gmra.mrb[0].mxu0 %v3089
  %v3194 = vpop.f32.mrb[0].mxu0
  %v3195 = vadd.f32 0.0, %v3194
  %v3196 = vpop.f32.mrb[0].mxu0
  %3197 = vdwg.mxu0
  %3198 = vst.msk [vmem:[%s17 + $0x1] sm:$0x1] %vm2849, %v3170
  %3199 = vst.msk [vmem:[%s17 + $0x5] sm:$0x1] %vm2849, %v3185
  %v3200 = vadd.f32 %v3170, %v295
  %v3201 = vadd.f32 %v3175, %v296
  %v3202 = vadd.f32 %v3180, %v297
  %v3203 = vadd.f32 %v3185, %v298
  %v3204 = vadd.f32 %v3190, %v299
  %v3205 = vadd.f32 %v3195, %v300
  %v3206 = vsel %vm65, %v3200, -inf
  %3207 = vmax.xlane.f32.xlu0 %v3206
  %v3208 = vpop.xlane.xlu0 %3207
  %v3209 = vsel %vm65, %v3201, -inf
  %3210 = vmax.xlane.f32.xlu0 %v3209
  %v3211 = vpop.xlane.xlu0 %3210
  %v3212 = vsel %vm65, %v3202, -inf
  %3213 = vmax.xlane.f32.xlu0 %v3212
  %v3214 = vpop.xlane.xlu0 %3213
  %v3215 = vsel %vm65, %v3203, -inf
  %3216 = vmax.xlane.f32.xlu0 %v3215
  %v3217 = vpop.xlane.xlu0 %3216
  %v3218 = vsel %vm65, %v3204, -inf
  %3219 = vmax.xlane.f32.xlu0 %v3218
  %v3220 = vpop.xlane.xlu0 %3219
  %v3221 = vsel %vm65, %v3205, -inf
  %3222 = vmax.xlane.f32.xlu0 %v3221
  %v3223 = vpop.xlane.xlu0 %3222
  %v3224 = vsub.f32 %v3200, %v3208
  %v3225 = vsub.f32 %v3201, %v3211
  %v3226 = vsub.f32 %v3202, %v3214
  %v3227 = vsub.f32 %v3203, %v3217
  %v3228 = vsub.f32 %v3204, %v3220
  %v3229 = vsub.f32 %v3205, %v3223
  %v3230 = vmul.f32 %v3224, 1.442695
  %v3231 = vpow.pop %v3230
  %v3232 = vmul.f32 %v3225, 1.442695
  %v3233 = vpow.pop %v3232
  %v3234 = vmul.f32 %v3226, 1.442695
  %v3235 = vpow.pop %v3234
  %v3236 = vmul.f32 %v3227, 1.442695
  %v3237 = vpow.pop %v3236
  %v3238 = vmul.f32 %v3228, 1.442695
  %v3239 = vpow.pop %v3238
  %v3240 = vmul.f32 %v3229, 1.442695
  %v3241 = vpow.pop %v3240
  %v3242 = vsel %vm65, %v3231, 0.0
  %3243 = vadd.xlane.f32.xlu0 %v3242
  %v3244 = vpop.xlane.xlu0 %3243
  %v3245 = vsel %vm65, %v3233, 0.0
  %3246 = vadd.xlane.f32.xlu0 %v3245
  %v3247 = vpop.xlane.xlu0 %3246
  %v3248 = vsel %vm65, %v3235, 0.0
  %3249 = vadd.xlane.f32.xlu0 %v3248
  %v3250 = vpop.xlane.xlu0 %3249
  %v3251 = vsel %vm65, %v3237, 0.0
  %3252 = vadd.xlane.f32.xlu0 %v3251
  %v3253 = vpop.xlane.xlu0 %3252
  %v3254 = vsel %vm65, %v3239, 0.0
  %3255 = vadd.xlane.f32.xlu0 %v3254
  %v3256 = vpop.xlane.xlu0 %3255
  %v3257 = vsel %vm65, %v3241, 0.0
  %3258 = vadd.xlane.f32.xlu0 %v3257
  %v3259 = vpop.xlane.xlu0 %3258
  %v3260 = vrcp.pop %v3244
  %v3261 = vmul.f32 %v3231, %v3260
  %v3262 = vrcp.pop %v3247
  %v3263 = vmul.f32 %v3233, %v3262
  %v3264 = vrcp.pop %v3250
  %v3265 = vmul.f32 %v3235, %v3264
  %v3266 = vrcp.pop %v3253
  %v3267 = vmul.f32 %v3237, %v3266
  %v3268 = vrcp.pop %v3256
  %v3269 = vmul.f32 %v3239, %v3268
  %v3270 = vrcp.pop %v3259
  %v3271 = vmul.f32 %v3241, %v3270
  %3272 = vrot.lane.b32.xlu0 %v2684, 56
  %v3273 = vpop.permute.xlu0 %3272
  %3274 = vrot.lane.b32.xlu0 %v2689, 56
  %v3275 = vpop.permute.xlu0 %3274
  %3276 = vrot.lane.b32.xlu0 %v2694, 56
  %v3277 = vpop.permute.xlu0 %3276
  %3278 = vrot.lane.b32.xlu0 %v2699, 56
  %v3279 = vpop.permute.xlu0 %3278
  %3280 = vrot.lane.b32.xlu0 %v2704, 56
  %v3281 = vpop.permute.xlu0 %3280
  %3282 = vrot.lane.b32.xlu0 %v2709, 56
  %v3283 = vpop.permute.xlu0 %3282
  %v3291 = vsel %vm65, %v3261, 0
  %v3294 = vsel %vm65, %v3263, 0
  %v3297 = vsel %vm65, %v3265, 0
  %v3300 = vsel %vm65, %v3267, 0
  %v3303 = vsel %vm65, %v3269, 0
  %v3306 = vsel %vm65, %v3271, 0
  %3308 = vmatprep.subr.mxu0 0.0
  %3309 = vmatpush1.msra.mxu0 %v3273
  %3310 = vmatprep.subr.mxu0 0.0
  %3311 = vmatpush1.msra.mxu0 %v3275
  %3312 = vmatprep.subr.mxu0 0.0
  %3313 = vmatpush1.msra.mxu0 %v3277
  %3314 = vmatprep.subr.mxu0 0.0
  %3315 = vmatpush1.msra.mxu0 %v3279
  %3316 = vmatprep.subr.mxu0 0.0
  %3317 = vmatpush1.msra.mxu0 %v3281
  %3318 = vmatprep.subr.mxu0 0.0
  %3319 = vmatpush1.msra.mxu0 %v3283
  %3320 = vmatprep.subr.mxu0 0.0
  %3321 = vmatpush1.msra.mxu0 0.0
  %3322 = vmatprep.subr.mxu0 0.0
  %3323 = vmatpush1.msra.mxu0 0.0
  %3324 = vmatprep.subr.mxu0 0.0
  %3325 = vmatpush1.msra.mxu0 0.0
  %3326 = vmatprep.subr.mxu0 0.0
  %3327 = vmatpush1.msra.mxu0 0.0
  %3328 = vmatprep.subr.mxu0 0.0
  %3329 = vmatpush1.msra.mxu0 0.0
  %3330 = vmatprep.subr.mxu0 0.0
  %3331 = vmatpush1.msra.mxu0 0.0
  %3332 = vmatprep.subr.mxu0 0.0
  %3333 = vmatpush1.msra.mxu0 0.0
  %3334 = vmatprep.subr.mxu0 0.0
  %3335 = vmatpush1.msra.mxu0 0.0
  %3336 = vmatprep.subr.mxu0 0.0
  %3337 = vmatpush1.msra.mxu0 0.0
  %3338 = vmatprep.subr.mxu0 0.0
  %3339 = vmatpush1.msra.mxu0 0.0
  %3340 = vmatprep.subr.mxu0 0.0
  %3341 = vmatpush1.msra.mxu0 0.0
  %3342 = vmatprep.subr.mxu0 0.0
  %3343 = vmatpush1.msra.mxu0 0.0
  %3344 = vmatprep.subr.mxu0 0.0
  %3345 = vmatpush1.msra.mxu0 0.0
  %3346 = vmatprep.subr.mxu0 0.0
  %3347 = vmatpush1.msra.mxu0 0.0
  %3348 = vmatprep.subr.mxu0 0.0
  %3349 = vmatpush1.msra.mxu0 0.0
  %3350 = vmatprep.subr.mxu0 0.0
  %3351 = vmatpush1.msra.mxu0 0.0
  %3352 = vmatprep.subr.mxu0 0.0
  %3353 = vmatpush1.msra.mxu0 0.0
  %3354 = vmatprep.subr.mxu0 0.0
  %3355 = vmatpush1.msra.mxu0 0.0
  %3356 = vmatprep.subr.mxu0 0.0
  %3357 = vmatpush1.msra.mxu0 0.0
  %3358 = vmatprep.subr.mxu0 0.0
  %3359 = vmatpush1.msra.mxu0 0.0
  %3360 = vmatprep.subr.mxu0 0.0
  %3361 = vmatpush1.msra.mxu0 0.0
  %3362 = vmatprep.subr.mxu0 0.0
  %3363 = vmatpush1.msra.mxu0 0.0
  %3364 = vmatprep.subr.mxu0 0.0
  %3365 = vmatpush1.msra.mxu0 0.0
  %3366 = vmatprep.subr.mxu0 0.0
  %3367 = vmatpush1.msra.mxu0 0.0
  %3368 = vmatprep.subr.mxu0 0.0
  %3369 = vmatpush1.msra.mxu0 0.0
  %3370 = vmatprep.subr.mxu0 0.0
  %3371 = vmatpush1.msra.mxu0 0.0
  %3372 = vmatprep.mubr.f32.mxu0 0.0
  %3373 = vmatmul.mubr.f32.gmra.mrb[0].mxu0 %v3291
  %v3374 = vpop.f32.mrb[0].mxu0
  %v3375 = vadd.f32 0.0, %v3374
  %v3376 = vpop.f32.mrb[0].mxu0
  %3377 = vmatprep.mubr.f32.mxu0 0.0
  %3378 = vmatmul.mubr.f32.gmra.mrb[0].mxu0 %v3294
  %v3379 = vpop.f32.mrb[0].mxu0
  %v3380 = vadd.f32 0.0, %v3379
  %v3381 = vpop.f32.mrb[0].mxu0
  %3382 = vmatprep.mubr.f32.mxu0 0.0
  %3383 = vmatmul.mubr.f32.gmra.mrb[0].mxu0 %v3297
  %v3384 = vpop.f32.mrb[0].mxu0
  %v3385 = vadd.f32 0.0, %v3384
  %v3386 = vpop.f32.mrb[0].mxu0
  %3387 = vmatprep.mubr.f32.mxu0 0.0
  %3388 = vmatmul.mubr.f32.gmra.mrb[0].mxu0 %v3300
  %v3389 = vpop.f32.mrb[0].mxu0
  %v3390 = vadd.f32 0.0, %v3389
  %v3391 = vpop.f32.mrb[0].mxu0
  %3392 = vmatprep.mubr.f32.mxu0 0.0
  %3393 = vmatmul.mubr.f32.gmra.mrb[0].mxu0 %v3303
  %v3394 = vpop.f32.mrb[0].mxu0
  %v3395 = vadd.f32 0.0, %v3394
  %v3396 = vpop.f32.mrb[0].mxu0
  %3397 = vmatprep.mubr.f32.mxu0 0.0
  %3398 = vmatmul.mubr.f32.gmra.mrb[0].mxu0 %v3306
  %v3399 = vpop.f32.mrb[0].mxu0
  %v3400 = vadd.f32 0.0, %v3399
  %v3401 = vpop.f32.mrb[0].mxu0
  %3402 = vdwg.mxu0
  %3403 = vrot.lane.b32.xlu0 %v2684, 112
  %v3404 = vpop.permute.xlu0 %3403
  %3405 = vrot.lane.b32.xlu0 %v2689, 112
  %v3406 = vpop.permute.xlu0 %3405
  %3407 = vrot.lane.b32.xlu0 %v2694, 112
  %v3408 = vpop.permute.xlu0 %3407
  %3409 = vrot.lane.b32.xlu0 %v2699, 112
  %v3410 = vpop.permute.xlu0 %3409
  %3411 = vrot.lane.b32.xlu0 %v2704, 112
  %v3412 = vpop.permute.xlu0 %3411
  %3413 = vrot.lane.b32.xlu0 %v2709, 112
  %v3414 = vpop.permute.xlu0 %3413
  %3415 = vrot.lane.b32.xlu0 %v2684, 80
  %v3416 = vpop.permute.xlu0 %3415
  %3417 = vrot.lane.b32.xlu0 %v2689, 80
  %v3418 = vpop.permute.xlu0 %3417
  %3419 = vrot.lane.b32.xlu0 %v2694, 80
  %v3420 = vpop.permute.xlu0 %3419
  %3421 = vrot.lane.b32.xlu0 %v2699, 80
  %v3422 = vpop.permute.xlu0 %3421
  %3423 = vrot.lane.b32.xlu0 %v2704, 80
  %v3424 = vpop.permute.xlu0 %3423
  %3425 = vrot.lane.b32.xlu0 %v2709, 80
  %v3426 = vpop.permute.xlu0 %3425
  %v3427 = vsel %vm541, %v3404, 0
  %v3429 = vsel %vm541, %v3406, 0
  %v3431 = vsel %vm541, %v3408, 0
  %v3433 = vsel %vm541, %v3410, 0
  %v3435 = vsel %vm541, %v3412, 0
  %v3437 = vsel %vm541, %v3414, 0
  %v3439 = vsel %vm541, %v3416, 0
  %v3441 = vsel %vm541, %v3418, 0
  %v3443 = vsel %vm541, %v3420, 0
  %v3445 = vsel %vm541, %v3422, 0
  %v3447 = vsel %vm541, %v3424, 0
  %v3449 = vsel %vm541, %v3426, 0
  %3451 = vmatprep.subr.mxu0 0.0
  %3452 = vmatpush1.xpose.msra.mxu0 %v3439
  %3453 = vmatprep.subr.mxu0 0.0
  %3454 = vmatpush1.xpose.msra.mxu0 %v3441
  %3455 = vmatprep.subr.mxu0 0.0
  %3456 = vmatpush1.xpose.msra.mxu0 %v3443
  %3457 = vmatprep.subr.mxu0 0.0
  %3458 = vmatpush1.xpose.msra.mxu0 %v3445
  %3459 = vmatprep.subr.mxu0 0.0
  %3460 = vmatpush1.xpose.msra.mxu0 %v3447
  %3461 = vmatprep.subr.mxu0 0.0
  %3462 = vmatpush1.xpose.msra.mxu0 %v3449
  %3463 = vmatprep.subr.mxu0 0.0
  %3464 = vmatpush1.xpose.msra.mxu0 0.0
  %3465 = vmatprep.subr.mxu0 0.0
  %3466 = vmatpush1.xpose.msra.mxu0 0.0
  %3467 = vmatprep.subr.mxu0 0.0
  %3468 = vmatpush1.xpose.msra.mxu0 0.0
  %3469 = vmatprep.subr.mxu0 0.0
  %3470 = vmatpush1.xpose.msra.mxu0 0.0
  %3471 = vmatprep.subr.mxu0 0.0
  %3472 = vmatpush1.xpose.msra.mxu0 0.0
  %3473 = vmatprep.subr.mxu0 0.0
  %3474 = vmatpush1.xpose.msra.mxu0 0.0
  %3475 = vmatprep.subr.mxu0 0.0
  %3476 = vmatpush1.xpose.msra.mxu0 0.0
  %3477 = vmatprep.subr.mxu0 0.0
  %3478 = vmatpush1.xpose.msra.mxu0 0.0
  %3479 = vmatprep.subr.mxu0 0.0
  %3480 = vmatpush1.xpose.msra.mxu0 0.0
  %3481 = vmatprep.subr.mxu0 0.0
  %3482 = vmatpush1.xpose.msra.mxu0 0.0
  %3483 = vmatprep.subr.mxu0 0.0
  %3484 = vmatpush1.xpose.msra.mxu0 0.0
  %3485 = vmatprep.subr.mxu0 0.0
  %3486 = vmatpush1.xpose.msra.mxu0 0.0
  %3487 = vmatprep.subr.mxu0 0.0
  %3488 = vmatpush1.xpose.msra.mxu0 0.0
  %3489 = vmatprep.subr.mxu0 0.0
  %3490 = vmatpush1.xpose.msra.mxu0 0.0
  %3491 = vmatprep.subr.mxu0 0.0
  %3492 = vmatpush1.xpose.msra.mxu0 0.0
  %3493 = vmatprep.subr.mxu0 0.0
  %3494 = vmatpush1.xpose.msra.mxu0 0.0
  %3495 = vmatprep.subr.mxu0 0.0
  %3496 = vmatpush1.xpose.msra.mxu0 0.0
  %3497 = vmatprep.subr.mxu0 0.0
  %3498 = vmatpush1.xpose.msra.mxu0 0.0
  %3499 = vmatprep.subr.mxu0 0.0
  %3500 = vmatpush1.xpose.msra.mxu0 0.0
  %3501 = vmatprep.subr.mxu0 0.0
  %3502 = vmatpush1.xpose.msra.mxu0 0.0
  %3503 = vmatprep.subr.mxu0 0.0
  %3504 = vmatpush1.xpose.msra.mxu0 0.0
  %3505 = vmatprep.subr.mxu0 0.0
  %3506 = vmatpush1.xpose.msra.mxu0 0.0
  %3507 = vmatprep.subr.mxu0 0.0
  %3508 = vmatpush1.xpose.msra.mxu0 0.0
  %3509 = vmatprep.subr.mxu0 0.0
  %3510 = vmatpush1.xpose.msra.mxu0 0.0
  %3511 = vmatprep.subr.mxu0 0.0
  %3512 = vmatpush1.xpose.msra.mxu0 0.0
  %3513 = vmatprep.subr.mxu0 0.0
  %3514 = vmatpush1.xpose.msra.mxu0 0.0
  %3515 = vmatprep.mubr.f32.mxu0 0.0
  %3516 = vmatmul.mubr.f32.gmra.mrb[0].mxu0 %v3427
  %v3517 = vpop.f32.mrb[0].mxu0
  %v3518 = vadd.f32 0.0, %v3517
  %v3519 = vpop.f32.mrb[0].mxu0
  %3520 = vmatprep.mubr.f32.mxu0 0.0
  %3521 = vmatmul.mubr.f32.gmra.mrb[0].mxu0 %v3429
  %v3522 = vpop.f32.mrb[0].mxu0
  %v3523 = vadd.f32 0.0, %v3522
  %v3524 = vpop.f32.mrb[0].mxu0
  %3525 = vmatprep.mubr.f32.mxu0 0.0
  %3526 = vmatmul.mubr.f32.gmra.mrb[0].mxu0 %v3431
  %v3527 = vpop.f32.mrb[0].mxu0
  %v3528 = vadd.f32 0.0, %v3527
  %v3529 = vpop.f32.mrb[0].mxu0
  %3530 = vmatprep.mubr.f32.mxu0 0.0
  %3531 = vmatmul.mubr.f32.gmra.mrb[0].mxu0 %v3433
  %v3532 = vpop.f32.mrb[0].mxu0
  %v3533 = vadd.f32 0.0, %v3532
  %v3534 = vpop.f32.mrb[0].mxu0
  %3535 = vmatprep.mubr.f32.mxu0 0.0
  %3536 = vmatmul.mubr.f32.gmra.mrb[0].mxu0 %v3435
  %v3537 = vpop.f32.mrb[0].mxu0
  %v3538 = vadd.f32 0.0, %v3537
  %v3539 = vpop.f32.mrb[0].mxu0
  %3540 = vmatprep.mubr.f32.mxu0 0.0
  %3541 = vmatmul.mubr.f32.gmra.mrb[0].mxu0 %v3437
  %v3542 = vpop.f32.mrb[0].mxu0
  %v3543 = vadd.f32 0.0, %v3542
  %v3544 = vpop.f32.mrb[0].mxu0
  %3545 = vdwg.mxu0
  %3546 = vst.msk [vmem:[%s17 + $0x2] sm:$0x1] %vm2849, %v3518
  %3547 = vst.msk [vmem:[%s17 + $0x6] sm:$0x1] %vm2849, %v3533
  %v3548 = vadd.f32 %v3518, %v295
  %v3549 = vadd.f32 %v3523, %v296
  %v3550 = vadd.f32 %v3528, %v297
  %v3551 = vadd.f32 %v3533, %v298
  %v3552 = vadd.f32 %v3538, %v299
  %v3553 = vadd.f32 %v3543, %v300
  %v3554 = vsel %vm65, %v3548, -inf
  %3555 = vmax.xlane.f32.xlu0 %v3554
  %v3556 = vpop.xlane.xlu0 %3555
  %v3557 = vsel %vm65, %v3549, -inf
  %3558 = vmax.xlane.f32.xlu0 %v3557
  %v3559 = vpop.xlane.xlu0 %3558
  %v3560 = vsel %vm65, %v3550, -inf
  %3561 = vmax.xlane.f32.xlu0 %v3560
  %v3562 = vpop.xlane.xlu0 %3561
  %v3563 = vsel %vm65, %v3551, -inf
  %3564 = vmax.xlane.f32.xlu0 %v3563
  %v3565 = vpop.xlane.xlu0 %3564
  %v3566 = vsel %vm65, %v3552, -inf
  %3567 = vmax.xlane.f32.xlu0 %v3566
  %v3568 = vpop.xlane.xlu0 %3567
  %v3569 = vsel %vm65, %v3553, -inf
  %3570 = vmax.xlane.f32.xlu0 %v3569
  %v3571 = vpop.xlane.xlu0 %3570
  %v3572 = vsub.f32 %v3548, %v3556
  %v3573 = vsub.f32 %v3549, %v3559
  %v3574 = vsub.f32 %v3550, %v3562
  %v3575 = vsub.f32 %v3551, %v3565
  %v3576 = vsub.f32 %v3552, %v3568
  %v3577 = vsub.f32 %v3553, %v3571
  %v3578 = vmul.f32 %v3572, 1.442695
  %v3579 = vpow.pop %v3578
  %v3580 = vmul.f32 %v3573, 1.442695
  %v3581 = vpow.pop %v3580
  %v3582 = vmul.f32 %v3574, 1.442695
  %v3583 = vpow.pop %v3582
  %v3584 = vmul.f32 %v3575, 1.442695
  %v3585 = vpow.pop %v3584
  %v3586 = vmul.f32 %v3576, 1.442695
  %v3587 = vpow.pop %v3586
  %v3588 = vmul.f32 %v3577, 1.442695
  %v3589 = vpow.pop %v3588
  %v3590 = vsel %vm65, %v3579, 0.0
  %3591 = vadd.xlane.f32.xlu0 %v3590
  %v3592 = vpop.xlane.xlu0 %3591
  %v3593 = vsel %vm65, %v3581, 0.0
  %3594 = vadd.xlane.f32.xlu0 %v3593
  %v3595 = vpop.xlane.xlu0 %3594
  %v3596 = vsel %vm65, %v3583, 0.0
  %3597 = vadd.xlane.f32.xlu0 %v3596
  %v3598 = vpop.xlane.xlu0 %3597
  %v3599 = vsel %vm65, %v3585, 0.0
  %3600 = vadd.xlane.f32.xlu0 %v3599
  %v3601 = vpop.xlane.xlu0 %3600
  %v3602 = vsel %vm65, %v3587, 0.0
  %3603 = vadd.xlane.f32.xlu0 %v3602
  %v3604 = vpop.xlane.xlu0 %3603
  %v3605 = vsel %vm65, %v3589, 0.0
  %3606 = vadd.xlane.f32.xlu0 %v3605
  %v3607 = vpop.xlane.xlu0 %3606
  %v3608 = vrcp.pop %v3592
  %v3609 = vmul.f32 %v3579, %v3608
  %v3610 = vrcp.pop %v3595
  %v3611 = vmul.f32 %v3581, %v3610
  %v3612 = vrcp.pop %v3598
  %v3613 = vmul.f32 %v3583, %v3612
  %v3614 = vrcp.pop %v3601
  %v3615 = vmul.f32 %v3585, %v3614
  %v3616 = vrcp.pop %v3604
  %v3617 = vmul.f32 %v3587, %v3616
  %v3618 = vrcp.pop %v3607
  %v3619 = vmul.f32 %v3589, %v3618
  %3620 = vrot.lane.b32.xlu0 %v2684, 48
  %v3621 = vpop.permute.xlu0 %3620
  %3622 = vrot.lane.b32.xlu0 %v2689, 48
  %v3623 = vpop.permute.xlu0 %3622
  %3624 = vrot.lane.b32.xlu0 %v2694, 48
  %v3625 = vpop.permute.xlu0 %3624
  %3626 = vrot.lane.b32.xlu0 %v2699, 48
  %v3627 = vpop.permute.xlu0 %3626
  %3628 = vrot.lane.b32.xlu0 %v2704, 48
  %v3629 = vpop.permute.xlu0 %3628
  %3630 = vrot.lane.b32.xlu0 %v2709, 48
  %v3631 = vpop.permute.xlu0 %3630
  %v3639 = vsel %vm65, %v3609, 0
  %v3642 = vsel %vm65, %v3611, 0
  %v3645 = vsel %vm65, %v3613, 0
  %v3648 = vsel %vm65, %v3615, 0
  %v3651 = vsel %vm65, %v3617, 0
  %v3654 = vsel %vm65, %v3619, 0
  %3656 = vmatprep.subr.mxu0 0.0
  %3657 = vmatpush1.msra.mxu0 %v3621
  %3658 = vmatprep.subr.mxu0 0.0
  %3659 = vmatpush1.msra.mxu0 %v3623
  %3660 = vmatprep.subr.mxu0 0.0
  %3661 = vmatpush1.msra.mxu0 %v3625
  %3662 = vmatprep.subr.mxu0 0.0
  %3663 = vmatpush1.msra.mxu0 %v3627
  %3664 = vmatprep.subr.mxu0 0.0
  %3665 = vmatpush1.msra.mxu0 %v3629
  %3666 = vmatprep.subr.mxu0 0.0
  %3667 = vmatpush1.msra.mxu0 %v3631
  %3668 = vmatprep.subr.mxu0 0.0
  %3669 = vmatpush1.msra.mxu0 0.0
  %3670 = vmatprep.subr.mxu0 0.0
  %3671 = vmatpush1.msra.mxu0 0.0
  %3672 = vmatprep.subr.mxu0 0.0
  %3673 = vmatpush1.msra.mxu0 0.0
  %3674 = vmatprep.subr.mxu0 0.0
  %3675 = vmatpush1.msra.mxu0 0.0
  %3676 = vmatprep.subr.mxu0 0.0
  %3677 = vmatpush1.msra.mxu0 0.0
  %3678 = vmatprep.subr.mxu0 0.0
  %3679 = vmatpush1.msra.mxu0 0.0
  %3680 = vmatprep.subr.mxu0 0.0
  %3681 = vmatpush1.msra.mxu0 0.0
  %3682 = vmatprep.subr.mxu0 0.0
  %3683 = vmatpush1.msra.mxu0 0.0
  %3684 = vmatprep.subr.mxu0 0.0
  %3685 = vmatpush1.msra.mxu0 0.0
  %3686 = vmatprep.subr.mxu0 0.0
  %3687 = vmatpush1.msra.mxu0 0.0
  %3688 = vmatprep.subr.mxu0 0.0
  %3689 = vmatpush1.msra.mxu0 0.0
  %3690 = vmatprep.subr.mxu0 0.0
  %3691 = vmatpush1.msra.mxu0 0.0
  %3692 = vmatprep.subr.mxu0 0.0
  %3693 = vmatpush1.msra.mxu0 0.0
  %3694 = vmatprep.subr.mxu0 0.0
  %3695 = vmatpush1.msra.mxu0 0.0
  %3696 = vmatprep.subr.mxu0 0.0
  %3697 = vmatpush1.msra.mxu0 0.0
  %3698 = vmatprep.subr.mxu0 0.0
  %3699 = vmatpush1.msra.mxu0 0.0
  %3700 = vmatprep.subr.mxu0 0.0
  %3701 = vmatpush1.msra.mxu0 0.0
  %3702 = vmatprep.subr.mxu0 0.0
  %3703 = vmatpush1.msra.mxu0 0.0
  %3704 = vmatprep.subr.mxu0 0.0
  %3705 = vmatpush1.msra.mxu0 0.0
  %3706 = vmatprep.subr.mxu0 0.0
  %3707 = vmatpush1.msra.mxu0 0.0
  %3708 = vmatprep.subr.mxu0 0.0
  %3709 = vmatpush1.msra.mxu0 0.0
  %3710 = vmatprep.subr.mxu0 0.0
  %3711 = vmatpush1.msra.mxu0 0.0
  %3712 = vmatprep.subr.mxu0 0.0
  %3713 = vmatpush1.msra.mxu0 0.0
  %3714 = vmatprep.subr.mxu0 0.0
  %3715 = vmatpush1.msra.mxu0 0.0
  %3716 = vmatprep.subr.mxu0 0.0
  %3717 = vmatpush1.msra.mxu0 0.0
  %3718 = vmatprep.subr.mxu0 0.0
  %3719 = vmatpush1.msra.mxu0 0.0
  %3720 = vmatprep.mubr.f32.mxu0 0.0
  %3721 = vmatmul.mubr.f32.gmra.mrb[0].mxu0 %v3639
  %v3722 = vpop.f32.mrb[0].mxu0
  %v3723 = vadd.f32 0.0, %v3722
  %v3724 = vpop.f32.mrb[0].mxu0
  %3725 = vmatprep.mubr.f32.mxu0 0.0
  %3726 = vmatmul.mubr.f32.gmra.mrb[0].mxu0 %v3642
  %v3727 = vpop.f32.mrb[0].mxu0
  %v3728 = vadd.f32 0.0, %v3727
  %v3729 = vpop.f32.mrb[0].mxu0
  %3730 = vmatprep.mubr.f32.mxu0 0.0
  %3731 = vmatmul.mubr.f32.gmra.mrb[0].mxu0 %v3645
  %v3732 = vpop.f32.mrb[0].mxu0
  %v3733 = vadd.f32 0.0, %v3732
  %v3734 = vpop.f32.mrb[0].mxu0
  %3735 = vmatprep.mubr.f32.mxu0 0.0
  %3736 = vmatmul.mubr.f32.gmra.mrb[0].mxu0 %v3648
  %v3737 = vpop.f32.mrb[0].mxu0
  %v3738 = vadd.f32 0.0, %v3737
  %v3739 = vpop.f32.mrb[0].mxu0
  %3740 = vmatprep.mubr.f32.mxu0 0.0
  %3741 = vmatmul.mubr.f32.gmra.mrb[0].mxu0 %v3651
  %v3742 = vpop.f32.mrb[0].mxu0
  %v3743 = vadd.f32 0.0, %v3742
  %v3744 = vpop.f32.mrb[0].mxu0
  %3745 = vmatprep.mubr.f32.mxu0 0.0
  %3746 = vmatmul.mubr.f32.gmra.mrb[0].mxu0 %v3654
  %v3747 = vpop.f32.mrb[0].mxu0
  %v3748 = vadd.f32 0.0, %v3747
  %v3749 = vpop.f32.mrb[0].mxu0
  %3750 = vdwg.mxu0
  %3751 = vrot.lane.b32.xlu0 %v2684, 104
  %v3752 = vpop.permute.xlu0 %3751
  %3753 = vrot.lane.b32.xlu0 %v2689, 104
  %v3754 = vpop.permute.xlu0 %3753
  %3755 = vrot.lane.b32.xlu0 %v2694, 104
  %v3756 = vpop.permute.xlu0 %3755
  %3757 = vrot.lane.b32.xlu0 %v2699, 104
  %v3758 = vpop.permute.xlu0 %3757
  %3759 = vrot.lane.b32.xlu0 %v2704, 104
  %v3760 = vpop.permute.xlu0 %3759
  %3761 = vrot.lane.b32.xlu0 %v2709, 104
  %v3762 = vpop.permute.xlu0 %3761
  %3763 = vrot.lane.b32.xlu0 %v2684, 72
  %v3764 = vpop.permute.xlu0 %3763
  %3765 = vrot.lane.b32.xlu0 %v2689, 72
  %v3766 = vpop.permute.xlu0 %3765
  %3767 = vrot.lane.b32.xlu0 %v2694, 72
  %v3768 = vpop.permute.xlu0 %3767
  %3769 = vrot.lane.b32.xlu0 %v2699, 72
  %v3770 = vpop.permute.xlu0 %3769
  %3771 = vrot.lane.b32.xlu0 %v2704, 72
  %v3772 = vpop.permute.xlu0 %3771
  %3773 = vrot.lane.b32.xlu0 %v2709, 72
  %v3774 = vpop.permute.xlu0 %3773
  %v3775 = vsel %vm541, %v3752, 0
  %v3777 = vsel %vm541, %v3754, 0
  %v3779 = vsel %vm541, %v3756, 0
  %v3781 = vsel %vm541, %v3758, 0
  %v3783 = vsel %vm541, %v3760, 0
  %v3785 = vsel %vm541, %v3762, 0
  %v3787 = vsel %vm541, %v3764, 0
  %v3789 = vsel %vm541, %v3766, 0
  %v3791 = vsel %vm541, %v3768, 0
  %v3793 = vsel %vm541, %v3770, 0
  %v3795 = vsel %vm541, %v3772, 0
  %v3797 = vsel %vm541, %v3774, 0
  %3799 = vmatprep.subr.mxu0 0.0
  %3800 = vmatpush1.xpose.msra.mxu0 %v3787
  %3801 = vmatprep.subr.mxu0 0.0
  %3802 = vmatpush1.xpose.msra.mxu0 %v3789
  %3803 = vmatprep.subr.mxu0 0.0
  %3804 = vmatpush1.xpose.msra.mxu0 %v3791
  %3805 = vmatprep.subr.mxu0 0.0
  %3806 = vmatpush1.xpose.msra.mxu0 %v3793
  %3807 = vmatprep.subr.mxu0 0.0
  %3808 = vmatpush1.xpose.msra.mxu0 %v3795
  %3809 = vmatprep.subr.mxu0 0.0
  %3810 = vmatpush1.xpose.msra.mxu0 %v3797
  %3811 = vmatprep.subr.mxu0 0.0
  %3812 = vmatpush1.xpose.msra.mxu0 0.0
  %3813 = vmatprep.subr.mxu0 0.0
  %3814 = vmatpush1.xpose.msra.mxu0 0.0
  %3815 = vmatprep.subr.mxu0 0.0
  %3816 = vmatpush1.xpose.msra.mxu0 0.0
  %3817 = vmatprep.subr.mxu0 0.0
  %3818 = vmatpush1.xpose.msra.mxu0 0.0
  %3819 = vmatprep.subr.mxu0 0.0
  %3820 = vmatpush1.xpose.msra.mxu0 0.0
  %3821 = vmatprep.subr.mxu0 0.0
  %3822 = vmatpush1.xpose.msra.mxu0 0.0
  %3823 = vmatprep.subr.mxu0 0.0
  %3824 = vmatpush1.xpose.msra.mxu0 0.0
  %3825 = vmatprep.subr.mxu0 0.0
  %3826 = vmatpush1.xpose.msra.mxu0 0.0
  %3827 = vmatprep.subr.mxu0 0.0
  %3828 = vmatpush1.xpose.msra.mxu0 0.0
  %3829 = vmatprep.subr.mxu0 0.0
  %3830 = vmatpush1.xpose.msra.mxu0 0.0
  %3831 = vmatprep.subr.mxu0 0.0
  %3832 = vmatpush1.xpose.msra.mxu0 0.0
  %3833 = vmatprep.subr.mxu0 0.0
  %3834 = vmatpush1.xpose.msra.mxu0 0.0
  %3835 = vmatprep.subr.mxu0 0.0
  %3836 = vmatpush1.xpose.msra.mxu0 0.0
  %3837 = vmatprep.subr.mxu0 0.0
  %3838 = vmatpush1.xpose.msra.mxu0 0.0
  %3839 = vmatprep.subr.mxu0 0.0
  %3840 = vmatpush1.xpose.msra.mxu0 0.0
  %3841 = vmatprep.subr.mxu0 0.0
  %3842 = vmatpush1.xpose.msra.mxu0 0.0
  %3843 = vmatprep.subr.mxu0 0.0
  %3844 = vmatpush1.xpose.msra.mxu0 0.0
  %3845 = vmatprep.subr.mxu0 0.0
  %3846 = vmatpush1.xpose.msra.mxu0 0.0
  %3847 = vmatprep.subr.mxu0 0.0
  %3848 = vmatpush1.xpose.msra.mxu0 0.0
  %3849 = vmatprep.subr.mxu0 0.0
  %3850 = vmatpush1.xpose.msra.mxu0 0.0
  %3851 = vmatprep.subr.mxu0 0.0
  %3852 = vmatpush1.xpose.msra.mxu0 0.0
  %3853 = vmatprep.subr.mxu0 0.0
  %3854 = vmatpush1.xpose.msra.mxu0 0.0
  %3855 = vmatprep.subr.mxu0 0.0
  %3856 = vmatpush1.xpose.msra.mxu0 0.0
  %3857 = vmatprep.subr.mxu0 0.0
  %3858 = vmatpush1.xpose.msra.mxu0 0.0
  %3859 = vmatprep.subr.mxu0 0.0
  %3860 = vmatpush1.xpose.msra.mxu0 0.0
  %3861 = vmatprep.subr.mxu0 0.0
  %3862 = vmatpush1.xpose.msra.mxu0 0.0
  %3863 = vmatprep.mubr.f32.mxu0 0.0
  %3864 = vmatmul.mubr.f32.gmra.mrb[0].mxu0 %v3775
  %v3865 = vpop.f32.mrb[0].mxu0
  %v3866 = vadd.f32 0.0, %v3865
  %v3867 = vpop.f32.mrb[0].mxu0
  %3868 = vmatprep.mubr.f32.mxu0 0.0
  %3869 = vmatmul.mubr.f32.gmra.mrb[0].mxu0 %v3777
  %v3870 = vpop.f32.mrb[0].mxu0
  %v3871 = vadd.f32 0.0, %v3870
  %v3872 = vpop.f32.mrb[0].mxu0
  %3873 = vmatprep.mubr.f32.mxu0 0.0
  %3874 = vmatmul.mubr.f32.gmra.mrb[0].mxu0 %v3779
  %v3875 = vpop.f32.mrb[0].mxu0
  %v3876 = vadd.f32 0.0, %v3875
  %v3877 = vpop.f32.mrb[0].mxu0
  %3878 = vmatprep.mubr.f32.mxu0 0.0
  %3879 = vmatmul.mubr.f32.gmra.mrb[0].mxu0 %v3781
  %v3880 = vpop.f32.mrb[0].mxu0
  %v3881 = vadd.f32 0.0, %v3880
  %v3882 = vpop.f32.mrb[0].mxu0
  %3883 = vmatprep.mubr.f32.mxu0 0.0
  %3884 = vmatmul.mubr.f32.gmra.mrb[0].mxu0 %v3783
  %v3885 = vpop.f32.mrb[0].mxu0
  %v3886 = vadd.f32 0.0, %v3885
  %v3887 = vpop.f32.mrb[0].mxu0
  %3888 = vmatprep.mubr.f32.mxu0 0.0
  %3889 = vmatmul.mubr.f32.gmra.mrb[0].mxu0 %v3785
  %v3890 = vpop.f32.mrb[0].mxu0
  %v3891 = vadd.f32 0.0, %v3890
  %v3892 = vpop.f32.mrb[0].mxu0
  %3893 = vdwg.mxu0
  %3894 = vst.msk [vmem:[%s17 + $0x3] sm:$0x1] %vm2849, %v3866
  %3895 = vst.msk [vmem:[%s17 + $0x7] sm:$0x1] %vm2849, %v3881
  %v3896 = vadd.f32 %v3866, %v295
  %v3897 = vadd.f32 %v3871, %v296
  %v3898 = vadd.f32 %v3876, %v297
  %v3899 = vadd.f32 %v3881, %v298
  %v3900 = vadd.f32 %v3886, %v299
  %v3901 = vadd.f32 %v3891, %v300
  %v3902 = vsel %vm65, %v3896, -inf
  %3903 = vmax.xlane.f32.xlu0 %v3902
  %v3904 = vpop.xlane.xlu0 %3903
  %v3905 = vsel %vm65, %v3897, -inf
  %3906 = vmax.xlane.f32.xlu0 %v3905
  %v3907 = vpop.xlane.xlu0 %3906
  %v3908 = vsel %vm65, %v3898, -inf
  %3909 = vmax.xlane.f32.xlu0 %v3908
  %v3910 = vpop.xlane.xlu0 %3909
  %v3911 = vsel %vm65, %v3899, -inf
  %3912 = vmax.xlane.f32.xlu0 %v3911
  %v3913 = vpop.xlane.xlu0 %3912
  %v3914 = vsel %vm65, %v3900, -inf
  %3915 = vmax.xlane.f32.xlu0 %v3914
  %v3916 = vpop.xlane.xlu0 %3915
  %v3917 = vsel %vm65, %v3901, -inf
  %3918 = vmax.xlane.f32.xlu0 %v3917
  %v3919 = vpop.xlane.xlu0 %3918
  %v3920 = vsub.f32 %v3896, %v3904
  %v3921 = vsub.f32 %v3897, %v3907
  %v3922 = vsub.f32 %v3898, %v3910
  %v3923 = vsub.f32 %v3899, %v3913
  %v3924 = vsub.f32 %v3900, %v3916
  %v3925 = vsub.f32 %v3901, %v3919
  %v3926 = vmul.f32 %v3920, 1.442695
  %v3927 = vpow.pop %v3926
  %v3928 = vmul.f32 %v3921, 1.442695
  %v3929 = vpow.pop %v3928
  %v3930 = vmul.f32 %v3922, 1.442695
  %v3931 = vpow.pop %v3930
  %v3932 = vmul.f32 %v3923, 1.442695
  %v3933 = vpow.pop %v3932
  %v3934 = vmul.f32 %v3924, 1.442695
  %v3935 = vpow.pop %v3934
  %v3936 = vmul.f32 %v3925, 1.442695
  %v3937 = vpow.pop %v3936
  %v3938 = vsel %vm65, %v3927, 0.0
  %3939 = vadd.xlane.f32.xlu0 %v3938
  %v3940 = vpop.xlane.xlu0 %3939
  %v3941 = vsel %vm65, %v3929, 0.0
  %3942 = vadd.xlane.f32.xlu0 %v3941
  %v3943 = vpop.xlane.xlu0 %3942
  %v3944 = vsel %vm65, %v3931, 0.0
  %3945 = vadd.xlane.f32.xlu0 %v3944
  %v3946 = vpop.xlane.xlu0 %3945
  %v3947 = vsel %vm65, %v3933, 0.0
  %3948 = vadd.xlane.f32.xlu0 %v3947
  %v3949 = vpop.xlane.xlu0 %3948
  %v3950 = vsel %vm65, %v3935, 0.0
  %3951 = vadd.xlane.f32.xlu0 %v3950
  %v3952 = vpop.xlane.xlu0 %3951
  %v3953 = vsel %vm65, %v3937, 0.0
  %3954 = vadd.xlane.f32.xlu0 %v3953
  %v3955 = vpop.xlane.xlu0 %3954
  %v3956 = vrcp.pop %v3940
  %v3957 = vmul.f32 %v3927, %v3956
  %v3958 = vrcp.pop %v3943
  %v3959 = vmul.f32 %v3929, %v3958
  %v3960 = vrcp.pop %v3946
  %v3961 = vmul.f32 %v3931, %v3960
  %v3962 = vrcp.pop %v3949
  %v3963 = vmul.f32 %v3933, %v3962
  %v3964 = vrcp.pop %v3952
  %v3965 = vmul.f32 %v3935, %v3964
  %v3966 = vrcp.pop %v3955
  %v3967 = vmul.f32 %v3937, %v3966
  %3968 = vrot.lane.b32.xlu0 %v2684, 40
  %v3969 = vpop.permute.xlu0 %3968
  %3970 = vrot.lane.b32.xlu0 %v2689, 40
  %v3971 = vpop.permute.xlu0 %3970
  %3972 = vrot.lane.b32.xlu0 %v2694, 40
  %v3973 = vpop.permute.xlu0 %3972
  %3974 = vrot.lane.b32.xlu0 %v2699, 40
  %v3975 = vpop.permute.xlu0 %3974
  %3976 = vrot.lane.b32.xlu0 %v2704, 40
  %v3977 = vpop.permute.xlu0 %3976
  %3978 = vrot.lane.b32.xlu0 %v2709, 40
  %v3979 = vpop.permute.xlu0 %3978
  %v3987 = vsel %vm65, %v3957, 0
  %v3990 = vsel %vm65, %v3959, 0
  %v3993 = vsel %vm65, %v3961, 0
  %v3996 = vsel %vm65, %v3963, 0
  %v3999 = vsel %vm65, %v3965, 0
  %v4002 = vsel %vm65, %v3967, 0
  %4004 = vmatprep.subr.mxu0 0.0
  %4005 = vmatpush1.msra.mxu0 %v3969
  %4006 = vmatprep.subr.mxu0 0.0
  %4007 = vmatpush1.msra.mxu0 %v3971
  %4008 = vmatprep.subr.mxu0 0.0
  %4009 = vmatpush1.msra.mxu0 %v3973
  %4010 = vmatprep.subr.mxu0 0.0
  %4011 = vmatpush1.msra.mxu0 %v3975
  %4012 = vmatprep.subr.mxu0 0.0
  %4013 = vmatpush1.msra.mxu0 %v3977
  %4014 = vmatprep.subr.mxu0 0.0
  %4015 = vmatpush1.msra.mxu0 %v3979
  %4016 = vmatprep.subr.mxu0 0.0
  %4017 = vmatpush1.msra.mxu0 0.0
  %4018 = vmatprep.subr.mxu0 0.0
  %4019 = vmatpush1.msra.mxu0 0.0
  %4020 = vmatprep.subr.mxu0 0.0
  %4021 = vmatpush1.msra.mxu0 0.0
  %4022 = vmatprep.subr.mxu0 0.0
  %4023 = vmatpush1.msra.mxu0 0.0
  %4024 = vmatprep.subr.mxu0 0.0
  %4025 = vmatpush1.msra.mxu0 0.0
  %4026 = vmatprep.subr.mxu0 0.0
  %4027 = vmatpush1.msra.mxu0 0.0
  %4028 = vmatprep.subr.mxu0 0.0
  %4029 = vmatpush1.msra.mxu0 0.0
  %4030 = vmatprep.subr.mxu0 0.0
  %4031 = vmatpush1.msra.mxu0 0.0
  %4032 = vmatprep.subr.mxu0 0.0
  %4033 = vmatpush1.msra.mxu0 0.0
  %4034 = vmatprep.subr.mxu0 0.0
  %4035 = vmatpush1.msra.mxu0 0.0
  %4036 = vmatprep.subr.mxu0 0.0
  %4037 = vmatpush1.msra.mxu0 0.0
  %4038 = vmatprep.subr.mxu0 0.0
  %4039 = vmatpush1.msra.mxu0 0.0
  %4040 = vmatprep.subr.mxu0 0.0
  %4041 = vmatpush1.msra.mxu0 0.0
  %4042 = vmatprep.subr.mxu0 0.0
  %4043 = vmatpush1.msra.mxu0 0.0
  %4044 = vmatprep.subr.mxu0 0.0
  %4045 = vmatpush1.msra.mxu0 0.0
  %4046 = vmatprep.subr.mxu0 0.0
  %4047 = vmatpush1.msra.mxu0 0.0
  %4048 = vmatprep.subr.mxu0 0.0
  %4049 = vmatpush1.msra.mxu0 0.0
  %4050 = vmatprep.subr.mxu0 0.0
  %4051 = vmatpush1.msra.mxu0 0.0
  %4052 = vmatprep.subr.mxu0 0.0
  %4053 = vmatpush1.msra.mxu0 0.0
  %4054 = vmatprep.subr.mxu0 0.0
  %4055 = vmatpush1.msra.mxu0 0.0
  %4056 = vmatprep.subr.mxu0 0.0
  %4057 = vmatpush1.msra.mxu0 0.0
  %4058 = vmatprep.subr.mxu0 0.0
  %4059 = vmatpush1.msra.mxu0 0.0
  %4060 = vmatprep.subr.mxu0 0.0
  %4061 = vmatpush1.msra.mxu0 0.0
  %4062 = vmatprep.subr.mxu0 0.0
  %4063 = vmatpush1.msra.mxu0 0.0
  %4064 = vmatprep.subr.mxu0 0.0
  %4065 = vmatpush1.msra.mxu0 0.0
  %4066 = vmatprep.subr.mxu0 0.0
  %4067 = vmatpush1.msra.mxu0 0.0
  %4068 = vmatprep.mubr.f32.mxu0 0.0
  %4069 = vmatmul.mubr.f32.gmra.mrb[0].mxu0 %v3987
  %v4070 = vpop.f32.mrb[0].mxu0
  %v4071 = vadd.f32 0.0, %v4070
  %v4072 = vpop.f32.mrb[0].mxu0
  %4073 = vmatprep.mubr.f32.mxu0 0.0
  %4074 = vmatmul.mubr.f32.gmra.mrb[0].mxu0 %v3990
  %v4075 = vpop.f32.mrb[0].mxu0
  %v4076 = vadd.f32 0.0, %v4075
  %v4077 = vpop.f32.mrb[0].mxu0
  %4078 = vmatprep.mubr.f32.mxu0 0.0
  %4079 = vmatmul.mubr.f32.gmra.mrb[0].mxu0 %v3993
  %v4080 = vpop.f32.mrb[0].mxu0
  %v4081 = vadd.f32 0.0, %v4080
  %v4082 = vpop.f32.mrb[0].mxu0
  %4083 = vmatprep.mubr.f32.mxu0 0.0
  %4084 = vmatmul.mubr.f32.gmra.mrb[0].mxu0 %v3996
  %v4085 = vpop.f32.mrb[0].mxu0
  %v4086 = vadd.f32 0.0, %v4085
  %v4087 = vpop.f32.mrb[0].mxu0
  %4088 = vmatprep.mubr.f32.mxu0 0.0
  %4089 = vmatmul.mubr.f32.gmra.mrb[0].mxu0 %v3999
  %v4090 = vpop.f32.mrb[0].mxu0
  %v4091 = vadd.f32 0.0, %v4090
  %v4092 = vpop.f32.mrb[0].mxu0
  %4093 = vmatprep.mubr.f32.mxu0 0.0
  %4094 = vmatmul.mubr.f32.gmra.mrb[0].mxu0 %v4002
  %v4095 = vpop.f32.mrb[0].mxu0
  %v4096 = vadd.f32 0.0, %v4095
  %v4097 = vpop.f32.mrb[0].mxu0
  %4098 = vdwg.mxu0
  %4105 = vrot.lane.b32.xlu0 %v3375, 8
  %v4106 = vpop.permute.xlu0 %4105
  %4107 = vrot.lane.b32.xlu0 %v3380, 8
  %v4108 = vpop.permute.xlu0 %4107
  %4109 = vrot.lane.b32.xlu0 %v3385, 8
  %v4110 = vpop.permute.xlu0 %4109
  %4111 = vrot.lane.b32.xlu0 %v3390, 8
  %v4112 = vpop.permute.xlu0 %4111
  %4113 = vrot.lane.b32.xlu0 %v3395, 8
  %v4114 = vpop.permute.xlu0 %4113
  %4115 = vrot.lane.b32.xlu0 %v3400, 8
  %v4116 = vpop.permute.xlu0 %4115
  %4129 = vrot.lane.b32.xlu0 %v3723, 16
  %v4130 = vpop.permute.xlu0 %4129
  %4131 = vrot.lane.b32.xlu0 %v3728, 16
  %v4132 = vpop.permute.xlu0 %4131
  %4133 = vrot.lane.b32.xlu0 %v3733, 16
  %v4134 = vpop.permute.xlu0 %4133
  %4135 = vrot.lane.b32.xlu0 %v3738, 16
  %v4136 = vpop.permute.xlu0 %4135
  %4137 = vrot.lane.b32.xlu0 %v3743, 16
  %v4138 = vpop.permute.xlu0 %4137
  %4139 = vrot.lane.b32.xlu0 %v3748, 16
  %v4140 = vpop.permute.xlu0 %4139
  %4153 = vrot.lane.b32.xlu0 %v4071, 24
  %v4154 = vpop.permute.xlu0 %4153
  %4155 = vrot.lane.b32.xlu0 %v4076, 24
  %v4156 = vpop.permute.xlu0 %4155
  %4157 = vrot.lane.b32.xlu0 %v4081, 24
  %v4158 = vpop.permute.xlu0 %4157
  %4159 = vrot.lane.b32.xlu0 %v4086, 24
  %v4160 = vpop.permute.xlu0 %4159
  %4161 = vrot.lane.b32.xlu0 %v4091, 24
  %v4162 = vpop.permute.xlu0 %4161
  %4163 = vrot.lane.b32.xlu0 %v4096, 24
  %v4164 = vpop.permute.xlu0 %4163
  %v4171 = vsel %vm541, %v3027, %v4106
  %v4172 = vsel %vm541, %v3032, %v4108
  %v4173 = vsel %vm541, %v3037, %v4110
  %v4174 = vsel %vm541, %v3042, %v4112
  %v4175 = vsel %vm541, %v3047, %v4114
  %v4176 = vsel %vm541, %v3052, %v4116
  %v4177 = vsel %vm1956, %v4171, %v4130
  %v4178 = vsel %vm1956, %v4172, %v4132
  %v4179 = vsel %vm1956, %v4173, %v4134
  %v4180 = vsel %vm1956, %v4174, %v4136
  %v4181 = vsel %vm1956, %v4175, %v4138
  %v4182 = vsel %vm1956, %v4176, %v4140
  %v4183 = vsel %vm1963, %v4177, %v4154
  %v4184 = vsel %vm1963, %v4178, %v4156
  %v4185 = vsel %vm1963, %v4179, %v4158
  %v4186 = vsel %vm1963, %v4180, %v4160
  %v4187 = vsel %vm1963, %v4181, %v4162
  %v4188 = vsel %vm1963, %v4182, %v4164
  %s4189 = scalar_lea.vmem %s8, 32
  %v4190 = vld [vmem:[%s4189] sm:$0xff]
  %v4191 = vld [vmem:[%s4189 + $0x8] sm:$0xff]
  %v4192 = vld [vmem:[%s4189 + $0x10] sm:$0xff]
  %v4193 = vld [vmem:[%s4189 + $0x18] sm:$0xff]
  %v4195 = vsel %vm175, %v4183, 0
  %v4198 = vsel %vm175, %v4184, 0
  %v4201 = vsel %vm175, %v4185, 0
  %v4204 = vsel %vm175, %v4186, 0
  %v4207 = vsel %vm175, %v4187, 0
  %v4210 = vsel %vm175, %v4188, 0
  %4212 = vmatprep.subr.mxu0 0.0
  %4213 = vmatpush1.msra.mxu0 %v4190
  %4214 = vmatprep.subr.mxu0 0.0
  %4215 = vmatpush1.msra.mxu0 %v4191
  %4216 = vmatprep.subr.mxu0 0.0
  %4217 = vmatpush1.msra.mxu0 %v4192
  %4218 = vmatprep.subr.mxu0 0.0
  %4219 = vmatpush1.msra.mxu0 %v4193
  %4220 = vmatprep.subr.mxu0 0.0
  %4221 = vmatpush1.msra.mxu0 0.0
  %4222 = vmatprep.subr.mxu0 0.0
  %4223 = vmatpush1.msra.mxu0 0.0
  %4224 = vmatprep.subr.mxu0 0.0
  %4225 = vmatpush1.msra.mxu0 0.0
  %4226 = vmatprep.subr.mxu0 0.0
  %4227 = vmatpush1.msra.mxu0 0.0
  %4228 = vmatprep.subr.mxu0 0.0
  %4229 = vmatpush1.msra.mxu0 0.0
  %4230 = vmatprep.subr.mxu0 0.0
  %4231 = vmatpush1.msra.mxu0 0.0
  %4232 = vmatprep.subr.mxu0 0.0
  %4233 = vmatpush1.msra.mxu0 0.0
  %4234 = vmatprep.subr.mxu0 0.0
  %4235 = vmatpush1.msra.mxu0 0.0
  %4236 = vmatprep.subr.mxu0 0.0
  %4237 = vmatpush1.msra.mxu0 0.0
  %4238 = vmatprep.subr.mxu0 0.0
  %4239 = vmatpush1.msra.mxu0 0.0
  %4240 = vmatprep.subr.mxu0 0.0
  %4241 = vmatpush1.msra.mxu0 0.0
  %4242 = vmatprep.subr.mxu0 0.0
  %4243 = vmatpush1.msra.mxu0 0.0
  %4244 = vmatprep.subr.mxu0 0.0
  %4245 = vmatpush1.msra.mxu0 0.0
  %4246 = vmatprep.subr.mxu0 0.0
  %4247 = vmatpush1.msra.mxu0 0.0
  %4248 = vmatprep.subr.mxu0 0.0
  %4249 = vmatpush1.msra.mxu0 0.0
  %4250 = vmatprep.subr.mxu0 0.0
  %4251 = vmatpush1.msra.mxu0 0.0
  %4252 = vmatprep.subr.mxu0 0.0
  %4253 = vmatpush1.msra.mxu0 0.0
  %4254 = vmatprep.subr.mxu0 0.0
  %4255 = vmatpush1.msra.mxu0 0.0
  %4256 = vmatprep.subr.mxu0 0.0
  %4257 = vmatpush1.msra.mxu0 0.0
  %4258 = vmatprep.subr.mxu0 0.0
  %4259 = vmatpush1.msra.mxu0 0.0
  %4260 = vmatprep.subr.mxu0 0.0
  %4261 = vmatpush1.msra.mxu0 0.0
  %4262 = vmatprep.subr.mxu0 0.0
  %4263 = vmatpush1.msra.mxu0 0.0
  %4264 = vmatprep.subr.mxu0 0.0
  %4265 = vmatpush1.msra.mxu0 0.0
  %4266 = vmatprep.subr.mxu0 0.0
  %4267 = vmatpush1.msra.mxu0 0.0
  %4268 = vmatprep.subr.mxu0 0.0
  %4269 = vmatpush1.msra.mxu0 0.0
  %4270 = vmatprep.subr.mxu0 0.0
  %4271 = vmatpush1.msra.mxu0 0.0
  %4272 = vmatprep.subr.mxu0 0.0
  %4273 = vmatpush1.msra.mxu0 0.0
  %4274 = vmatprep.subr.mxu0 0.0
  %4275 = vmatpush1.msra.mxu0 0.0
  %4276 = vmatprep.mubr.f32.mxu0 0.0
  %4277 = vmatmul.mubr.f32.gmra.mrb[0].mxu0 %v4195
  %v4278 = vpop.f32.mrb[0].mxu0
  %v4279 = vadd.f32 0.0, %v4278
  %v4280 = vpop.f32.mrb[0].mxu0
  %4281 = vmatprep.mubr.f32.mxu0 0.0
  %4282 = vmatmul.mubr.f32.gmra.mrb[0].mxu0 %v4198
  %v4283 = vpop.f32.mrb[0].mxu0
  %v4284 = vadd.f32 0.0, %v4283
  %v4285 = vpop.f32.mrb[0].mxu0
  %4286 = vmatprep.mubr.f32.mxu0 0.0
  %4287 = vmatmul.mubr.f32.gmra.mrb[0].mxu0 %v4201
  %v4288 = vpop.f32.mrb[0].mxu0
  %v4289 = vadd.f32 0.0, %v4288
  %v4290 = vpop.f32.mrb[0].mxu0
  %4291 = vmatprep.mubr.f32.mxu0 0.0
  %4292 = vmatmul.mubr.f32.gmra.mrb[0].mxu0 %v4204
  %v4293 = vpop.f32.mrb[0].mxu0
  %v4294 = vadd.f32 0.0, %v4293
  %v4295 = vpop.f32.mrb[0].mxu0
  %4296 = vmatprep.mubr.f32.mxu0 0.0
  %4297 = vmatmul.mubr.f32.gmra.mrb[0].mxu0 %v4207
  %v4298 = vpop.f32.mrb[0].mxu0
  %v4299 = vadd.f32 0.0, %v4298
  %v4300 = vpop.f32.mrb[0].mxu0
  %4301 = vmatprep.mubr.f32.mxu0 0.0
  %4302 = vmatmul.mubr.f32.gmra.mrb[0].mxu0 %v4210
  %v4303 = vpop.f32.mrb[0].mxu0
  %v4304 = vadd.f32 0.0, %v4303
  %v4305 = vpop.f32.mrb[0].mxu0
  %4306 = vdwg.mxu0
  %v4307 = vadd.f32 %v2482, %v4279
  %v4308 = vadd.f32 %v2483, %v4284
  %v4309 = vadd.f32 %v2484, %v4289
  %v4310 = vadd.f32 %v2485, %v4294
  %v4311 = vadd.f32 %v2486, %v4299
  %v4312 = vadd.f32 %v2487, %v4304
  %s4313 = scalar_lea.vmem %s9, 1
  %v4314 = vld [vmem:[%s4313] sm:$0x1]
  %v4316 = vlaneseq
  %v4317 = vshrl.u32 %v4316, 7
  %v4318 = vsub.s32 0, %v4317
  %v4319 = vrot.slane %v4314, %v4318
  %v4321 = vadd.f32 %v4307, %v4319
  %v4322 = vadd.f32 %v4308, %v4319
  %v4323 = vadd.f32 %v4309, %v4319
  %v4324 = vadd.f32 %v4310, %v4319
  %v4325 = vadd.f32 %v4311, %v4319
  %v4326 = vadd.f32 %v4312, %v4319
  %s4327 = scalar_lea.vmem %s10, 1
  %v4328 = vld [vmem:[%s4327] sm:$0x1]
  %s4329 = scalar_lea.vmem %s11, 1
  %v4330 = vld [vmem:[%s4329] sm:$0x1]
  %v4331 = vsel %vm175, %v4321, 0.0
  %4332 = vadd.xlane.f32.xlu0 %v4331
  %v4333 = vpop.xlane.xlu0 %4332
  %v4334 = vsel %vm175, %v4322, 0.0
  %4335 = vadd.xlane.f32.xlu0 %v4334
  %v4336 = vpop.xlane.xlu0 %4335
  %v4337 = vsel %vm175, %v4323, 0.0
  %4338 = vadd.xlane.f32.xlu0 %v4337
  %v4339 = vpop.xlane.xlu0 %4338
  %v4340 = vsel %vm175, %v4324, 0.0
  %4341 = vadd.xlane.f32.xlu0 %v4340
  %v4342 = vpop.xlane.xlu0 %4341
  %v4343 = vsel %vm175, %v4325, 0.0
  %4344 = vadd.xlane.f32.xlu0 %v4343
  %v4345 = vpop.xlane.xlu0 %4344
  %v4346 = vsel %vm175, %v4326, 0.0
  %4347 = vadd.xlane.f32.xlu0 %v4346
  %v4348 = vpop.xlane.xlu0 %4347
  %v4349 = vmul.f32 %v4333, %v321
  %v4350 = vmul.f32 %v4336, %v321
  %v4351 = vmul.f32 %v4339, %v321
  %v4352 = vmul.f32 %v4342, %v321
  %v4353 = vmul.f32 %v4345, %v321
  %v4354 = vmul.f32 %v4348, %v321
  %v4355 = vsub.f32 %v4321, %v4349
  %v4356 = vsub.f32 %v4322, %v4350
  %v4357 = vsub.f32 %v4323, %v4351
  %v4358 = vsub.f32 %v4324, %v4352
  %v4359 = vsub.f32 %v4325, %v4353
  %v4360 = vsub.f32 %v4326, %v4354
  %v4361 = vmul.f32 %v4355, %v4355
  %v4362 = vmul.f32 %v4356, %v4356
  %v4363 = vmul.f32 %v4357, %v4357
  %v4364 = vmul.f32 %v4358, %v4358
  %v4365 = vmul.f32 %v4359, %v4359
  %v4366 = vmul.f32 %v4360, %v4360
  %v4367 = vsel %vm175, %v4361, 0.0
  %4368 = vadd.xlane.f32.xlu0 %v4367
  %v4369 = vpop.xlane.xlu0 %4368
  %v4370 = vsel %vm175, %v4362, 0.0
  %4371 = vadd.xlane.f32.xlu0 %v4370
  %v4372 = vpop.xlane.xlu0 %4371
  %v4373 = vsel %vm175, %v4363, 0.0
  %4374 = vadd.xlane.f32.xlu0 %v4373
  %v4375 = vpop.xlane.xlu0 %4374
  %v4376 = vsel %vm175, %v4364, 0.0
  %4377 = vadd.xlane.f32.xlu0 %v4376
  %v4378 = vpop.xlane.xlu0 %4377
  %v4379 = vsel %vm175, %v4365, 0.0
  %4380 = vadd.xlane.f32.xlu0 %v4379
  %v4381 = vpop.xlane.xlu0 %4380
  %v4382 = vsel %vm175, %v4366, 0.0
  %4383 = vadd.xlane.f32.xlu0 %v4382
  %v4384 = vpop.xlane.xlu0 %4383
  %v4385 = vmul.f32 %v4369, %v321
  %v4386 = vmul.f32 %v4372, %v321
  %v4387 = vmul.f32 %v4375, %v321
  %v4388 = vmul.f32 %v4378, %v321
  %v4389 = vmul.f32 %v4381, %v321
  %v4390 = vmul.f32 %v4384, %v321
  %v4391 = vadd.f32 %v4385, 1e-05
  %v4392 = vadd.f32 %v4386, 1e-05
  %v4393 = vadd.f32 %v4387, 1e-05
  %v4394 = vadd.f32 %v4388, 1e-05
  %v4395 = vadd.f32 %v4389, 1e-05
  %v4396 = vadd.f32 %v4390, 1e-05
  %v4397 = vrsqrt.pop %v4391
  %v4398 = vrsqrt.pop %v4392
  %v4399 = vrsqrt.pop %v4393
  %v4400 = vrsqrt.pop %v4394
  %v4401 = vrsqrt.pop %v4395
  %v4402 = vrsqrt.pop %v4396
  %v4403 = vmul.f32 %v4355, %v4397
  %v4404 = vmul.f32 %v4356, %v4398
  %v4405 = vmul.f32 %v4357, %v4399
  %v4406 = vmul.f32 %v4358, %v4400
  %v4407 = vmul.f32 %v4359, %v4401
  %v4408 = vmul.f32 %v4360, %v4402
  %v4410 = vlaneseq
  %v4411 = vshrl.u32 %v4410, 7
  %v4412 = vsub.s32 0, %v4411
  %v4413 = vrot.slane %v4328, %v4412
  %v4415 = vmul.f32 %v4403, %v4413
  %v4416 = vmul.f32 %v4404, %v4413
  %v4417 = vmul.f32 %v4405, %v4413
  %v4418 = vmul.f32 %v4406, %v4413
  %v4419 = vmul.f32 %v4407, %v4413
  %v4420 = vmul.f32 %v4408, %v4413
  %v4422 = vlaneseq
  %v4423 = vshrl.u32 %v4422, 7
  %v4424 = vsub.s32 0, %v4423
  %v4425 = vrot.slane %v4330, %v4424
  %v4427 = vadd.f32 %v4415, %v4425
  %v4428 = vadd.f32 %v4416, %v4425
  %v4429 = vadd.f32 %v4417, %v4425
  %v4430 = vadd.f32 %v4418, %v4425
  %v4431 = vadd.f32 %v4419, %v4425
  %v4432 = vadd.f32 %v4420, %v4425
  %s4433 = scalar_lea.vmem %s12, 32
  %v4434 = vld [vmem:[%s4433] sm:$0xff]
  %v4435 = vld [vmem:[%s4433 + $0x8] sm:$0xff]
  %v4436 = vld [vmem:[%s4433 + $0x10] sm:$0xff]
  %v4437 = vld [vmem:[%s4433 + $0x18] sm:$0xff]
  %s4438 = scalar_lea.vmem %s13, 1
  %v4439 = vld [vmem:[%s4438] sm:$0x1]
  %v4441 = vlaneseq
  %v4442 = vshrl.u32 %v4441, 7
  %v4443 = vsub.s32 0, %v4442
  %v4444 = vrot.slane %v4439, %v4443
  %v4447 = vsel %vm175, %v4427, 0
  %v4450 = vsel %vm175, %v4428, 0
  %v4453 = vsel %vm175, %v4429, 0
  %v4456 = vsel %vm175, %v4430, 0
  %v4459 = vsel %vm175, %v4431, 0
  %v4462 = vsel %vm175, %v4432, 0
  %4464 = vmatprep.subr.mxu0 0.0
  %4465 = vmatpush1.msra.mxu0 %v4434
  %4466 = vmatprep.subr.mxu0 0.0
  %4467 = vmatpush1.msra.mxu0 %v4435
  %4468 = vmatprep.subr.mxu0 0.0
  %4469 = vmatpush1.msra.mxu0 %v4436
  %4470 = vmatprep.subr.mxu0 0.0
  %4471 = vmatpush1.msra.mxu0 %v4437
  %4472 = vmatprep.subr.mxu0 0.0
  %4473 = vmatpush1.msra.mxu0 0.0
  %4474 = vmatprep.subr.mxu0 0.0
  %4475 = vmatpush1.msra.mxu0 0.0
  %4476 = vmatprep.subr.mxu0 0.0
  %4477 = vmatpush1.msra.mxu0 0.0
  %4478 = vmatprep.subr.mxu0 0.0
  %4479 = vmatpush1.msra.mxu0 0.0
  %4480 = vmatprep.subr.mxu0 0.0
  %4481 = vmatpush1.msra.mxu0 0.0
  %4482 = vmatprep.subr.mxu0 0.0
  %4483 = vmatpush1.msra.mxu0 0.0
  %4484 = vmatprep.subr.mxu0 0.0
  %4485 = vmatpush1.msra.mxu0 0.0
  %4486 = vmatprep.subr.mxu0 0.0
  %4487 = vmatpush1.msra.mxu0 0.0
  %4488 = vmatprep.subr.mxu0 0.0
  %4489 = vmatpush1.msra.mxu0 0.0
  %4490 = vmatprep.subr.mxu0 0.0
  %4491 = vmatpush1.msra.mxu0 0.0
  %4492 = vmatprep.subr.mxu0 0.0
  %4493 = vmatpush1.msra.mxu0 0.0
  %4494 = vmatprep.subr.mxu0 0.0
  %4495 = vmatpush1.msra.mxu0 0.0
  %4496 = vmatprep.subr.mxu0 0.0
  %4497 = vmatpush1.msra.mxu0 0.0
  %4498 = vmatprep.subr.mxu0 0.0
  %4499 = vmatpush1.msra.mxu0 0.0
  %4500 = vmatprep.subr.mxu0 0.0
  %4501 = vmatpush1.msra.mxu0 0.0
  %4502 = vmatprep.subr.mxu0 0.0
  %4503 = vmatpush1.msra.mxu0 0.0
  %4504 = vmatprep.subr.mxu0 0.0
  %4505 = vmatpush1.msra.mxu0 0.0
  %4506 = vmatprep.subr.mxu0 0.0
  %4507 = vmatpush1.msra.mxu0 0.0
  %4508 = vmatprep.subr.mxu0 0.0
  %4509 = vmatpush1.msra.mxu0 0.0
  %4510 = vmatprep.subr.mxu0 0.0
  %4511 = vmatpush1.msra.mxu0 0.0
  %4512 = vmatprep.subr.mxu0 0.0
  %4513 = vmatpush1.msra.mxu0 0.0
  %4514 = vmatprep.subr.mxu0 0.0
  %4515 = vmatpush1.msra.mxu0 0.0
  %4516 = vmatprep.subr.mxu0 0.0
  %4517 = vmatpush1.msra.mxu0 0.0
  %4518 = vmatprep.subr.mxu0 0.0
  %4519 = vmatpush1.msra.mxu0 0.0
  %4520 = vmatprep.subr.mxu0 0.0
  %4521 = vmatpush1.msra.mxu0 0.0
  %4522 = vmatprep.subr.mxu0 0.0
  %4523 = vmatpush1.msra.mxu0 0.0
  %4524 = vmatprep.subr.mxu0 0.0
  %4525 = vmatpush1.msra.mxu0 0.0
  %4526 = vmatprep.subr.mxu0 0.0
  %4527 = vmatpush1.msra.mxu0 0.0
  %4528 = vmatprep.mubr.f32.mxu0 0.0
  %4529 = vmatmul.mubr.f32.gmra.mrb[0].mxu0 %v4447
  %v4530 = vpop.f32.mrb[0].mxu0
  %v4531 = vadd.f32 %v4444, %v4530
  %v4532 = vpop.f32.mrb[0].mxu0
  %4533 = vmatprep.mubr.f32.mxu0 0.0
  %4534 = vmatmul.mubr.f32.gmra.mrb[0].mxu0 %v4450
  %v4535 = vpop.f32.mrb[0].mxu0
  %v4536 = vadd.f32 %v4444, %v4535
  %v4537 = vpop.f32.mrb[0].mxu0
  %4538 = vmatprep.mubr.f32.mxu0 0.0
  %4539 = vmatmul.mubr.f32.gmra.mrb[0].mxu0 %v4453
  %v4540 = vpop.f32.mrb[0].mxu0
  %v4541 = vadd.f32 %v4444, %v4540
  %v4542 = vpop.f32.mrb[0].mxu0
  %4543 = vmatprep.mubr.f32.mxu0 0.0
  %4544 = vmatmul.mubr.f32.gmra.mrb[0].mxu0 %v4456
  %v4545 = vpop.f32.mrb[0].mxu0
  %v4546 = vadd.f32 %v4444, %v4545
  %v4547 = vpop.f32.mrb[0].mxu0
  %4548 = vmatprep.mubr.f32.mxu0 0.0
  %4549 = vmatmul.mubr.f32.gmra.mrb[0].mxu0 %v4459
  %v4550 = vpop.f32.mrb[0].mxu0
  %v4551 = vadd.f32 %v4444, %v4550
  %v4552 = vpop.f32.mrb[0].mxu0
  %4553 = vmatprep.mubr.f32.mxu0 0.0
  %4554 = vmatmul.mubr.f32.gmra.mrb[0].mxu0 %v4462
  %v4555 = vpop.f32.mrb[0].mxu0
  %v4556 = vadd.f32 %v4444, %v4555
  %v4557 = vpop.f32.mrb[0].mxu0
  %4558 = vdwg.mxu0
  %v4559 = vmul.f32 %v4531, 0.5
  %v4560 = vmul.f32 %v4536, 0.5
  %v4561 = vmul.f32 %v4541, 0.5
  %v4562 = vmul.f32 %v4546, 0.5
  %v4563 = vmul.f32 %v4551, 0.5
  %v4564 = vmul.f32 %v4556, 0.5
  %v4565 = vmul.f32 %v4531, 0.70710677
  %v4566 = vmul.f32 %v4536, 0.70710677
  %v4567 = vmul.f32 %v4541, 0.70710677
  %v4568 = vmul.f32 %v4546, 0.70710677
  %v4569 = vmul.f32 %v4551, 0.70710677
  %v4570 = vmul.f32 %v4556, 0.70710677
  %v4571 = verf.f32.pop %v4565
  %v4572 = verf.f32.pop %v4566
  %v4573 = verf.f32.pop %v4567
  %v4574 = verf.f32.pop %v4568
  %v4575 = verf.f32.pop %v4569
  %v4576 = verf.f32.pop %v4570
  %v4577 = vadd.f32 %v4571, 1.0
  %v4578 = vadd.f32 %v4572, 1.0
  %v4579 = vadd.f32 %v4573, 1.0
  %v4580 = vadd.f32 %v4574, 1.0
  %v4581 = vadd.f32 %v4575, 1.0
  %v4582 = vadd.f32 %v4576, 1.0
  %v4583 = vmul.f32 %v4559, %v4577
  %v4584 = vmul.f32 %v4560, %v4578
  %v4585 = vmul.f32 %v4561, %v4579
  %v4586 = vmul.f32 %v4562, %v4580
  %v4587 = vmul.f32 %v4563, %v4581
  %v4588 = vmul.f32 %v4564, %v4582
  %s4589 = scalar_lea.vmem %s14, 128
  %v4590 = vld [vmem:[%s4589] sm:$0xff]
  %v4591 = vld [vmem:[%s4589 + $0x8] sm:$0xff]
  %v4592 = vld [vmem:[%s4589 + $0x10] sm:$0xff]
  %v4593 = vld [vmem:[%s4589 + $0x18] sm:$0xff]
  %v4594 = vld [vmem:[%s4589 + $0x20] sm:$0xff]
  %v4595 = vld [vmem:[%s4589 + $0x28] sm:$0xff]
  %v4596 = vld [vmem:[%s4589 + $0x30] sm:$0xff]
  %v4597 = vld [vmem:[%s4589 + $0x38] sm:$0xff]
  %v4598 = vld [vmem:[%s4589 + $0x40] sm:$0xff]
  %v4599 = vld [vmem:[%s4589 + $0x48] sm:$0xff]
  %v4600 = vld [vmem:[%s4589 + $0x50] sm:$0xff]
  %v4601 = vld [vmem:[%s4589 + $0x58] sm:$0xff]
  %v4602 = vld [vmem:[%s4589 + $0x60] sm:$0xff]
  %v4603 = vld [vmem:[%s4589 + $0x68] sm:$0xff]
  %v4604 = vld [vmem:[%s4589 + $0x70] sm:$0xff]
  %v4605 = vld [vmem:[%s4589 + $0x78] sm:$0xff]
  %s4606 = scalar_lea.vmem %s15, 1
  %v4607 = vld [vmem:[%s4606] sm:$0x1]
  %v4609 = vlaneseq
  %v4610 = vshrl.u32 %v4609, 7
  %v4611 = vsub.s32 0, %v4610
  %v4612 = vrot.slane %v4607, %v4611
  %4614 = vmatprep.subr.mxu0 0.0
  %4615 = vmatpush1.msra.mxu0 %v4590
  %4616 = vmatprep.subr.mxu0 0.0
  %4617 = vmatpush1.msra.mxu0 %v4591
  %4618 = vmatprep.subr.mxu0 0.0
  %4619 = vmatpush1.msra.mxu0 %v4592
  %4620 = vmatprep.subr.mxu0 0.0
  %4621 = vmatpush1.msra.mxu0 %v4593
  %4622 = vmatprep.subr.mxu0 0.0
  %4623 = vmatpush1.msra.mxu0 %v4594
  %4624 = vmatprep.subr.mxu0 0.0
  %4625 = vmatpush1.msra.mxu0 %v4595
  %4626 = vmatprep.subr.mxu0 0.0
  %4627 = vmatpush1.msra.mxu0 %v4596
  %4628 = vmatprep.subr.mxu0 0.0
  %4629 = vmatpush1.msra.mxu0 %v4597
  %4630 = vmatprep.subr.mxu0 0.0
  %4631 = vmatpush1.msra.mxu0 %v4598
  %4632 = vmatprep.subr.mxu0 0.0
  %4633 = vmatpush1.msra.mxu0 %v4599
  %4634 = vmatprep.subr.mxu0 0.0
  %4635 = vmatpush1.msra.mxu0 %v4600
  %4636 = vmatprep.subr.mxu0 0.0
  %4637 = vmatpush1.msra.mxu0 %v4601
  %4638 = vmatprep.subr.mxu0 0.0
  %4639 = vmatpush1.msra.mxu0 %v4602
  %4640 = vmatprep.subr.mxu0 0.0
  %4641 = vmatpush1.msra.mxu0 %v4603
  %4642 = vmatprep.subr.mxu0 0.0
  %4643 = vmatpush1.msra.mxu0 %v4604
  %4644 = vmatprep.subr.mxu0 0.0
  %4645 = vmatpush1.msra.mxu0 %v4605
  %4646 = vmatprep.subr.mxu0 0.0
  %4647 = vmatpush1.msra.mxu0 0.0
  %4648 = vmatprep.subr.mxu0 0.0
  %4649 = vmatpush1.msra.mxu0 0.0
  %4650 = vmatprep.subr.mxu0 0.0
  %4651 = vmatpush1.msra.mxu0 0.0
  %4652 = vmatprep.subr.mxu0 0.0
  %4653 = vmatpush1.msra.mxu0 0.0
  %4654 = vmatprep.subr.mxu0 0.0
  %4655 = vmatpush1.msra.mxu0 0.0
  %4656 = vmatprep.subr.mxu0 0.0
  %4657 = vmatpush1.msra.mxu0 0.0
  %4658 = vmatprep.subr.mxu0 0.0
  %4659 = vmatpush1.msra.mxu0 0.0
  %4660 = vmatprep.subr.mxu0 0.0
  %4661 = vmatpush1.msra.mxu0 0.0
  %4662 = vmatprep.subr.mxu0 0.0
  %4663 = vmatpush1.msra.mxu0 0.0
  %4664 = vmatprep.subr.mxu0 0.0
  %4665 = vmatpush1.msra.mxu0 0.0
  %4666 = vmatprep.subr.mxu0 0.0
  %4667 = vmatpush1.msra.mxu0 0.0
  %4668 = vmatprep.subr.mxu0 0.0
  %4669 = vmatpush1.msra.mxu0 0.0
  %4670 = vmatprep.subr.mxu0 0.0
  %4671 = vmatpush1.msra.mxu0 0.0
  %4672 = vmatprep.subr.mxu0 0.0
  %4673 = vmatpush1.msra.mxu0 0.0
  %4674 = vmatprep.subr.mxu0 0.0
  %4675 = vmatpush1.msra.mxu0 0.0
  %4676 = vmatprep.subr.mxu0 0.0
  %4677 = vmatpush1.msra.mxu0 0.0
  %4678 = vmatprep.mubr.f32.mxu0 0.0
  %4679 = vmatmul.mubr.f32.gmra.mrb[0].mxu0 %v4583
  %v4680 = vpop.f32.mrb[0].mxu0
  %v4681 = vadd.f32 %v4612, %v4680
  %v4682 = vpop.f32.mrb[0].mxu0
  %4683 = vmatprep.mubr.f32.mxu0 0.0
  %4684 = vmatmul.mubr.f32.gmra.mrb[0].mxu0 %v4584
  %v4685 = vpop.f32.mrb[0].mxu0
  %v4686 = vadd.f32 %v4612, %v4685
  %v4687 = vpop.f32.mrb[0].mxu0
  %4688 = vmatprep.mubr.f32.mxu0 0.0
  %4689 = vmatmul.mubr.f32.gmra.mrb[0].mxu0 %v4585
  %v4690 = vpop.f32.mrb[0].mxu0
  %v4691 = vadd.f32 %v4612, %v4690
  %v4692 = vpop.f32.mrb[0].mxu0
  %4693 = vmatprep.mubr.f32.mxu0 0.0
  %4694 = vmatmul.mubr.f32.gmra.mrb[0].mxu0 %v4586
  %v4695 = vpop.f32.mrb[0].mxu0
  %v4696 = vadd.f32 %v4612, %v4695
  %v4697 = vpop.f32.mrb[0].mxu0
  %4698 = vmatprep.mubr.f32.mxu0 0.0
  %4699 = vmatmul.mubr.f32.gmra.mrb[0].mxu0 %v4587
  %v4700 = vpop.f32.mrb[0].mxu0
  %v4701 = vadd.f32 %v4612, %v4700
  %v4702 = vpop.f32.mrb[0].mxu0
  %4703 = vmatprep.mubr.f32.mxu0 0.0
  %4704 = vmatmul.mubr.f32.gmra.mrb[0].mxu0 %v4588
  %v4705 = vpop.f32.mrb[0].mxu0
  %v4706 = vadd.f32 %v4612, %v4705
  %v4707 = vpop.f32.mrb[0].mxu0
  %4708 = vdwg.mxu0
  %v4709 = vadd.f32 %v4321, %v4681
  %v4710 = vadd.f32 %v4322, %v4686
  %v4711 = vadd.f32 %v4323, %v4691
  %v4712 = vadd.f32 %v4324, %v4696
  %v4713 = vadd.f32 %v4325, %v4701
  %v4714 = vadd.f32 %v4326, %v4706
  %4715 = vst.msk [vmem:[%s16] sm:$0xff] %vm175, %v4709
  %4716 = vst.msk [vmem:[%s16 + $0x8] sm:$0xff] %vm175, %v4710
  %4717 = vst.msk [vmem:[%s16 + $0x10] sm:$0xff] %vm175, %v4711
  %4718 = vst.msk [vmem:[%s16 + $0x18] sm:$0xff] %vm175, %v4712
  %4719 = vst.msk [vmem:[%s16 + $0x20] sm:$0xff] %vm175, %v4713
  %4720 = vst.msk [vmem:[%s16 + $0x28] sm:$0xff] %vm175, %v4714
  // Predicated region
  $region66: #{transreid_forward.1} parent=0 // pred_check
    _
  $region67: #{transreid_forward.1} parent=0 // pred_check_branch
    %4722 = sbr.rel (0) target = $region69
  $region68: #{transreid_forward.1} parent=0 // pred_region
    _
  $region69: #{transreid_forward.1} parent=0 // pred_fallthru
    _
  // Predicated region
  $region70: #{transreid_forward.1} parent=0 // pred_check
    _
  $region71: #{transreid_forward.1} parent=0 // pred_check_branch
    %4724 = sbr.rel (0) target = $region73
  $region72: #{transreid_forward.1} parent=0 // pred_region
    _
  $region73: #{transreid_forward.1} parent=0 // pred_fallthru
    _
  // Predicated region
  $region74: #{transreid_forward.1} parent=0 // pred_check
    _
  $region75: #{transreid_forward.1} parent=0 // pred_check_branch
    %4726 = sbr.rel (0) target = $region77
  $region76: #{transreid_forward.1} parent=0 // pred_region
    _
  $region77: #{transreid_forward.1} parent=0 // pred_fallthru
    _
  // Predicated region
  $region78: #{transreid_forward.1} parent=0 // pred_check
    _
  $region79: #{transreid_forward.1} parent=0 // pred_check_branch
    %4728 = sbr.rel (0) target = $region81
  $region80: #{transreid_forward.1} parent=0 // pred_region
    _
  $region81: #{transreid_forward.1} parent=0 // pred_fallthru
    _

</llo_original>
